<compile_context>
chip_gen: v7x
topology: tpu7x:2x2x1
jax: 0.10.0
libtpu: 0.0.40
codegen_flags: <defaults>
</compile_context>

<pallas_src>
import functools

import jax
import jax.numpy as jnp
from jax.experimental import pallas as pl
from jax.experimental.pallas import tpu as pltpu


NUM_FTRS = 1280           # efficientnet_v2_s classifier[1].in_features
EMBEDDING_DIM = 512
INTERP_FC = 256
STEM_CH = 24              # efficientnet_v2_s stem width
CP = 128                  # stem channels padded to a full lane group


def _round_up(x, m):
    return ((x + m - 1) // m) * m


def _device_caps():
    """Generation-specific knobs (safe defaults if detection fails)."""
    try:
        kind = jax.devices()[0].device_kind.lower()
    except Exception:
        kind = ""
    legacy_vpu = any(t in kind for t in ("v2", "v3", "v4", "v5"))  # no bf16 VPU/EUP
    big_vmem = any(t in kind for t in ("v5", "v6"))                # 128 MiB VMEM
    tp_cap = 2048 if big_vmem else 1024                            # v7x: 64 MiB VMEM
    vmem_limit = (64 if big_vmem else 32) * 1024 * 1024
    return (not legacy_vpu), tp_cap, vmem_limit


WIDE_ACT_BF16, TP_CAP, VMEM_LIMIT = _device_caps()


# -----------------------------------------------------------------------------
# Fully fused kernel:
#   stem matmul+SiLU -> 1x1 conv+SiLU -> avg-pool accumulate
#   (last tile) -> feature_transform -> intermediate_fc+ReLU -> prediction -> sigmoid
# -----------------------------------------------------------------------------
def _fused_kernel(patch_ref, sw_ref, sb_ref, hw_ref, hb_ref,
                  ftw_ref, ftb_ref, w1_ref, b1_ref, w2_ref, b2_ref,
                  o_ref, acc_ref,
                  *, inv_p, p_valid, tp, wide_bf16, needs_mask):
    pt = pl.program_id(1)

    @pl.when(pt == 0)
    def _():
        acc_ref[...] = jnp.zeros_like(acc_ref)

    # --- stem 3x3/s2 conv as matmul over im2col patches (bf16 in, f32 acc) ---
    x = patch_ref[...]                                              # (TP, 32) bf16
    y = jnp.dot(x, sw_ref[...], preferred_element_type=jnp.float32) + sb_ref[...]
    y = y * jax.nn.sigmoid(y)                                       # SiLU (f32, 128-wide)

    # --- 1x1 head conv to 1280 feature channels ------------------------------
    y = jnp.dot(y.astype(jnp.bfloat16), hw_ref[...],
                preferred_element_type=jnp.float32) + hb_ref[...]   # (TP, 1280) f32

    # Wide SiLU: bf16 on v6e/v7x (bf16 EUP/VPU ~2x f32), f32 on v5e and older.
    if wide_bf16:
        yb = y.astype(jnp.bfloat16)
        act = (yb * jax.nn.sigmoid(yb)).astype(jnp.float32)
    else:
        act = y * jax.nn.sigmoid(y)

    # Mask rows past the true spatial extent P (only when the last tile is ragged).
    if needs_mask:
        rows = pt * tp + jax.lax.broadcasted_iota(jnp.int32, (tp, 1), 0)
        act = jnp.where(rows < p_valid, act, 0.0)

    # global-average-pool partial sum for this spatial tile (always f32)
    acc_ref[...] += jnp.sum(act, axis=0, keepdims=True)             # (1, 1280)

    # --- epilogue on the last spatial tile: exact head, fused ----------------
    @pl.when(pt == pl.num_programs(1) - 1)
    def _():
        feats = (acc_ref[...] * inv_p).astype(jnp.bfloat16)         # pooled (1, 1280)
        # feature_transform: Linear(1280, 512)
        x_t = jnp.dot(feats, ftw_ref[...],
                      preferred_element_type=jnp.float32) + ftb_ref[...]
        # intermediate_fc on cat(pref, x_t): pref branch pre-folded into b1
        h = jnp.dot(x_t.astype(jnp.bfloat16), w1_ref[...],
                    preferred_element_type=jnp.float32) + b1_ref[...]
        h = jnp.maximum(h, 0.0)                                     # ReLU (+Dropout=id)
        # prediction_layer (N=1): VPU reduction instead of a wasted MXU pass
        logit = jnp.sum(h * w2_ref[...], axis=-1, keepdims=True) + b2_ref[...]
        o_ref[...] = jax.nn.sigmoid(logit)                          # (1, 1)


def fused_forward(patches, stem_w, stem_b, head_w, head_b,
                  ft_w, ft_b, w1_x, b1, w2, b2, *, p_valid, tp, wide_bf16):
    """patches: [B, P_pad, KP] bf16 -> sigmoid prediction [B]."""
    B, P_pad, KP = patches.shape
    nt = P_pad // tp
    NF = head_w.shape[1]
    D = ft_w.shape[1]
    F = w1_x.shape[1]

    kern = functools.partial(
        _fused_kernel, inv_p=1.0 / p_valid, p_valid=p_valid, tp=tp,
        wide_bf16=wide_bf16, needs_mask=(P_pad != p_valid))

    out = pl.pallas_call(
        kern,
        grid=(B, nt),
        out_shape=jax.ShapeDtypeStruct((B, 1, 1), jnp.float32),
        in_specs=[
            pl.BlockSpec((None, tp, KP), lambda b, pt: (b, pt, 0)),   # patches tile
            pl.BlockSpec((KP, CP), lambda b, pt: (0, 0)),             # stem_w
            pl.BlockSpec((1, CP), lambda b, pt: (0, 0)),              # stem_b
            pl.BlockSpec((CP, NF), lambda b, pt: (0, 0)),             # headconv_w
            pl.BlockSpec((1, NF), lambda b, pt: (0, 0)),              # headconv_b
            pl.BlockSpec((NF, D), lambda b, pt: (0, 0)),              # ft_w
            pl.BlockSpec((1, D), lambda b, pt: (0, 0)),               # ft_b
            pl.BlockSpec((D, F), lambda b, pt: (0, 0)),               # fc1_w (x_t rows)
            pl.BlockSpec((1, F), lambda b, pt: (0, 0)),               # fc1_b (+pref fold)
            pl.BlockSpec((1, F), lambda b, pt: (0, 0)),               # pred_w^T
            pl.BlockSpec((1, 1), lambda b, pt: (0, 0)),               # pred_b
        ],
        out_specs=pl.BlockSpec((None, 1, 1), lambda b, pt: (b, 0, 0)),
        scratch_shapes=[pltpu.VMEM((1, NF), jnp.float32)],
        compiler_params=pltpu.CompilerParams(
            dimension_semantics=("parallel", "arbitrary"),
            vmem_limit_bytes=VMEM_LIMIT,
        ),
    )(patches, stem_w, stem_b, head_w, head_b, ft_w, ft_b, w1_x, b1, w2, b2)
    return out[:, 0, 0]


# -----------------------------------------------------------------------------
# Model wrapper
# -----------------------------------------------------------------------------
def init_params(key):
    ks = jax.random.split(key, 6)
    scale = 0.02
    return {
        # stem conv 3x3 stride 2 (BN folded into bias), weight as [kh*kw*Cin, Cout]
        "stem_w": scale * jax.random.normal(ks[0], (3 * 3 * 3, STEM_CH), jnp.float32),
        "stem_b": jnp.zeros((STEM_CH,), jnp.float32),
        # 1x1 head conv to 1280 channels (+SiLU), stand-in for the backbone tail
        "headconv_w": scale * jax.random.normal(ks[1], (STEM_CH, NUM_FTRS), jnp.float32),
        "headconv_b": jnp.zeros((NUM_FTRS,), jnp.float32),
        # feature_transform: Linear(1280, 512)
        "ft_w": scale * jax.random.normal(ks[2], (NUM_FTRS, EMBEDDING_DIM), jnp.float32),
        "ft_b": jnp.zeros((EMBEDDING_DIM,), jnp.float32),
        # preference embedding (zeros, as in the module)
        "pref_emb": jnp.zeros((EMBEDDING_DIM,), jnp.float32),
        # intermediate_fc: Linear(1024, 256) + ReLU (+Dropout, identity in eval)
        "fc1_w": scale * jax.random.normal(ks[3], (2 * EMBEDDING_DIM, INTERP_FC), jnp.float32),
        "fc1_b": jnp.zeros((INTERP_FC,), jnp.float32),
        # prediction_layer: Linear(256, 1)
        "pred_w": scale * jax.random.normal(ks[4], (INTERP_FC, 1), jnp.float32),
        "pred_b": jnp.zeros((1,), jnp.float32),
    }


def me621_forward(params, image_nchw):
    """mode='prediction', train=False."""
    # NCHW (PyTorch) -> NHWC (TPU lanes = channels) at the boundary
    x = jnp.transpose(image_nchw, (0, 2, 3, 1)).astype(jnp.float32)
    B, H, W, Cin = x.shape
    OH, OW = (H + 1) // 2, (W + 1) // 2
    P = OH * OW
    K = 9 * Cin

    # --- im2col for the stem 3x3/s2/p1 conv (XLA glue) -----------------------
    # TODO(synk): replace wrapper-side im2col (9x HBM duplication) with in-kernel
    # shifted reads of an NHWC tile for the full-resolution case.
    xp = jnp.pad(x, ((0, 0), (1, 1), (1, 1), (0, 0)))
    cols = [xp[:, dy:dy + 2 * OH - 1:2, dx:dx + 2 * OW - 1:2, :]
            for dy in range(3) for dx in range(3)]
    patches = jnp.concatenate(cols, axis=-1).reshape(B, P, K)

    # Pad K only to 32 (1.19x HBM) instead of 128 (4.7x); pad P to a whole
    # number of tiles (ragged last tile masked in-kernel).
    KP = _round_up(K, 32)
    TP = min(TP_CAP, _round_up(P, 8))
    nt = pl.cdiv(P, TP)
    P_pad = nt * TP
    patches = jnp.pad(
        patches, ((0, 0), (0, P_pad - P), (0, KP - K))).astype(jnp.bfloat16)

    # --- lane-padded, bf16 backbone weights ----------------------------------
    stem_w = jnp.pad(params["stem_w"],
                     ((0, KP - K), (0, CP - STEM_CH))).astype(jnp.bfloat16)
    stem_b = jnp.pad(params["stem_b"], (0, CP - STEM_CH)).reshape(1, CP)
    head_w = jnp.pad(params["headconv_w"],
                     ((0, CP - STEM_CH), (0, 0))).astype(jnp.bfloat16)
    head_b = params["headconv_b"].reshape(1, NUM_FTRS)

    # --- exact head weights; constant preference branch folded into the bias --
    # combined = cat(pref, x_t)  =>  b1' = b1 + pref @ W1[:512],  W1_x = W1[512:]
    ft_w = params["ft_w"].astype(jnp.bfloat16)
    ft_b = params["ft_b"].reshape(1, EMBEDDING_DIM)
    b1_eff = (params["fc1_b"]
              + params["pref_emb"] @ params["fc1_w"][:EMBEDDING_DIM]
              ).reshape(1, INTERP_FC)
    w1_x = params["fc1_w"][EMBEDDING_DIM:].astype(jnp.bfloat16)
    w2 = params["pred_w"].reshape(1, INTERP_FC)        # transposed for VPU reduction
    b2 = params["pred_b"].reshape(1, 1)

    pred = fused_forward(patches, stem_w, stem_b, head_w, head_b,
                         ft_w, ft_b, w1_x, b1_eff, w2, b2,
                         p_valid=P, tp=TP, wide_bf16=WIDE_ACT_BF16)
    return pred                                                     # (B,)


# -----------------------------------------------------------------------------
if __name__ == "__main__":
    key = jax.random.PRNGKey(0)
    pkey, ikey = jax.random.split(key)
    params = init_params(pkey)
    image = jax.random.normal(ikey, (2, 3, 16, 16), jnp.float32)  # NCHW like PyTorch

    fwd = jax.jit(me621_forward)
    out = jax.block_until_ready(fwd(params, image))
    assert out.shape == (2,)
    assert bool(jnp.all(jnp.isfinite(out)))
    assert bool(jnp.all((out >= 0.0) & (out <= 1.0)))
    print("KERNEL_OK")
</pallas_src>

<mosaic_0001>
module attributes {stable_mosaic.version = 11 : i64} {
  func.func @_fused_kernel(%arg0: i32, %arg1: i32, %arg2: memref<1x64x32xbf16, #tpu.memory_space<vmem>>, %arg3: memref<32x128xbf16, #tpu.memory_space<vmem>>, %arg4: memref<1x128xf32, #tpu.memory_space<vmem>>, %arg5: memref<128x1280xbf16, #tpu.memory_space<vmem>>, %arg6: memref<1x1280xf32, #tpu.memory_space<vmem>>, %arg7: memref<1280x512xbf16, #tpu.memory_space<vmem>>, %arg8: memref<1x512xf32, #tpu.memory_space<vmem>>, %arg9: memref<512x256xbf16, #tpu.memory_space<vmem>>, %arg10: memref<1x256xf32, #tpu.memory_space<vmem>>, %arg11: memref<1x256xf32, #tpu.memory_space<vmem>>, %arg12: memref<1x1xf32, #tpu.memory_space<vmem>>, %arg13: memref<1x1x1xf32, #tpu.memory_space<vmem>>, %arg14: memref<1x1280xf32, #tpu.memory_space<vmem>>) attributes {dimension_semantics = [#tpu.dimension_semantics<parallel>, #tpu.dimension_semantics<arbitrary>], iteration_bounds = array<i64: 2, 1>, scalar_prefetch = 0 : i64, scratch_operands = 1 : i64, tpu.core_type = #tpu.core_type<tc>, window_params = [{transform_indices = @transform_0, window_bounds = array<i64: 1, 64, 32>}, {pipeline_mode = #tpu.pipeline_mode<synchronous>, transform_indices = @transform_1, window_bounds = array<i64: 32, 128>}, {pipeline_mode = #tpu.pipeline_mode<synchronous>, transform_indices = @transform_2, window_bounds = array<i64: 1, 128>}, {pipeline_mode = #tpu.pipeline_mode<synchronous>, transform_indices = @transform_3, window_bounds = array<i64: 128, 1280>}, {pipeline_mode = #tpu.pipeline_mode<synchronous>, transform_indices = @transform_4, window_bounds = array<i64: 1, 1280>}, {pipeline_mode = #tpu.pipeline_mode<synchronous>, transform_indices = @transform_5, window_bounds = array<i64: 1280, 512>}, {pipeline_mode = #tpu.pipeline_mode<synchronous>, transform_indices = @transform_6, window_bounds = array<i64: 1, 512>}, {pipeline_mode = #tpu.pipeline_mode<synchronous>, transform_indices = @transform_7, window_bounds = array<i64: 512, 256>}, {pipeline_mode = #tpu.pipeline_mode<synchronous>, transform_indices = @transform_8, window_bounds = array<i64: 1, 256>}, {pipeline_mode = #tpu.pipeline_mode<synchronous>, transform_indices = @transform_9, window_bounds = array<i64: 1, 256>}, {pipeline_mode = #tpu.pipeline_mode<synchronous>, transform_indices = @transform_10, window_bounds = array<i64: 1, 1>}, {transform_indices = @transform_11, window_bounds = array<i64: 1, 1, 1>}]} {
    %c0_i32 = arith.constant 0 : i32
    %0 = arith.cmpi eq, %arg1, %c0_i32 : i32
    %1 = arith.extui %0 : i1 to i32
    %c0_i32_0 = arith.constant 0 : i32
    %2 = arith.cmpi ne, %1, %c0_i32_0 : i32
    scf.if %2 {
      %cst_21 = arith.constant 0.000000e+00 : f32
      %38 = vector.broadcast %cst_21 : f32 to vector<1x1280xf32>
      %c0_22 = arith.constant 0 : index
      %c0_23 = arith.constant 0 : index
      %39 = vector.load %arg14[%c0_22, %c0_23] : memref<1x1280xf32, #tpu.memory_space<vmem>>, vector<1x1280xf32>
      tpu.vector_store %arg14[%c0_22, %c0_23], %38 {strides = array<i32>} : memref<1x1280xf32, #tpu.memory_space<vmem>>, vector<1x1280xf32>,
    } else {
    }
    %c0 = arith.constant 0 : index
    %c0_1 = arith.constant 0 : index
    %c0_2 = arith.constant 0 : index
    %3 = vector.load %arg2[%c0, %c0_1, %c0_2] : memref<1x64x32xbf16, #tpu.memory_space<vmem>>, vector<1x64x32xbf16>
    %4 = vector.shape_cast %3 : vector<1x64x32xbf16> to vector<64x32xbf16>
    %c0_3 = arith.constant 0 : index
    %c0_4 = arith.constant 0 : index
    %5 = vector.load %arg3[%c0_3, %c0_4] : memref<32x128xbf16, #tpu.memory_space<vmem>>, vector<32x128xbf16>
    %cst = arith.constant dense<0.000000e+00> : vector<64x128xf32>
    %6 = tpu.matmul %4, %5, %cst {dimension_numbers = #tpu.dot_dimension_numbers<[1], [0], [0], [1], [0, 0, 1, 1], [], []>} : vector<64x32xbf16>, vector<32x128xbf16>, vector<64x128xf32> -> vector<64x128xf32>
    %c0_5 = arith.constant 0 : index
    %c0_6 = arith.constant 0 : index
    %7 = vector.load %arg4[%c0_5, %c0_6] : memref<1x128xf32, #tpu.memory_space<vmem>>, vector<1x128xf32>
    %8 = vector.broadcast %7 : vector<1x128xf32> to vector<64x128xf32>
    %9 = arith.addf %6, %8 : vector<64x128xf32>
    %10 = arith.negf %9 : vector<64x128xf32>
    %11 = math.exp %10 : vector<64x128xf32>
    %cst_7 = arith.constant 1.000000e+00 : f32
    %12 = vector.broadcast %cst_7 : f32 to vector<64x128xf32>
    %13 = arith.addf %12, %11 : vector<64x128xf32>
    %14 = arith.divf %12, %13 : vector<64x128xf32>
    %15 = arith.mulf %9, %14 : vector<64x128xf32>
    %16 = arith.truncf %15 : vector<64x128xf32> to vector<64x128xbf16>
    %c0_8 = arith.constant 0 : index
    %c0_9 = arith.constant 0 : index
    %17 = vector.load %arg5[%c0_8, %c0_9] : memref<128x1280xbf16, #tpu.memory_space<vmem>>, vector<128x1280xbf16>
    %cst_10 = arith.constant dense<0.000000e+00> : vector<64x1280xf32>
    %18 = tpu.matmul %16, %17, %cst_10 {dimension_numbers = #tpu.dot_dimension_numbers<[1], [0], [0], [1], [0, 0, 1, 1], [], []>} : vector<64x128xbf16>, vector<128x1280xbf16>, vector<64x1280xf32> -> vector<64x1280xf32>
    %c0_11 = arith.constant 0 : index
    %c0_12 = arith.constant 0 : index
    %19 = vector.load %arg6[%c0_11, %c0_12] : memref<1x1280xf32, #tpu.memory_space<vmem>>, vector<1x1280xf32>
    %20 = vector.broadcast %19 : vector<1x1280xf32> to vector<64x1280xf32>
    %21 = arith.addf %18, %20 : vector<64x1280xf32>
    %22 = arith.truncf %21 : vector<64x1280xf32> to vector<64x1280xbf16>
    %23 = arith.negf %22 : vector<64x1280xbf16>
    %24 = math.exp %23 : vector<64x1280xbf16>
    %cst_13 = arith.constant 1.000000e+00 : bf16
    %25 = vector.broadcast %cst_13 : bf16 to vector<64x1280xbf16>
    %26 = arith.addf %25, %24 : vector<64x1280xbf16>
    %27 = arith.divf %25, %26 : vector<64x1280xbf16>
    %28 = arith.mulf %22, %27 : vector<64x1280xbf16>
    %29 = arith.extf %28 : vector<64x1280xbf16> to vector<64x1280xf32>
    %c0_14 = arith.constant 0 : index
    %c0_15 = arith.constant 0 : index
    %30 = vector.load %arg14[%c0_14, %c0_15] : memref<1x1280xf32, #tpu.memory_space<vmem>>, vector<1x1280xf32>
    %cst_16 = arith.constant dense<0.000000e+00> : vector<1280xf32>
    %31 = vector.multi_reduction <add>, %29, %cst_16 [0] : vector<64x1280xf32> to vector<1280xf32>
    %32 = vector.shape_cast %31 : vector<1280xf32> to vector<1x1280xf32>
    %33 = arith.addf %30, %32 : vector<1x1280xf32>
    %c0_17 = arith.constant 0 : index
    %c0_18 = arith.constant 0 : index
    %34 = vector.load %arg14[%c0_17, %c0_18] : memref<1x1280xf32, #tpu.memory_space<vmem>>, vector<1x1280xf32>
    tpu.vector_store %arg14[%c0_17, %c0_18], %33 {strides = array<i32>} : memref<1x1280xf32, #tpu.memory_space<vmem>>, vector<1x1280xf32>,
    %c0_i32_19 = arith.constant 0 : i32
    %35 = arith.cmpi eq, %arg1, %c0_i32_19 : i32
    %36 = arith.extui %35 : i1 to i32
    %c0_i32_20 = arith.constant 0 : i32
    %37 = arith.cmpi ne, %36, %c0_i32_20 : i32
    scf.if %37 {
      %c0_21 = arith.constant 0 : index
      %c0_22 = arith.constant 0 : index
      %38 = vector.load %arg14[%c0_21, %c0_22] : memref<1x1280xf32, #tpu.memory_space<vmem>>, vector<1x1280xf32>
      %cst_23 = arith.constant 1.562500e-02 : f32
      %39 = vector.broadcast %cst_23 : f32 to vector<1x1280xf32>
      %40 = arith.mulf %38, %39 : vector<1x1280xf32>
      %41 = arith.truncf %40 : vector<1x1280xf32> to vector<1x1280xbf16>
      %c0_24 = arith.constant 0 : index
      %c0_25 = arith.constant 0 : index
      %42 = vector.load %arg7[%c0_24, %c0_25] : memref<1280x512xbf16, #tpu.memory_space<vmem>>, vector<1280x512xbf16>
      %cst_26 = arith.constant dense<0.000000e+00> : vector<1x512xf32>
      %43 = tpu.matmul %41, %42, %cst_26 {dimension_numbers = #tpu.dot_dimension_numbers<[1], [0], [0], [1], [0, 0, 1, 1], [], []>} : vector<1x1280xbf16>, vector<1280x512xbf16>, vector<1x512xf32> -> vector<1x512xf32>
      %c0_27 = arith.constant 0 : index
      %c0_28 = arith.constant 0 : index
      %44 = vector.load %arg8[%c0_27, %c0_28] : memref<1x512xf32, #tpu.memory_space<vmem>>, vector<1x512xf32>
      %45 = arith.addf %43, %44 : vector<1x512xf32>
      %46 = arith.truncf %45 : vector<1x512xf32> to vector<1x512xbf16>
      %c0_29 = arith.constant 0 : index
      %c0_30 = arith.constant 0 : index
      %47 = vector.load %arg9[%c0_29, %c0_30] : memref<512x256xbf16, #tpu.memory_space<vmem>>, vector<512x256xbf16>
      %cst_31 = arith.constant dense<0.000000e+00> : vector<1x256xf32>
      %48 = tpu.matmul %46, %47, %cst_31 {dimension_numbers = #tpu.dot_dimension_numbers<[1], [0], [0], [1], [0, 0, 1, 1], [], []>} : vector<1x512xbf16>, vector<512x256xbf16>, vector<1x256xf32> -> vector<1x256xf32>
      %c0_32 = arith.constant 0 : index
      %c0_33 = arith.constant 0 : index
      %49 = vector.load %arg10[%c0_32, %c0_33] : memref<1x256xf32, #tpu.memory_space<vmem>>, vector<1x256xf32>
      %50 = arith.addf %48, %49 : vector<1x256xf32>
      %cst_34 = arith.constant 0.000000e+00 : f32
      %51 = vector.broadcast %cst_34 : f32 to vector<1x256xf32>
      %52 = arith.maximumf %50, %51 : vector<1x256xf32>
      %c0_35 = arith.constant 0 : index
      %c0_36 = arith.constant 0 : index
      %53 = vector.load %arg11[%c0_35, %c0_36] : memref<1x256xf32, #tpu.memory_space<vmem>>, vector<1x256xf32>
      %54 = arith.mulf %52, %53 : vector<1x256xf32>
      %cst_37 = arith.constant dense<0.000000e+00> : vector<1xf32>
      %55 = vector.multi_reduction <add>, %54, %cst_37 [1] : vector<1x256xf32> to vector<1xf32>
      %56 = vector.shape_cast %55 : vector<1xf32> to vector<1x1xf32>
      %c0_38 = arith.constant 0 : index
      %c0_39 = arith.constant 0 : index
      %57 = vector.load %arg12[%c0_38, %c0_39] : memref<1x1xf32, #tpu.memory_space<vmem>>, vector<1x1xf32>
      %58 = arith.addf %56, %57 : vector<1x1xf32>
      %59 = arith.negf %58 : vector<1x1xf32>
      %60 = math.exp %59 : vector<1x1xf32>
      %cst_40 = arith.constant 1.000000e+00 : f32
      %61 = vector.broadcast %cst_40 : f32 to vector<1x1xf32>
      %62 = arith.addf %61, %60 : vector<1x1xf32>
      %63 = arith.divf %61, %62 : vector<1x1xf32>
      %c0_41 = arith.constant 0 : index
      %c0_42 = arith.constant 0 : index
      %c0_43 = arith.constant 0 : index
      %64 = vector.load %arg13[%c0_41, %c0_42, %c0_43] : memref<1x1x1xf32, #tpu.memory_space<vmem>>, vector<1x1x1xf32>
      %65 = vector.shape_cast %64 : vector<1x1x1xf32> to vector<1x1xf32>
      %66 = vector.shape_cast %63 : vector<1x1xf32> to vector<1x1x1xf32>
      tpu.vector_store %arg13[%c0_41, %c0_42, %c0_43], %66 {strides = array<i32>} : memref<1x1x1xf32, #tpu.memory_space<vmem>>, vector<1x1x1xf32>,
    } else {
    }
    return
  }
  func.func @transform_0(%arg0: i32, %arg1: i32) -> (i32, i32, i32) {
    %c0_i32 = arith.constant 0 : i32
    %c0_i32_0 = arith.constant 0 : i32
    return %arg0, %arg1, %c0_i32 : i32, i32, i32
  }
  func.func @transform_1(%arg0: i32, %arg1: i32) -> (i32, i32) {
    %c0_i32 = arith.constant 0 : i32
    %c0_i32_0 = arith.constant 0 : i32
    %c0_i32_1 = arith.constant 0 : i32
    return %c0_i32, %c0_i32_0 : i32, i32
  }
  func.func @transform_2(%arg0: i32, %arg1: i32) -> (i32, i32) {
    %c0_i32 = arith.constant 0 : i32
    %c0_i32_0 = arith.constant 0 : i32
    %c0_i32_1 = arith.constant 0 : i32
    return %c0_i32, %c0_i32_0 : i32, i32
  }
  func.func @transform_3(%arg0: i32, %arg1: i32) -> (i32, i32) {
    %c0_i32 = arith.constant 0 : i32
    %c0_i32_0 = arith.constant 0 : i32
    %c0_i32_1 = arith.constant 0 : i32
    return %c0_i32, %c0_i32_0 : i32, i32
  }
  func.func @transform_4(%arg0: i32, %arg1: i32) -> (i32, i32) {
    %c0_i32 = arith.constant 0 : i32
    %c0_i32_0 = arith.constant 0 : i32
    %c0_i32_1 = arith.constant 0 : i32
    return %c0_i32, %c0_i32_0 : i32, i32
  }
  func.func @transform_5(%arg0: i32, %arg1: i32) -> (i32, i32) {
    %c0_i32 = arith.constant 0 : i32
    %c0_i32_0 = arith.constant 0 : i32
    %c0_i32_1 = arith.constant 0 : i32
    return %c0_i32, %c0_i32_0 : i32, i32
  }
  func.func @transform_6(%arg0: i32, %arg1: i32) -> (i32, i32) {
    %c0_i32 = arith.constant 0 : i32
    %c0_i32_0 = arith.constant 0 : i32
    %c0_i32_1 = arith.constant 0 : i32
    return %c0_i32, %c0_i32_0 : i32, i32
  }
  func.func @transform_7(%arg0: i32, %arg1: i32) -> (i32, i32) {
    %c0_i32 = arith.constant 0 : i32
    %c0_i32_0 = arith.constant 0 : i32
    %c0_i32_1 = arith.constant 0 : i32
    return %c0_i32, %c0_i32_0 : i32, i32
  }
  func.func @transform_8(%arg0: i32, %arg1: i32) -> (i32, i32) {
    %c0_i32 = arith.constant 0 : i32
    %c0_i32_0 = arith.constant 0 : i32
    %c0_i32_1 = arith.constant 0 : i32
    return %c0_i32, %c0_i32_0 : i32, i32
  }
  func.func @transform_9(%arg0: i32, %arg1: i32) -> (i32, i32) {
    %c0_i32 = arith.constant 0 : i32
    %c0_i32_0 = arith.constant 0 : i32
    %c0_i32_1 = arith.constant 0 : i32
    return %c0_i32, %c0_i32_0 : i32, i32
  }
  func.func @transform_10(%arg0: i32, %arg1: i32) -> (i32, i32) {
    %c0_i32 = arith.constant 0 : i32
    %c0_i32_0 = arith.constant 0 : i32
    %c0_i32_1 = arith.constant 0 : i32
    return %c0_i32, %c0_i32_0 : i32, i32
  }
  func.func @transform_11(%arg0: i32, %arg1: i32) -> (i32, i32, i32) {
    %c0_i32 = arith.constant 0 : i32
    %c0_i32_0 = arith.constant 0 : i32
    %c0_i32_1 = arith.constant 0 : i32
    return %arg0, %c0_i32, %c0_i32_0 : i32, i32, i32
  }
}

</mosaic_0001>

<llo_original>
// kernel: me621_forward.1
$region0: #{me621_forward.1}
  #allocation0 [shape = 'u32[]', space=smem, size = 0x4, offset = 0x4, fixed_abs, tag = 'smem constant byte address 0x4 - core index']
  #allocation1 [shape = 'u32[144,128]{1,0:T(1,128)}', space=vmem, size = 0x12000, scoped, tag = 'internal scratch']
  #allocation2 [shape = 'f32[1,1280]{1,0:T(1,128)}', space=vmem, size = 0x1400, scoped, tag = 'scratch operand']
  #allocation3 [shape = 'f32[1,1]{1,0:T(1,128)S(1)}', space=vmem, size = 0x200, scoped, tag = 'scoped memory for me621_forward.1']
  %s0 = inlined_call_operand.vmem [shape: bf16[2,64,32], index: 0, kind: input, shape index: {}]
  %s1 = inlined_call_operand.vmem [shape: bf16[32,128], index: 1, kind: input, shape index: {}]
  %s2 = inlined_call_operand.vmem [shape: f32[1,128], index: 2, kind: input, shape index: {}]
  %s3 = inlined_call_operand.vmem [shape: bf16[128,1280], index: 3, kind: input, shape index: {}]
  %s4 = inlined_call_operand.vmem [shape: f32[1,1280], index: 4, kind: input, shape index: {}]
  %s5 = inlined_call_operand.vmem [shape: bf16[1280,512], index: 5, kind: input, shape index: {}]
  %s6 = inlined_call_operand.vmem [shape: f32[1,512], index: 6, kind: input, shape index: {}]
  %s7 = inlined_call_operand.vmem [shape: bf16[512,256], index: 7, kind: input, shape index: {}]
  %s8 = inlined_call_operand.vmem [shape: f32[1,256], index: 8, kind: input, shape index: {}]
  %s9 = inlined_call_operand.vmem [shape: f32[1,256], index: 9, kind: input, shape index: {}]
  %s10 = inlined_call_operand.<no memory space> [shape: f32[1,1], index: 10, kind: input, shape index: {}]
  %s11 = inlined_call_operand.vmem [shape: f32[2,1,1], index: 11, kind: output, shape index: {}]
  %s12 = sld [smem:[#allocation0]]
  $region85: #{me621_forward.1} parent=0
    _
  %s14 = ssub.s32 1, %s12
  %s15 = scalar_select 0, %s14, %s12
  %v16 = vstv %s10
  %17 = vst [vmem:[#allocation3] sm:$0x1] %v16
  loop: start=0, step=1, limit=4
  $region2: #{me621_forward.1} parent=0 // loop_pre_header
    _
  $region3: #{me621_forward.1} parent=0 // loop_header
    %s19 = sphi 0, %s23
    %p20 = scmp.ge.s32.totalorder %s19, 4
    %s26 = sphi 0, %s38
    %s27 = sphi 0, %s34
    %s28 = sphi 0, %s26
    %s29 = sphi 0, %s27
    %s30 = sphi 0, %s28
    %s31 = sphi 0, %s29
    %s43 = sphi 0, %s45
    %s46 = sphi 0, %s43
    %s47 = sphi 0, %s46
    %s63 = sphi 0, %s47
    %s67 = sphi 0, %s67
    %s69 = sphi 0, %s67
    %s70 = sphi 0, %s69
    %s84 = sphi 0, %s70
    %s88 = sphi 0, %s88
    %s90 = sphi 0, %s88
    %s91 = sphi 0, %s90
    %s105 = sphi 0, %s91
    %s109 = sphi 0, %s109
    %s111 = sphi 0, %s109
    %s112 = sphi 0, %s111
    %s126 = sphi 0, %s112
    %s130 = sphi 0, %s130
    %s132 = sphi 0, %s130
    %s133 = sphi 0, %s132
    %s147 = sphi 0, %s133
    %s151 = sphi 0, %s151
    %s153 = sphi 0, %s151
    %s154 = sphi 0, %s153
    %s168 = sphi 0, %s154
    %s172 = sphi 0, %s172
    %s174 = sphi 0, %s172
    %s175 = sphi 0, %s174
    %s189 = sphi 0, %s175
    %s193 = sphi 0, %s193
    %s195 = sphi 0, %s193
    %s196 = sphi 0, %s195
    %s210 = sphi 0, %s196
    %s214 = sphi 0, %s214
    %s216 = sphi 0, %s214
    %s217 = sphi 0, %s216
    %s231 = sphi 0, %s217
    %s235 = sphi 0, %s235
    %s237 = sphi 0, %s235
    %s238 = sphi 0, %s237
    %s252 = sphi 0, %s238
    %s256 = sphi 0, %s256
    %s258 = sphi 0, %s256
    %s259 = sphi 0, %s258
    %s273 = sphi 0, %s259
    %s279 = sphi 0, %s281
    %s282 = sphi 0, %s279
    %s283 = sphi 0, %s282
    %s299 = sphi 0, %s283
  $region4: #{me621_forward.1} parent=0 // loop_header_branch
    %22 = sbr.rel (%p20) target = $region8
  $region5: #{me621_forward.1} parent=0 // loop_body
    %s24 = ssub.s32 %s19, 1
    %s25 = ssub.s32 %s19, 2
    %s32 = sadd.s32 1, %s27
    %p33 = scmp.ge.s32.totalorder %s32, 1
    %s34 = scalar_select %p33, 0, %s32
    %s35 = sadd.s32 1, %s26
    %s36 = scalar_select %p33, %s35, %s26
    %p37 = scmp.ge.s32.totalorder %s36, 2
    %s38 = scalar_select %p37, 0, %s36
    %s39 = ssub.s32 %s26, %s38
    %s40 = ssub.s32 %s27, %s34
    %s41 = sor.u32 %s39, %s40
    %p42 = scmp.eq.s32.totalorder %s41, 0
    %s44 = sadd.s32 %s43, 1
    %s45 = scalar_select %p42, %s43, %s44
    %p48 = pneg %p42
    %p49 = scmp.eq.s32.totalorder %s19, 1
    %p50 = por %p48, %p49
    %p51 = scmp.ne.s32.totalorder %s43, %s46
    %p52 = scmp.eq.s32.totalorder %s19, 0
    %p53 = por %p51, %p52
    %p54 = scmp.ne.s32.totalorder %s43, %s46
    %p55 = scmp.eq.s32.totalorder %s24, 1
    %p56 = por %p54, %p55
    %p57 = scmp.ne.s32.totalorder %s46, %s47
    %p58 = scmp.eq.s32.totalorder %s24, 0
    %p59 = por %p57, %p58
    %p60 = scmp.ne.s32.totalorder %s46, %s47
    %p61 = scmp.eq.s32.totalorder %s25, 1
    %p62 = por %p60, %p61
    %p64 = scmp.ne.s32.totalorder %s47, %s63
    %p65 = scmp.eq.s32.totalorder %s25, 0
    %p66 = por %p64, %p65
    %s68 = sadd.s32 %s67, 1
    %p71 = scmp.eq.s32.totalorder %s19, 1
    %p72 = scmp.ne.s32.totalorder %s67, %s69
    %p73 = scmp.eq.s32.totalorder %s19, 0
    %p74 = por %p72, %p73
    %p75 = scmp.ne.s32.totalorder %s67, %s69
    %p76 = scmp.eq.s32.totalorder %s24, 1
    %p77 = por %p75, %p76
    %p78 = scmp.ne.s32.totalorder %s69, %s70
    %p79 = scmp.eq.s32.totalorder %s24, 0
    %p80 = por %p78, %p79
    %p81 = scmp.ne.s32.totalorder %s69, %s70
    %p82 = scmp.eq.s32.totalorder %s25, 1
    %p83 = por %p81, %p82
    %p85 = scmp.ne.s32.totalorder %s70, %s84
    %p86 = scmp.eq.s32.totalorder %s25, 0
    %p87 = por %p85, %p86
    %s89 = sadd.s32 %s88, 1
    %p92 = scmp.eq.s32.totalorder %s19, 1
    %p93 = scmp.ne.s32.totalorder %s88, %s90
    %p94 = scmp.eq.s32.totalorder %s19, 0
    %p95 = por %p93, %p94
    %p96 = scmp.ne.s32.totalorder %s88, %s90
    %p97 = scmp.eq.s32.totalorder %s24, 1
    %p98 = por %p96, %p97
    %p99 = scmp.ne.s32.totalorder %s90, %s91
    %p100 = scmp.eq.s32.totalorder %s24, 0
    %p101 = por %p99, %p100
    %p102 = scmp.ne.s32.totalorder %s90, %s91
    %p103 = scmp.eq.s32.totalorder %s25, 1
    %p104 = por %p102, %p103
    %p106 = scmp.ne.s32.totalorder %s91, %s105
    %p107 = scmp.eq.s32.totalorder %s25, 0
    %p108 = por %p106, %p107
    %s110 = sadd.s32 %s109, 1
    %p113 = scmp.eq.s32.totalorder %s19, 1
    %p114 = scmp.ne.s32.totalorder %s109, %s111
    %p115 = scmp.eq.s32.totalorder %s19, 0
    %p116 = por %p114, %p115
    %p117 = scmp.ne.s32.totalorder %s109, %s111
    %p118 = scmp.eq.s32.totalorder %s24, 1
    %p119 = por %p117, %p118
    %p120 = scmp.ne.s32.totalorder %s111, %s112
    %p121 = scmp.eq.s32.totalorder %s24, 0
    %p122 = por %p120, %p121
    %p123 = scmp.ne.s32.totalorder %s111, %s112
    %p124 = scmp.eq.s32.totalorder %s25, 1
    %p125 = por %p123, %p124
    %p127 = scmp.ne.s32.totalorder %s112, %s126
    %p128 = scmp.eq.s32.totalorder %s25, 0
    %p129 = por %p127, %p128
    %s131 = sadd.s32 %s130, 1
    %p134 = scmp.eq.s32.totalorder %s19, 1
    %p135 = scmp.ne.s32.totalorder %s130, %s132
    %p136 = scmp.eq.s32.totalorder %s19, 0
    %p137 = por %p135, %p136
    %p138 = scmp.ne.s32.totalorder %s130, %s132
    %p139 = scmp.eq.s32.totalorder %s24, 1
    %p140 = por %p138, %p139
    %p141 = scmp.ne.s32.totalorder %s132, %s133
    %p142 = scmp.eq.s32.totalorder %s24, 0
    %p143 = por %p141, %p142
    %p144 = scmp.ne.s32.totalorder %s132, %s133
    %p145 = scmp.eq.s32.totalorder %s25, 1
    %p146 = por %p144, %p145
    %p148 = scmp.ne.s32.totalorder %s133, %s147
    %p149 = scmp.eq.s32.totalorder %s25, 0
    %p150 = por %p148, %p149
    %s152 = sadd.s32 %s151, 1
    %p155 = scmp.eq.s32.totalorder %s19, 1
    %p156 = scmp.ne.s32.totalorder %s151, %s153
    %p157 = scmp.eq.s32.totalorder %s19, 0
    %p158 = por %p156, %p157
    %p159 = scmp.ne.s32.totalorder %s151, %s153
    %p160 = scmp.eq.s32.totalorder %s24, 1
    %p161 = por %p159, %p160
    %p162 = scmp.ne.s32.totalorder %s153, %s154
    %p163 = scmp.eq.s32.totalorder %s24, 0
    %p164 = por %p162, %p163
    %p165 = scmp.ne.s32.totalorder %s153, %s154
    %p166 = scmp.eq.s32.totalorder %s25, 1
    %p167 = por %p165, %p166
    %p169 = scmp.ne.s32.totalorder %s154, %s168
    %p170 = scmp.eq.s32.totalorder %s25, 0
    %p171 = por %p169, %p170
    %s173 = sadd.s32 %s172, 1
    %p176 = scmp.eq.s32.totalorder %s19, 1
    %p177 = scmp.ne.s32.totalorder %s172, %s174
    %p178 = scmp.eq.s32.totalorder %s19, 0
    %p179 = por %p177, %p178
    %p180 = scmp.ne.s32.totalorder %s172, %s174
    %p181 = scmp.eq.s32.totalorder %s24, 1
    %p182 = por %p180, %p181
    %p183 = scmp.ne.s32.totalorder %s174, %s175
    %p184 = scmp.eq.s32.totalorder %s24, 0
    %p185 = por %p183, %p184
    %p186 = scmp.ne.s32.totalorder %s174, %s175
    %p187 = scmp.eq.s32.totalorder %s25, 1
    %p188 = por %p186, %p187
    %p190 = scmp.ne.s32.totalorder %s175, %s189
    %p191 = scmp.eq.s32.totalorder %s25, 0
    %p192 = por %p190, %p191
    %s194 = sadd.s32 %s193, 1
    %p197 = scmp.eq.s32.totalorder %s19, 1
    %p198 = scmp.ne.s32.totalorder %s193, %s195
    %p199 = scmp.eq.s32.totalorder %s19, 0
    %p200 = por %p198, %p199
    %p201 = scmp.ne.s32.totalorder %s193, %s195
    %p202 = scmp.eq.s32.totalorder %s24, 1
    %p203 = por %p201, %p202
    %p204 = scmp.ne.s32.totalorder %s195, %s196
    %p205 = scmp.eq.s32.totalorder %s24, 0
    %p206 = por %p204, %p205
    %p207 = scmp.ne.s32.totalorder %s195, %s196
    %p208 = scmp.eq.s32.totalorder %s25, 1
    %p209 = por %p207, %p208
    %p211 = scmp.ne.s32.totalorder %s196, %s210
    %p212 = scmp.eq.s32.totalorder %s25, 0
    %p213 = por %p211, %p212
    %s215 = sadd.s32 %s214, 1
    %p218 = scmp.eq.s32.totalorder %s19, 1
    %p219 = scmp.ne.s32.totalorder %s214, %s216
    %p220 = scmp.eq.s32.totalorder %s19, 0
    %p221 = por %p219, %p220
    %p222 = scmp.ne.s32.totalorder %s214, %s216
    %p223 = scmp.eq.s32.totalorder %s24, 1
    %p224 = por %p222, %p223
    %p225 = scmp.ne.s32.totalorder %s216, %s217
    %p226 = scmp.eq.s32.totalorder %s24, 0
    %p227 = por %p225, %p226
    %p228 = scmp.ne.s32.totalorder %s216, %s217
    %p229 = scmp.eq.s32.totalorder %s25, 1
    %p230 = por %p228, %p229
    %p232 = scmp.ne.s32.totalorder %s217, %s231
    %p233 = scmp.eq.s32.totalorder %s25, 0
    %p234 = por %p232, %p233
    %s236 = sadd.s32 %s235, 1
    %p239 = scmp.eq.s32.totalorder %s19, 1
    %p240 = scmp.ne.s32.totalorder %s235, %s237
    %p241 = scmp.eq.s32.totalorder %s19, 0
    %p242 = por %p240, %p241
    %p243 = scmp.ne.s32.totalorder %s235, %s237
    %p244 = scmp.eq.s32.totalorder %s24, 1
    %p245 = por %p243, %p244
    %p246 = scmp.ne.s32.totalorder %s237, %s238
    %p247 = scmp.eq.s32.totalorder %s24, 0
    %p248 = por %p246, %p247
    %p249 = scmp.ne.s32.totalorder %s237, %s238
    %p250 = scmp.eq.s32.totalorder %s25, 1
    %p251 = por %p249, %p250
    %p253 = scmp.ne.s32.totalorder %s238, %s252
    %p254 = scmp.eq.s32.totalorder %s25, 0
    %p255 = por %p253, %p254
    %s257 = sadd.s32 %s256, 1
    %p260 = scmp.eq.s32.totalorder %s19, 1
    %p261 = scmp.ne.s32.totalorder %s256, %s258
    %p262 = scmp.eq.s32.totalorder %s19, 0
    %p263 = por %p261, %p262
    %p264 = scmp.ne.s32.totalorder %s256, %s258
    %p265 = scmp.eq.s32.totalorder %s24, 1
    %p266 = por %p264, %p265
    %p267 = scmp.ne.s32.totalorder %s258, %s259
    %p268 = scmp.eq.s32.totalorder %s24, 0
    %p269 = por %p267, %p268
    %p270 = scmp.ne.s32.totalorder %s258, %s259
    %p271 = scmp.eq.s32.totalorder %s25, 1
    %p272 = por %p270, %p271
    %p274 = scmp.ne.s32.totalorder %s259, %s273
    %p275 = scmp.eq.s32.totalorder %s25, 0
    %p276 = por %p274, %p275
    %s277 = ssub.s32 %s26, %s38
    %p278 = scmp.eq.s32.totalorder %s277, 0
    %s280 = sadd.s32 %s279, 1
    %s281 = scalar_select %p278, %s279, %s280
    %p284 = pneg %p278
    %p285 = scmp.eq.s32.totalorder %s19, 1
    %p286 = por %p284, %p285
    %p287 = scmp.ne.s32.totalorder %s279, %s282
    %p288 = scmp.eq.s32.totalorder %s19, 0
    %p289 = por %p287, %p288
    %p290 = scmp.ne.s32.totalorder %s279, %s282
    %p291 = scmp.eq.s32.totalorder %s24, 1
    %p292 = por %p290, %p291
    %p293 = scmp.ne.s32.totalorder %s282, %s283
    %p294 = scmp.eq.s32.totalorder %s24, 0
    %p295 = por %p293, %p294
    %p296 = scmp.ne.s32.totalorder %s282, %s283
    %p297 = scmp.eq.s32.totalorder %s25, 1
    %p298 = por %p296, %p297
    %p300 = scmp.ne.s32.totalorder %s283, %s299
    %p301 = scmp.eq.s32.totalorder %s25, 0
    %p302 = por %p300, %p301
    %p303 = scmp.le.s32.totalorder 1, %s19
    %p304 = scmp.lt.s32.totalorder %s19, 3
    %p305 = pnand %p303, %p304
    %p306 = pneg %p305
    // Predicated region
    $region9: #{me621_forward.1} parent=5 // pred_check
      _
    $region10: #{me621_forward.1} parent=5 // pred_check_branch
      %308 = sbr.rel (%p305) target = $region12
    $region11: #{me621_forward.1} parent=5 // pred_region
      %s309 = ssub.s32 %s19, 1
      // Predicated region
      $region13: #{me621_forward.1} parent=11 // pred_check
        %p310 = pneg %p80
      $region14: #{me621_forward.1} parent=11 // pred_check_branch
        %312 = sbr.rel (%p310) target = $region16
      $region15: #{me621_forward.1} parent=11 // pred_region
        _
      $region16: #{me621_forward.1} parent=11 // pred_fallthru
        _
      // Predicated region
      $region17: #{me621_forward.1} parent=11 // pred_check
        %p313 = pneg %p101
      $region18: #{me621_forward.1} parent=11 // pred_check_branch
        %315 = sbr.rel (%p313) target = $region20
      $region19: #{me621_forward.1} parent=11 // pred_region
        _
      $region20: #{me621_forward.1} parent=11 // pred_fallthru
        _
      // Predicated region
      $region21: #{me621_forward.1} parent=11 // pred_check
        %p316 = pneg %p122
      $region22: #{me621_forward.1} parent=11 // pred_check_branch
        %318 = sbr.rel (%p316) target = $region24
      $region23: #{me621_forward.1} parent=11 // pred_region
        _
      $region24: #{me621_forward.1} parent=11 // pred_fallthru
        _
      // Predicated region
      $region25: #{me621_forward.1} parent=11 // pred_check
        %p319 = pneg %p143
      $region26: #{me621_forward.1} parent=11 // pred_check_branch
        %321 = sbr.rel (%p319) target = $region28
      $region27: #{me621_forward.1} parent=11 // pred_region
        _
      $region28: #{me621_forward.1} parent=11 // pred_fallthru
        _
      // Predicated region
      $region29: #{me621_forward.1} parent=11 // pred_check
        %p322 = pneg %p164
      $region30: #{me621_forward.1} parent=11 // pred_check_branch
        %324 = sbr.rel (%p322) target = $region32
      $region31: #{me621_forward.1} parent=11 // pred_region
        _
      $region32: #{me621_forward.1} parent=11 // pred_fallthru
        _
      // Predicated region
      $region33: #{me621_forward.1} parent=11 // pred_check
        %p325 = pneg %p185
      $region34: #{me621_forward.1} parent=11 // pred_check_branch
        %327 = sbr.rel (%p325) target = $region36
      $region35: #{me621_forward.1} parent=11 // pred_region
        _
      $region36: #{me621_forward.1} parent=11 // pred_fallthru
        _
      // Predicated region
      $region37: #{me621_forward.1} parent=11 // pred_check
        %p328 = pneg %p206
      $region38: #{me621_forward.1} parent=11 // pred_check_branch
        %330 = sbr.rel (%p328) target = $region40
      $region39: #{me621_forward.1} parent=11 // pred_region
        _
      $region40: #{me621_forward.1} parent=11 // pred_fallthru
        _
      // Predicated region
      $region41: #{me621_forward.1} parent=11 // pred_check
        %p331 = pneg %p227
      $region42: #{me621_forward.1} parent=11 // pred_check_branch
        %333 = sbr.rel (%p331) target = $region44
      $region43: #{me621_forward.1} parent=11 // pred_region
        _
      $region44: #{me621_forward.1} parent=11 // pred_fallthru
        _
      // Predicated region
      $region45: #{me621_forward.1} parent=11 // pred_check
        %p334 = pneg %p248
      $region46: #{me621_forward.1} parent=11 // pred_check_branch
        %336 = sbr.rel (%p334) target = $region48
      $region47: #{me621_forward.1} parent=11 // pred_region
        _
      $region48: #{me621_forward.1} parent=11 // pred_fallthru
        _
      // Predicated region
      $region49: #{me621_forward.1} parent=11 // pred_check
        %p337 = pneg %p269
      $region50: #{me621_forward.1} parent=11 // pred_check_branch
        %339 = sbr.rel (%p337) target = $region52
      $region51: #{me621_forward.1} parent=11 // pred_region
        _
      $region52: #{me621_forward.1} parent=11 // pred_fallthru
        _
    $region12: #{me621_forward.1} parent=5 // pred_fallthru
      _
    %p340 = scmp.lt.s32.totalorder %s19, 2
    // Predicated region
    $region53: #{me621_forward.1} parent=5 // pred_check
      %p341 = pneg %p340
    $region54: #{me621_forward.1} parent=5 // pred_check_branch
      %343 = sbr.rel (%p341) target = $region56
    $region55: #{me621_forward.1} parent=5 // pred_region
      // Predicated region
      $region57: #{me621_forward.1} parent=55 // pred_check
        %p344 = pneg %p53
      $region58: #{me621_forward.1} parent=55 // pred_check_branch
        %346 = sbr.rel (%p344) target = $region60
      $region59: #{me621_forward.1} parent=55 // pred_region
        %s347 = smul.u32 8, %s27
        %p348 = scmp.lt.s32.totalorder %s26, 1
        %s349 = scalar_select %p348, %s26, 1
        %p350 = scmp.lt.s32.totalorder %s347, 7
        %s351 = scalar_select %p350, %s347, 7
        %s352 = smul.addr %s349, 8
        %s353 = sadd.s32 %s351, %s352
        %s354 = smul.addr %s353, 4
        %s355 = scalar_lea.vmem %s0, %s354
        %s356 = smul.u32 8, %s27
      $region60: #{me621_forward.1} parent=55 // pred_fallthru
        _
    $region56: #{me621_forward.1} parent=5 // pred_fallthru
      _
    %p357 = scmp.le.s32.totalorder 1, %s19
    %p358 = scmp.lt.s32.totalorder %s19, 3
    %p359 = pnand %p357, %p358
    %p360 = pneg %p359
    // Predicated region
    $region61: #{me621_forward.1} parent=5 // pred_check
      _
    $region62: #{me621_forward.1} parent=5 // pred_check_branch
      %362 = sbr.rel (%p359) target = $region64
    $region63: #{me621_forward.1} parent=5 // pred_region
      %s363 = ssub.s32 %s19, 1
      %s364 = smul.u32 8, %s29
      %p365 = scmp.lt.s32.totalorder %s28, 1
      %s366 = scalar_select %p365, %s28, 1
      %p367 = scmp.lt.s32.totalorder %s364, 7
      %s368 = scalar_select %p367, %s364, 7
      %s369 = smul.addr %s366, 8
      %s370 = sadd.s32 %s368, %s369
      %s371 = smul.addr %s370, 4
      %s372 = scalar_lea.vmem %s0, %s371
      %p373 = pneg %p59
      %p374 = pneg %p56
      %p375 = pneg %p80
      %p376 = pneg %p77
      %p377 = pneg %p101
      %p378 = pneg %p98
      %p379 = pneg %p122
      %p380 = pneg %p119
      %p381 = pneg %p143
      %p382 = pneg %p140
      %p383 = pneg %p164
      %p384 = pneg %p161
      %p385 = pneg %p185
      %p386 = pneg %p182
      %p387 = pneg %p206
      %p388 = pneg %p203
      %p389 = pneg %p227
      %p390 = pneg %p224
      %p391 = pneg %p248
      %p392 = pneg %p245
      %p393 = pneg %p269
      %p394 = pneg %p266
      %p395 = pneg %p295
      %p396 = pneg %p292
      %p397 = scmp.lt.s32.totalorder %s28, 1
      %s398 = scalar_select %p397, %s28, 1
      %s399 = scalar_lea.vmem %s11, %s398
      %s400 = smul.u32 8, %s29
      %p401 = scmp.lt.s32.totalorder %s28, 1
      %s402 = scalar_select %p401, %s28, 1
      %p403 = scmp.lt.s32.totalorder %s400, 7
      %s404 = scalar_select %p403, %s400, 7
      %s405 = smul.addr %s402, 8
      %s406 = sadd.s32 %s404, %s405
      %s407 = smul.addr %s406, 4
      %s408 = scalar_lea.vmem %s0, %s407
      %s409 = smul.u32 8, %s29
      %p410 = scmp.lt.s32.totalorder %s28, 1
      %s411 = scalar_select %p410, %s28, 1
      %s412 = scalar_lea.vmem %s11, %s411
      %p415 = scmp.eq.s32.totalorder %s29, 0
      // Predicated region
      $region65: #{me621_forward.1} parent=63 // pred_check
        %p416 = pneg %p415
      $region66: #{me621_forward.1} parent=63 // pred_check_branch
        %418 = sbr.rel (%p416) target = $region68
      $region67: #{me621_forward.1} parent=63 // pred_region
        %419 = vst [vmem:[#allocation2] sm:$0xff] 0.0
        %v420 = vlaneseq
        %vm421 = vcmp.ge.s32.totalorder %v420, 0
        %vm422 = vcmp.lt.s32.totalorder %v420, 256
        %vm423 = vmand %vm421, %vm422
        %424 = vst.msk [vmem:[#allocation2 + $0x8] sm:$0x3] %vm423, 0.0
      $region68: #{me621_forward.1} parent=63 // pred_fallthru
        _
      %v425 = vld [vmem:[%s408] sm:$0xf]
      %v426 = vld [vmem:[%s408 + $0x4] sm:$0xf]
      %v427 = vld [vmem:[%s408 + $0x8] sm:$0xf]
      %v428 = vld [vmem:[%s408 + $0xc] sm:$0xf]
      %v429 = vld [vmem:[%s408 + $0x10] sm:$0xf]
      %v430 = vld [vmem:[%s408 + $0x14] sm:$0xf]
      %v431 = vld [vmem:[%s408 + $0x18] sm:$0xf]
      %v432 = vld [vmem:[%s408 + $0x1c] sm:$0xf]
      %v433 = vld [vmem:[%s1] sm:$0xf]
      %v434 = vld [vmem:[%s1 + $0x4] sm:$0xf]
      %v435 = vld [vmem:[%s1 + $0x8] sm:$0xf]
      %v436 = vld [vmem:[%s1 + $0xc] sm:$0xf]
      %v437 = vld [vmem:[%s2] sm:$0x1]
      %v439 = vlaneseq
      %v440 = vshrl.u32 %v439, 7
      %v441 = vsub.s32 0, %v440
      %v442 = vrot.slane %v437, %v441
      %v452 = vunpack.c.l.b16 %v425
      %v453 = vunpack.c.l.b16 %v426
      %v454 = vunpack.c.l.b16 %v427
      %v455 = vunpack.c.l.b16 %v428
      %v456 = vunpack.c.l.b16 %v429
      %v457 = vunpack.c.l.b16 %v430
      %v458 = vunpack.c.l.b16 %v431
      %v459 = vunpack.c.l.b16 %v432
      %v460 = vpack.c.b16 %v453, %v452
      %v461 = vpack.c.b16 %v455, %v454
      %v462 = vpack.c.b16 %v457, %v456
      %v463 = vpack.c.b16 %v459, %v458
      %v468 = vunpack.c.l.b16 %v433
      %v469 = vunpack.c.l.b16 %v434
      %v470 = vunpack.c.l.b16 %v435
      %v471 = vunpack.c.l.b16 %v436
      %v472 = vpack.c.b16 %v469, %v468
      %v473 = vpack.c.b16 %v471, %v470
      %vm476 = vcmask 261120
      %v478 = vsel %vm476, %v460, 0
      %v481 = vsel %vm476, %v461, 0
      %v484 = vsel %vm476, %v462, 0
      %v487 = vsel %vm476, %v463, 0
      %489 = vmatprep.subr.bf16.mxu0 0
      %490 = vmatpush1.bf16.msra.mxu0 %v472
      %491 = vmatprep.subr.bf16.mxu0 0
      %492 = vmatpush1.bf16.msra.mxu0 %v473
      %493 = vmatprep.subr.bf16.mxu0 0
      %494 = vmatpush1.bf16.msra.mxu0 0
      %495 = vmatprep.subr.bf16.mxu0 0
      %496 = vmatpush1.bf16.msra.mxu0 0
      %497 = vmatprep.subr.bf16.mxu0 0
      %498 = vmatpush1.bf16.msra.mxu0 0
      %499 = vmatprep.subr.bf16.mxu0 0
      %500 = vmatpush1.bf16.msra.mxu0 0
      %501 = vmatprep.subr.bf16.mxu0 0
      %502 = vmatpush1.bf16.msra.mxu0 0
      %503 = vmatprep.subr.bf16.mxu0 0
      %504 = vmatpush1.bf16.msra.mxu0 0
      %505 = vmatprep.subr.bf16.mxu0 0
      %506 = vmatpush1.bf16.msra.mxu0 0
      %507 = vmatprep.subr.bf16.mxu0 0
      %508 = vmatpush1.bf16.msra.mxu0 0
      %509 = vmatprep.subr.bf16.mxu0 0
      %510 = vmatpush1.bf16.msra.mxu0 0
      %511 = vmatprep.subr.bf16.mxu0 0
      %512 = vmatpush1.bf16.msra.mxu0 0
      %513 = vmatprep.subr.bf16.mxu0 0
      %514 = vmatpush1.bf16.msra.mxu0 0
      %515 = vmatprep.subr.bf16.mxu0 0
      %516 = vmatpush1.bf16.msra.mxu0 0
      %517 = vmatprep.subr.bf16.mxu0 0
      %518 = vmatpush1.bf16.msra.mxu0 0
      %519 = vmatprep.subr.bf16.mxu0 0
      %520 = vmatpush1.bf16.msra.mxu0 0
      %521 = vmatprep.mubr.bf16.mxu0 0
      %522 = vmatmul.mubr.bf16.gmra.mrb[0].mxu0 %v478
      %v523 = vpop.f32.mrb[0].mxu0
      %v524 = vadd.f32 %v442, %v523
      %v525 = vpop.f32.mrb[0].mxu0
      %v526 = vpop.f32.mrb[0].mxu0
      %v527 = vadd.f32 %v442, %v526
      %v528 = vpop.f32.mrb[0].mxu0
      %529 = vmatprep.mubr.bf16.mxu0 0
      %530 = vmatmul.mubr.bf16.gmra.mrb[0].mxu0 %v481
      %v531 = vpop.f32.mrb[0].mxu0
      %v532 = vadd.f32 %v442, %v531
      %v533 = vpop.f32.mrb[0].mxu0
      %v534 = vpop.f32.mrb[0].mxu0
      %v535 = vadd.f32 %v442, %v534
      %v536 = vpop.f32.mrb[0].mxu0
      %537 = vmatprep.mubr.bf16.mxu0 0
      %538 = vmatmul.mubr.bf16.gmra.mrb[0].mxu0 %v484
      %v539 = vpop.f32.mrb[0].mxu0
      %v540 = vadd.f32 %v442, %v539
      %v541 = vpop.f32.mrb[0].mxu0
      %v542 = vpop.f32.mrb[0].mxu0
      %v543 = vadd.f32 %v442, %v542
      %v544 = vpop.f32.mrb[0].mxu0
      %545 = vmatprep.mubr.bf16.mxu0 0
      %546 = vmatmul.mubr.bf16.gmra.mrb[0].mxu0 %v487
      %v547 = vpop.f32.mrb[0].mxu0
      %v548 = vadd.f32 %v442, %v547
      %v549 = vpop.f32.mrb[0].mxu0
      %v550 = vpop.f32.mrb[0].mxu0
      %v551 = vadd.f32 %v442, %v550
      %v552 = vpop.f32.mrb[0].mxu0
      %553 = vdwg.mxu0
      %v554 = vxor.u32 %v524, 2147483648
      %v555 = vxor.u32 %v527, 2147483648
      %v556 = vxor.u32 %v532, 2147483648
      %v557 = vxor.u32 %v535, 2147483648
      %v558 = vxor.u32 %v540, 2147483648
      %v559 = vxor.u32 %v543, 2147483648
      %v560 = vxor.u32 %v548, 2147483648
      %v561 = vxor.u32 %v551, 2147483648
      %v562 = vmul.f32 %v554, 1.442695
      %v563 = vpow.pop %v562
      %v564 = vmul.f32 %v555, 1.442695
      %v565 = vpow.pop %v564
      %v566 = vmul.f32 %v556, 1.442695
      %v567 = vpow.pop %v566
      %v568 = vmul.f32 %v557, 1.442695
      %v569 = vpow.pop %v568
      %v570 = vmul.f32 %v558, 1.442695
      %v571 = vpow.pop %v570
      %v572 = vmul.f32 %v559, 1.442695
      %v573 = vpow.pop %v572
      %v574 = vmul.f32 %v560, 1.442695
      %v575 = vpow.pop %v574
      %v576 = vmul.f32 %v561, 1.442695
      %v577 = vpow.pop %v576
      %v578 = vadd.f32 %v563, 1.0
      %v579 = vadd.f32 %v565, 1.0
      %v580 = vadd.f32 %v567, 1.0
      %v581 = vadd.f32 %v569, 1.0
      %v582 = vadd.f32 %v571, 1.0
      %v583 = vadd.f32 %v573, 1.0
      %v584 = vadd.f32 %v575, 1.0
      %v585 = vadd.f32 %v577, 1.0
      %v586 = vrcp.pop %v578
      %v587 = vmul.f32 1.0, %v586
      %v588 = vrcp.pop %v579
      %v589 = vmul.f32 1.0, %v588
      %v590 = vrcp.pop %v580
      %v591 = vmul.f32 1.0, %v590
      %v592 = vrcp.pop %v581
      %v593 = vmul.f32 1.0, %v592
      %v594 = vrcp.pop %v582
      %v595 = vmul.f32 1.0, %v594
      %v596 = vrcp.pop %v583
      %v597 = vmul.f32 1.0, %v596
      %v598 = vrcp.pop %v584
      %v599 = vmul.f32 1.0, %v598
      %v600 = vrcp.pop %v585
      %v601 = vmul.f32 1.0, %v600
      %v602 = vmul.f32 %v524, %v587
      %v603 = vmul.f32 %v527, %v589
      %v604 = vmul.f32 %v532, %v591
      %v605 = vmul.f32 %v535, %v593
      %v606 = vmul.f32 %v540, %v595
      %v607 = vmul.f32 %v543, %v597
      %v608 = vmul.f32 %v548, %v599
      %v609 = vmul.f32 %v551, %v601
      %v610 = vpack.c.bf16 %v603, %v602
      %v611 = vpack.c.bf16 %v605, %v604
      %v612 = vpack.c.bf16 %v607, %v606
      %v613 = vpack.c.bf16 %v609, %v608
      %v614 = vld [vmem:[%s3] sm:$0xff]
      %v615 = vld [vmem:[%s3 + $0x8] sm:$0xff]
      %v616 = vld [vmem:[%s3 + $0x10] sm:$0xff]
      %v617 = vld [vmem:[%s3 + $0x18] sm:$0xff]
      %v618 = vld [vmem:[%s3 + $0x20] sm:$0xff]
      %v619 = vld [vmem:[%s3 + $0x28] sm:$0xff]
      %v620 = vld [vmem:[%s3 + $0x30] sm:$0xff]
      %v621 = vld [vmem:[%s3 + $0x38] sm:$0xff]
      %v622 = vld [vmem:[%s3 + $0x40] sm:$0xff]
      %v623 = vld [vmem:[%s3 + $0x48] sm:$0xff]
      %v624 = vld [vmem:[%s3 + $0x50] sm:$0xff]
      %v625 = vld [vmem:[%s3 + $0x58] sm:$0xff]
      %v626 = vld [vmem:[%s3 + $0x60] sm:$0xff]
      %v627 = vld [vmem:[%s3 + $0x68] sm:$0xff]
      %v628 = vld [vmem:[%s3 + $0x70] sm:$0xff]
      %v629 = vld [vmem:[%s3 + $0x78] sm:$0xff]
      %v630 = vld [vmem:[%s3 + $0x80] sm:$0xff]
      %v631 = vld [vmem:[%s3 + $0x88] sm:$0xff]
      %v632 = vld [vmem:[%s3 + $0x90] sm:$0xff]
      %v633 = vld [vmem:[%s3 + $0x98] sm:$0xff]
      %v634 = vld [vmem:[%s3 + $0xa0] sm:$0xff]
      %v635 = vld [vmem:[%s3 + $0xa8] sm:$0xff]
      %v636 = vld [vmem:[%s3 + $0xb0] sm:$0xff]
      %v637 = vld [vmem:[%s3 + $0xb8] sm:$0xff]
      %v638 = vld [vmem:[%s3 + $0xc0] sm:$0xff]
      %v639 = vld [vmem:[%s3 + $0xc8] sm:$0xff]
      %v640 = vld [vmem:[%s3 + $0xd0] sm:$0xff]
      %v641 = vld [vmem:[%s3 + $0xd8] sm:$0xff]
      %v642 = vld [vmem:[%s3 + $0xe0] sm:$0xff]
      %v643 = vld [vmem:[%s3 + $0xe8] sm:$0xff]
      %v644 = vld [vmem:[%s3 + $0xf0] sm:$0xff]
      %v645 = vld [vmem:[%s3 + $0xf8] sm:$0xff]
      %v646 = vld [vmem:[%s3 + $0x100] sm:$0xff]
      %v647 = vld [vmem:[%s3 + $0x108] sm:$0xff]
      %v648 = vld [vmem:[%s3 + $0x110] sm:$0xff]
      %v649 = vld [vmem:[%s3 + $0x118] sm:$0xff]
      %v650 = vld [vmem:[%s3 + $0x120] sm:$0xff]
      %v651 = vld [vmem:[%s3 + $0x128] sm:$0xff]
      %v652 = vld [vmem:[%s3 + $0x130] sm:$0xff]
      %v653 = vld [vmem:[%s3 + $0x138] sm:$0xff]
      %v654 = vld [vmem:[%s3 + $0x140] sm:$0xff]
      %v655 = vld [vmem:[%s3 + $0x148] sm:$0xff]
      %v656 = vld [vmem:[%s3 + $0x150] sm:$0xff]
      %v657 = vld [vmem:[%s3 + $0x158] sm:$0xff]
      %v658 = vld [vmem:[%s3 + $0x160] sm:$0xff]
      %v659 = vld [vmem:[%s3 + $0x168] sm:$0xff]
      %v660 = vld [vmem:[%s3 + $0x170] sm:$0xff]
      %v661 = vld [vmem:[%s3 + $0x178] sm:$0xff]
      %v662 = vld [vmem:[%s3 + $0x180] sm:$0xff]
      %v663 = vld [vmem:[%s3 + $0x188] sm:$0xff]
      %v664 = vld [vmem:[%s3 + $0x190] sm:$0xff]
      %v665 = vld [vmem:[%s3 + $0x198] sm:$0xff]
      %v666 = vld [vmem:[%s3 + $0x1a0] sm:$0xff]
      %v667 = vld [vmem:[%s3 + $0x1a8] sm:$0xff]
      %v668 = vld [vmem:[%s3 + $0x1b0] sm:$0xff]
      %v669 = vld [vmem:[%s3 + $0x1b8] sm:$0xff]
      %v670 = vld [vmem:[%s3 + $0x1c0] sm:$0xff]
      %v671 = vld [vmem:[%s3 + $0x1c8] sm:$0xff]
      %v672 = vld [vmem:[%s3 + $0x1d0] sm:$0xff]
      %v673 = vld [vmem:[%s3 + $0x1d8] sm:$0xff]
      %v674 = vld [vmem:[%s3 + $0x1e0] sm:$0xff]
      %v675 = vld [vmem:[%s3 + $0x1e8] sm:$0xff]
      %v676 = vld [vmem:[%s3 + $0x1f0] sm:$0xff]
      %v677 = vld [vmem:[%s3 + $0x1f8] sm:$0xff]
      %v678 = vld [vmem:[%s3 + $0x200] sm:$0xff]
      %v679 = vld [vmem:[%s3 + $0x208] sm:$0xff]
      %v680 = vld [vmem:[%s3 + $0x210] sm:$0xff]
      %v681 = vld [vmem:[%s3 + $0x218] sm:$0xff]
      %v682 = vld [vmem:[%s3 + $0x220] sm:$0xff]
      %v683 = vld [vmem:[%s3 + $0x228] sm:$0xff]
      %v684 = vld [vmem:[%s3 + $0x230] sm:$0xff]
      %v685 = vld [vmem:[%s3 + $0x238] sm:$0xff]
      %v686 = vld [vmem:[%s3 + $0x240] sm:$0xff]
      %v687 = vld [vmem:[%s3 + $0x248] sm:$0xff]
      %v688 = vld [vmem:[%s3 + $0x250] sm:$0xff]
      %v689 = vld [vmem:[%s3 + $0x258] sm:$0xff]
      %v690 = vld [vmem:[%s3 + $0x260] sm:$0xff]
      %v691 = vld [vmem:[%s3 + $0x268] sm:$0xff]
      %v692 = vld [vmem:[%s3 + $0x270] sm:$0xff]
      %v693 = vld [vmem:[%s3 + $0x278] sm:$0xff]
      %v694 = vld [vmem:[%s4] sm:$0xff]
      %v695 = vld [vmem:[%s4 + $0x8] sm:$0x3]
      %v698 = vlaneseq
      %v699 = vshrl.u32 %v698, 7
      %v700 = vsub.s32 0, %v699
      %v701 = vrot.slane %v694, %v700
      %v702 = vlaneseq
      %v703 = vshrl.u32 %v702, 7
      %v704 = vsub.s32 1, %v703
      %v705 = vrot.slane %v694, %v704
      %v706 = vlaneseq
      %v707 = vshrl.u32 %v706, 7
      %v708 = vsub.s32 2, %v707
      %v709 = vrot.slane %v694, %v708
      %v710 = vlaneseq
      %v711 = vshrl.u32 %v710, 7
      %v712 = vsub.s32 3, %v711
      %v713 = vrot.slane %v694, %v712
      %v714 = vlaneseq
      %v715 = vshrl.u32 %v714, 7
      %v716 = vsub.s32 4, %v715
      %v717 = vrot.slane %v694, %v716
      %v718 = vlaneseq
      %v719 = vshrl.u32 %v718, 7
      %v720 = vsub.s32 5, %v719
      %v721 = vrot.slane %v694, %v720
      %v722 = vlaneseq
      %v723 = vshrl.u32 %v722, 7
      %v724 = vsub.s32 6, %v723
      %v725 = vrot.slane %v694, %v724
      %v726 = vlaneseq
      %v727 = vshrl.u32 %v726, 7
      %v728 = vsub.s32 7, %v727
      %v729 = vrot.slane %v694, %v728
      %v730 = vlaneseq
      %v731 = vshrl.u32 %v730, 7
      %v732 = vsub.s32 0, %v731
      %v733 = vrot.slane %v695, %v732
      %v734 = vlaneseq
      %v735 = vshrl.u32 %v734, 7
      %v736 = vsub.s32 1, %v735
      %v737 = vrot.slane %v695, %v736
      %v828 = vunpack.c.l.b16 %v614
      %v829 = vunpack.c.h.b16 %v614
      %v830 = vunpack.c.l.b16 %v615
      %v831 = vunpack.c.h.b16 %v615
      %v832 = vunpack.c.l.b16 %v616
      %v833 = vunpack.c.h.b16 %v616
      %v834 = vunpack.c.l.b16 %v617
      %v835 = vunpack.c.h.b16 %v617
      %v836 = vunpack.c.l.b16 %v618
      %v837 = vunpack.c.h.b16 %v618
      %v838 = vunpack.c.l.b16 %v619
      %v839 = vunpack.c.h.b16 %v619
      %v840 = vunpack.c.l.b16 %v620
      %v841 = vunpack.c.h.b16 %v620
      %v842 = vunpack.c.l.b16 %v621
      %v843 = vunpack.c.h.b16 %v621
      %v844 = vunpack.c.l.b16 %v622
      %v845 = vunpack.c.h.b16 %v622
      %v846 = vunpack.c.l.b16 %v623
      %v847 = vunpack.c.h.b16 %v623
      %v848 = vunpack.c.l.b16 %v624
      %v849 = vunpack.c.h.b16 %v624
      %v850 = vunpack.c.l.b16 %v625
      %v851 = vunpack.c.h.b16 %v625
      %v852 = vunpack.c.l.b16 %v626
      %v853 = vunpack.c.h.b16 %v626
      %v854 = vunpack.c.l.b16 %v627
      %v855 = vunpack.c.h.b16 %v627
      %v856 = vunpack.c.l.b16 %v628
      %v857 = vunpack.c.h.b16 %v628
      %v858 = vunpack.c.l.b16 %v629
      %v859 = vunpack.c.h.b16 %v629
      %v860 = vunpack.c.l.b16 %v630
      %v861 = vunpack.c.h.b16 %v630
      %v862 = vunpack.c.l.b16 %v631
      %v863 = vunpack.c.h.b16 %v631
      %v864 = vunpack.c.l.b16 %v632
      %v865 = vunpack.c.h.b16 %v632
      %v866 = vunpack.c.l.b16 %v633
      %v867 = vunpack.c.h.b16 %v633
      %v868 = vunpack.c.l.b16 %v634
      %v869 = vunpack.c.h.b16 %v634
      %v870 = vunpack.c.l.b16 %v635
      %v871 = vunpack.c.h.b16 %v635
      %v872 = vunpack.c.l.b16 %v636
      %v873 = vunpack.c.h.b16 %v636
      %v874 = vunpack.c.l.b16 %v637
      %v875 = vunpack.c.h.b16 %v637
      %v876 = vunpack.c.l.b16 %v638
      %v877 = vunpack.c.h.b16 %v638
      %v878 = vunpack.c.l.b16 %v639
      %v879 = vunpack.c.h.b16 %v639
      %v880 = vunpack.c.l.b16 %v640
      %v881 = vunpack.c.h.b16 %v640
      %v882 = vunpack.c.l.b16 %v641
      %v883 = vunpack.c.h.b16 %v641
      %v884 = vunpack.c.l.b16 %v642
      %v885 = vunpack.c.h.b16 %v642
      %v886 = vunpack.c.l.b16 %v643
      %v887 = vunpack.c.h.b16 %v643
      %v888 = vunpack.c.l.b16 %v644
      %v889 = vunpack.c.h.b16 %v644
      %v890 = vunpack.c.l.b16 %v645
      %v891 = vunpack.c.h.b16 %v645
      %v892 = vunpack.c.l.b16 %v646
      %v893 = vunpack.c.h.b16 %v646
      %v894 = vunpack.c.l.b16 %v647
      %v895 = vunpack.c.h.b16 %v647
      %v896 = vunpack.c.l.b16 %v648
      %v897 = vunpack.c.h.b16 %v648
      %v898 = vunpack.c.l.b16 %v649
      %v899 = vunpack.c.h.b16 %v649
      %v900 = vunpack.c.l.b16 %v650
      %v901 = vunpack.c.h.b16 %v650
      %v902 = vunpack.c.l.b16 %v651
      %v903 = vunpack.c.h.b16 %v651
      %v904 = vunpack.c.l.b16 %v652
      %v905 = vunpack.c.h.b16 %v652
      %v906 = vunpack.c.l.b16 %v653
      %v907 = vunpack.c.h.b16 %v653
      %v908 = vunpack.c.l.b16 %v654
      %v909 = vunpack.c.h.b16 %v654
      %v910 = vunpack.c.l.b16 %v655
      %v911 = vunpack.c.h.b16 %v655
      %v912 = vunpack.c.l.b16 %v656
      %v913 = vunpack.c.h.b16 %v656
      %v914 = vunpack.c.l.b16 %v657
      %v915 = vunpack.c.h.b16 %v657
      %v916 = vunpack.c.l.b16 %v658
      %v917 = vunpack.c.h.b16 %v658
      %v918 = vunpack.c.l.b16 %v659
      %v919 = vunpack.c.h.b16 %v659
      %v920 = vunpack.c.l.b16 %v660
      %v921 = vunpack.c.h.b16 %v660
      %v922 = vunpack.c.l.b16 %v661
      %v923 = vunpack.c.h.b16 %v661
      %v924 = vunpack.c.l.b16 %v662
      %v925 = vunpack.c.h.b16 %v662
      %v926 = vunpack.c.l.b16 %v663
      %v927 = vunpack.c.h.b16 %v663
      %v928 = vunpack.c.l.b16 %v664
      %v929 = vunpack.c.h.b16 %v664
      %v930 = vunpack.c.l.b16 %v665
      %v931 = vunpack.c.h.b16 %v665
      %v932 = vunpack.c.l.b16 %v666
      %v933 = vunpack.c.h.b16 %v666
      %v934 = vunpack.c.l.b16 %v667
      %v935 = vunpack.c.h.b16 %v667
      %v936 = vunpack.c.l.b16 %v668
      %v937 = vunpack.c.h.b16 %v668
      %v938 = vunpack.c.l.b16 %v669
      %v939 = vunpack.c.h.b16 %v669
      %v940 = vunpack.c.l.b16 %v670
      %v941 = vunpack.c.h.b16 %v670
      %v942 = vunpack.c.l.b16 %v671
      %v943 = vunpack.c.h.b16 %v671
      %v944 = vunpack.c.l.b16 %v672
      %v945 = vunpack.c.h.b16 %v672
      %v946 = vunpack.c.l.b16 %v673
      %v947 = vunpack.c.h.b16 %v673
      %v948 = vunpack.c.l.b16 %v674
      %v949 = vunpack.c.h.b16 %v674
      %v950 = vunpack.c.l.b16 %v675
      %v951 = vunpack.c.h.b16 %v675
      %v952 = vunpack.c.l.b16 %v676
      %v953 = vunpack.c.h.b16 %v676
      %v954 = vunpack.c.l.b16 %v677
      %v955 = vunpack.c.h.b16 %v677
      %v956 = vunpack.c.l.b16 %v678
      %v957 = vunpack.c.h.b16 %v678
      %v958 = vunpack.c.l.b16 %v679
      %v959 = vunpack.c.h.b16 %v679
      %v960 = vunpack.c.l.b16 %v680
      %v961 = vunpack.c.h.b16 %v680
      %v962 = vunpack.c.l.b16 %v681
      %v963 = vunpack.c.h.b16 %v681
      %v964 = vunpack.c.l.b16 %v682
      %v965 = vunpack.c.h.b16 %v682
      %v966 = vunpack.c.l.b16 %v683
      %v967 = vunpack.c.h.b16 %v683
      %v968 = vunpack.c.l.b16 %v684
      %v969 = vunpack.c.h.b16 %v684
      %v970 = vunpack.c.l.b16 %v685
      %v971 = vunpack.c.h.b16 %v685
      %v972 = vunpack.c.l.b16 %v686
      %v973 = vunpack.c.h.b16 %v686
      %v974 = vunpack.c.l.b16 %v687
      %v975 = vunpack.c.h.b16 %v687
      %v976 = vunpack.c.l.b16 %v688
      %v977 = vunpack.c.h.b16 %v688
      %v978 = vunpack.c.l.b16 %v689
      %v979 = vunpack.c.h.b16 %v689
      %v980 = vunpack.c.l.b16 %v690
      %v981 = vunpack.c.h.b16 %v690
      %v982 = vunpack.c.l.b16 %v691
      %v983 = vunpack.c.h.b16 %v691
      %v984 = vunpack.c.l.b16 %v692
      %v985 = vunpack.c.h.b16 %v692
      %v986 = vunpack.c.l.b16 %v693
      %v987 = vunpack.c.h.b16 %v693
      %v988 = vpack.c.b16 %v838, %v828
      %v989 = vpack.c.b16 %v839, %v829
      %v990 = vpack.c.b16 %v840, %v830
      %v991 = vpack.c.b16 %v841, %v831
      %v992 = vpack.c.b16 %v842, %v832
      %v993 = vpack.c.b16 %v843, %v833
      %v994 = vpack.c.b16 %v844, %v834
      %v995 = vpack.c.b16 %v845, %v835
      %v996 = vpack.c.b16 %v846, %v836
      %v997 = vpack.c.b16 %v847, %v837
      %v998 = vpack.c.b16 %v858, %v848
      %v999 = vpack.c.b16 %v859, %v849
      %v1000 = vpack.c.b16 %v860, %v850
      %v1001 = vpack.c.b16 %v861, %v851
      %v1002 = vpack.c.b16 %v862, %v852
      %v1003 = vpack.c.b16 %v863, %v853
      %v1004 = vpack.c.b16 %v864, %v854
      %v1005 = vpack.c.b16 %v865, %v855
      %v1006 = vpack.c.b16 %v866, %v856
      %v1007 = vpack.c.b16 %v867, %v857
      %v1008 = vpack.c.b16 %v878, %v868
      %v1009 = vpack.c.b16 %v879, %v869
      %v1010 = vpack.c.b16 %v880, %v870
      %v1011 = vpack.c.b16 %v881, %v871
      %v1012 = vpack.c.b16 %v882, %v872
      %v1013 = vpack.c.b16 %v883, %v873
      %v1014 = vpack.c.b16 %v884, %v874
      %v1015 = vpack.c.b16 %v885, %v875
      %v1016 = vpack.c.b16 %v886, %v876
      %v1017 = vpack.c.b16 %v887, %v877
      %v1018 = vpack.c.b16 %v898, %v888
      %v1019 = vpack.c.b16 %v899, %v889
      %v1020 = vpack.c.b16 %v900, %v890
      %v1021 = vpack.c.b16 %v901, %v891
      %v1022 = vpack.c.b16 %v902, %v892
      %v1023 = vpack.c.b16 %v903, %v893
      %v1024 = vpack.c.b16 %v904, %v894
      %v1025 = vpack.c.b16 %v905, %v895
      %v1026 = vpack.c.b16 %v906, %v896
      %v1027 = vpack.c.b16 %v907, %v897
      %v1028 = vpack.c.b16 %v918, %v908
      %v1029 = vpack.c.b16 %v919, %v909
      %v1030 = vpack.c.b16 %v920, %v910
      %v1031 = vpack.c.b16 %v921, %v911
      %v1032 = vpack.c.b16 %v922, %v912
      %v1033 = vpack.c.b16 %v923, %v913
      %v1034 = vpack.c.b16 %v924, %v914
      %v1035 = vpack.c.b16 %v925, %v915
      %v1036 = vpack.c.b16 %v926, %v916
      %v1037 = vpack.c.b16 %v927, %v917
      %v1038 = vpack.c.b16 %v938, %v928
      %v1039 = vpack.c.b16 %v939, %v929
      %v1040 = vpack.c.b16 %v940, %v930
      %v1041 = vpack.c.b16 %v941, %v931
      %v1042 = vpack.c.b16 %v942, %v932
      %v1043 = vpack.c.b16 %v943, %v933
      %v1044 = vpack.c.b16 %v944, %v934
      %v1045 = vpack.c.b16 %v945, %v935
      %v1046 = vpack.c.b16 %v946, %v936
      %v1047 = vpack.c.b16 %v947, %v937
      %v1048 = vpack.c.b16 %v958, %v948
      %v1049 = vpack.c.b16 %v959, %v949
      %v1050 = vpack.c.b16 %v960, %v950
      %v1051 = vpack.c.b16 %v961, %v951
      %v1052 = vpack.c.b16 %v962, %v952
      %v1053 = vpack.c.b16 %v963, %v953
      %v1054 = vpack.c.b16 %v964, %v954
      %v1055 = vpack.c.b16 %v965, %v955
      %v1056 = vpack.c.b16 %v966, %v956
      %v1057 = vpack.c.b16 %v967, %v957
      %v1058 = vpack.c.b16 %v978, %v968
      %v1059 = vpack.c.b16 %v979, %v969
      %v1060 = vpack.c.b16 %v980, %v970
      %v1061 = vpack.c.b16 %v981, %v971
      %v1062 = vpack.c.b16 %v982, %v972
      %v1063 = vpack.c.b16 %v983, %v973
      %v1064 = vpack.c.b16 %v984, %v974
      %v1065 = vpack.c.b16 %v985, %v975
      %v1066 = vpack.c.b16 %v986, %v976
      %v1067 = vpack.c.b16 %v987, %v977
      %1148 = vmatprep.subr.bf16.mxu0 %v989
      %1149 = vmatpush1.bf16.msra.mxu0 %v988
      %1150 = vmatprep.subr.bf16.mxu0 %v999
      %1151 = vmatpush1.bf16.msra.mxu0 %v998
      %1152 = vmatprep.subr.bf16.mxu0 %v1009
      %1153 = vmatpush1.bf16.msra.mxu0 %v1008
      %1154 = vmatprep.subr.bf16.mxu0 %v1019
      %1155 = vmatpush1.bf16.msra.mxu0 %v1018
      %1156 = vmatprep.subr.bf16.mxu0 %v1029
      %1157 = vmatpush1.bf16.msra.mxu0 %v1028
      %1158 = vmatprep.subr.bf16.mxu0 %v1039
      %1159 = vmatpush1.bf16.msra.mxu0 %v1038
      %1160 = vmatprep.subr.bf16.mxu0 %v1049
      %1161 = vmatpush1.bf16.msra.mxu0 %v1048
      %1162 = vmatprep.subr.bf16.mxu0 %v1059
      %1163 = vmatpush1.bf16.msra.mxu0 %v1058
      %1164 = vmatprep.subr.bf16.mxu0 0
      %1165 = vmatpush1.bf16.msra.mxu0 0
      %1166 = vmatprep.subr.bf16.mxu0 0
      %1167 = vmatpush1.bf16.msra.mxu0 0
      %1168 = vmatprep.subr.bf16.mxu0 0
      %1169 = vmatpush1.bf16.msra.mxu0 0
      %1170 = vmatprep.subr.bf16.mxu0 0
      %1171 = vmatpush1.bf16.msra.mxu0 0
      %1172 = vmatprep.subr.bf16.mxu0 0
      %1173 = vmatpush1.bf16.msra.mxu0 0
      %1174 = vmatprep.subr.bf16.mxu0 0
      %1175 = vmatpush1.bf16.msra.mxu0 0
      %1176 = vmatprep.subr.bf16.mxu0 0
      %1177 = vmatpush1.bf16.msra.mxu0 0
      %1178 = vmatprep.subr.bf16.mxu0 0
      %1179 = vmatpush1.bf16.msra.mxu0 0
      %1180 = vmatprep.mubr.bf16.mxu0 0
      %1181 = vmatmul.mubr.bf16.gmra.mrb[0].mxu0 %v610
      %v1182 = vpop.f32.mrb[0].mxu0
      %v1183 = vadd.f32 %v701, %v1182
      %v1184 = vpop.f32.mrb[0].mxu0
      %v1185 = vadd.f32 %v705, %v1184
      %v1186 = vpop.f32.mrb[0].mxu0
      %v1187 = vadd.f32 %v701, %v1186
      %v1188 = vpop.f32.mrb[0].mxu0
      %v1189 = vadd.f32 %v705, %v1188
      %1190 = vmatprep.mubr.bf16.mxu0 0
      %1191 = vmatmul.mubr.bf16.gmra.mrb[0].mxu0 %v611
      %v1192 = vpop.f32.mrb[0].mxu0
      %v1193 = vadd.f32 %v701, %v1192
      %v1194 = vpop.f32.mrb[0].mxu0
      %v1195 = vadd.f32 %v705, %v1194
      %v1196 = vpop.f32.mrb[0].mxu0
      %v1197 = vadd.f32 %v701, %v1196
      %v1198 = vpop.f32.mrb[0].mxu0
      %v1199 = vadd.f32 %v705, %v1198
      %1200 = vmatprep.mubr.bf16.mxu0 0
      %1201 = vmatmul.mubr.bf16.gmra.mrb[0].mxu0 %v612
      %v1202 = vpop.f32.mrb[0].mxu0
      %v1203 = vadd.f32 %v701, %v1202
      %v1204 = vpop.f32.mrb[0].mxu0
      %v1205 = vadd.f32 %v705, %v1204
      %v1206 = vpop.f32.mrb[0].mxu0
      %v1207 = vadd.f32 %v701, %v1206
      %v1208 = vpop.f32.mrb[0].mxu0
      %v1209 = vadd.f32 %v705, %v1208
      %1210 = vmatprep.mubr.bf16.mxu0 0
      %1211 = vmatmul.mubr.bf16.gmra.mrb[0].mxu0 %v613
      %v1212 = vpop.f32.mrb[0].mxu0
      %v1213 = vadd.f32 %v701, %v1212
      %v1214 = vpop.f32.mrb[0].mxu0
      %v1215 = vadd.f32 %v705, %v1214
      %v1216 = vpop.f32.mrb[0].mxu0
      %v1217 = vadd.f32 %v701, %v1216
      %v1218 = vpop.f32.mrb[0].mxu0
      %v1219 = vadd.f32 %v705, %v1218
      %1220 = vdwg.mxu0
      %1221 = vmatprep.subr.bf16.mxu0 %v991
      %1222 = vmatpush1.bf16.msra.mxu0 %v990
      %1223 = vmatprep.subr.bf16.mxu0 %v1001
      %1224 = vmatpush1.bf16.msra.mxu0 %v1000
      %1225 = vmatprep.subr.bf16.mxu0 %v1011
      %1226 = vmatpush1.bf16.msra.mxu0 %v1010
      %1227 = vmatprep.subr.bf16.mxu0 %v1021
      %1228 = vmatpush1.bf16.msra.mxu0 %v1020
      %1229 = vmatprep.subr.bf16.mxu0 %v1031
      %1230 = vmatpush1.bf16.msra.mxu0 %v1030
      %1231 = vmatprep.subr.bf16.mxu0 %v1041
      %1232 = vmatpush1.bf16.msra.mxu0 %v1040
      %1233 = vmatprep.subr.bf16.mxu0 %v1051
      %1234 = vmatpush1.bf16.msra.mxu0 %v1050
      %1235 = vmatprep.subr.bf16.mxu0 %v1061
      %1236 = vmatpush1.bf16.msra.mxu0 %v1060
      %1237 = vmatprep.subr.bf16.mxu0 0
      %1238 = vmatpush1.bf16.msra.mxu0 0
      %1239 = vmatprep.subr.bf16.mxu0 0
      %1240 = vmatpush1.bf16.msra.mxu0 0
      %1241 = vmatprep.subr.bf16.mxu0 0
      %1242 = vmatpush1.bf16.msra.mxu0 0
      %1243 = vmatprep.subr.bf16.mxu0 0
      %1244 = vmatpush1.bf16.msra.mxu0 0
      %1245 = vmatprep.subr.bf16.mxu0 0
      %1246 = vmatpush1.bf16.msra.mxu0 0
      %1247 = vmatprep.subr.bf16.mxu0 0
      %1248 = vmatpush1.bf16.msra.mxu0 0
      %1249 = vmatprep.subr.bf16.mxu0 0
      %1250 = vmatpush1.bf16.msra.mxu0 0
      %1251 = vmatprep.subr.bf16.mxu0 0
      %1252 = vmatpush1.bf16.msra.mxu0 0
      %1253 = vmatprep.mubr.bf16.mxu0 0
      %1254 = vmatmul.mubr.bf16.gmra.mrb[0].mxu0 %v610
      %v1255 = vpop.f32.mrb[0].mxu0
      %v1256 = vadd.f32 %v709, %v1255
      %v1257 = vpop.f32.mrb[0].mxu0
      %v1258 = vadd.f32 %v713, %v1257
      %v1259 = vpop.f32.mrb[0].mxu0
      %v1260 = vadd.f32 %v709, %v1259
      %v1261 = vpop.f32.mrb[0].mxu0
      %v1262 = vadd.f32 %v713, %v1261
      %1263 = vmatprep.mubr.bf16.mxu0 0
      %1264 = vmatmul.mubr.bf16.gmra.mrb[0].mxu0 %v611
      %v1265 = vpop.f32.mrb[0].mxu0
      %v1266 = vadd.f32 %v709, %v1265
      %v1267 = vpop.f32.mrb[0].mxu0
      %v1268 = vadd.f32 %v713, %v1267
      %v1269 = vpop.f32.mrb[0].mxu0
      %v1270 = vadd.f32 %v709, %v1269
      %v1271 = vpop.f32.mrb[0].mxu0
      %v1272 = vadd.f32 %v713, %v1271
      %1273 = vmatprep.mubr.bf16.mxu0 0
      %1274 = vmatmul.mubr.bf16.gmra.mrb[0].mxu0 %v612
      %v1275 = vpop.f32.mrb[0].mxu0
      %v1276 = vadd.f32 %v709, %v1275
      %v1277 = vpop.f32.mrb[0].mxu0
      %v1278 = vadd.f32 %v713, %v1277
      %v1279 = vpop.f32.mrb[0].mxu0
      %v1280 = vadd.f32 %v709, %v1279
      %v1281 = vpop.f32.mrb[0].mxu0
      %v1282 = vadd.f32 %v713, %v1281
      %1283 = vmatprep.mubr.bf16.mxu0 0
      %1284 = vmatmul.mubr.bf16.gmra.mrb[0].mxu0 %v613
      %v1285 = vpop.f32.mrb[0].mxu0
      %v1286 = vadd.f32 %v709, %v1285
      %v1287 = vpop.f32.mrb[0].mxu0
      %v1288 = vadd.f32 %v713, %v1287
      %v1289 = vpop.f32.mrb[0].mxu0
      %v1290 = vadd.f32 %v709, %v1289
      %v1291 = vpop.f32.mrb[0].mxu0
      %v1292 = vadd.f32 %v713, %v1291
      %1293 = vdwg.mxu0
      %1294 = vmatprep.subr.bf16.mxu0 %v993
      %1295 = vmatpush1.bf16.msra.mxu0 %v992
      %1296 = vmatprep.subr.bf16.mxu0 %v1003
      %1297 = vmatpush1.bf16.msra.mxu0 %v1002
      %1298 = vmatprep.subr.bf16.mxu0 %v1013
      %1299 = vmatpush1.bf16.msra.mxu0 %v1012
      %1300 = vmatprep.subr.bf16.mxu0 %v1023
      %1301 = vmatpush1.bf16.msra.mxu0 %v1022
      %1302 = vmatprep.subr.bf16.mxu0 %v1033
      %1303 = vmatpush1.bf16.msra.mxu0 %v1032
      %1304 = vmatprep.subr.bf16.mxu0 %v1043
      %1305 = vmatpush1.bf16.msra.mxu0 %v1042
      %1306 = vmatprep.subr.bf16.mxu0 %v1053
      %1307 = vmatpush1.bf16.msra.mxu0 %v1052
      %1308 = vmatprep.subr.bf16.mxu0 %v1063
      %1309 = vmatpush1.bf16.msra.mxu0 %v1062
      %1310 = vmatprep.subr.bf16.mxu0 0
      %1311 = vmatpush1.bf16.msra.mxu0 0
      %1312 = vmatprep.subr.bf16.mxu0 0
      %1313 = vmatpush1.bf16.msra.mxu0 0
      %1314 = vmatprep.subr.bf16.mxu0 0
      %1315 = vmatpush1.bf16.msra.mxu0 0
      %1316 = vmatprep.subr.bf16.mxu0 0
      %1317 = vmatpush1.bf16.msra.mxu0 0
      %1318 = vmatprep.subr.bf16.mxu0 0
      %1319 = vmatpush1.bf16.msra.mxu0 0
      %1320 = vmatprep.subr.bf16.mxu0 0
      %1321 = vmatpush1.bf16.msra.mxu0 0
      %1322 = vmatprep.subr.bf16.mxu0 0
      %1323 = vmatpush1.bf16.msra.mxu0 0
      %1324 = vmatprep.subr.bf16.mxu0 0
      %1325 = vmatpush1.bf16.msra.mxu0 0
      %1326 = vmatprep.mubr.bf16.mxu0 0
      %1327 = vmatmul.mubr.bf16.gmra.mrb[0].mxu0 %v610
      %v1328 = vpop.f32.mrb[0].mxu0
      %v1329 = vadd.f32 %v717, %v1328
      %v1330 = vpop.f32.mrb[0].mxu0
      %v1331 = vadd.f32 %v721, %v1330
      %v1332 = vpop.f32.mrb[0].mxu0
      %v1333 = vadd.f32 %v717, %v1332
      %v1334 = vpop.f32.mrb[0].mxu0
      %v1335 = vadd.f32 %v721, %v1334
      %1336 = vmatprep.mubr.bf16.mxu0 0
      %1337 = vmatmul.mubr.bf16.gmra.mrb[0].mxu0 %v611
      %v1338 = vpop.f32.mrb[0].mxu0
      %v1339 = vadd.f32 %v717, %v1338
      %v1340 = vpop.f32.mrb[0].mxu0
      %v1341 = vadd.f32 %v721, %v1340
      %v1342 = vpop.f32.mrb[0].mxu0
      %v1343 = vadd.f32 %v717, %v1342
      %v1344 = vpop.f32.mrb[0].mxu0
      %v1345 = vadd.f32 %v721, %v1344
      %1346 = vmatprep.mubr.bf16.mxu0 0
      %1347 = vmatmul.mubr.bf16.gmra.mrb[0].mxu0 %v612
      %v1348 = vpop.f32.mrb[0].mxu0
      %v1349 = vadd.f32 %v717, %v1348
      %v1350 = vpop.f32.mrb[0].mxu0
      %v1351 = vadd.f32 %v721, %v1350
      %v1352 = vpop.f32.mrb[0].mxu0
      %v1353 = vadd.f32 %v717, %v1352
      %v1354 = vpop.f32.mrb[0].mxu0
      %v1355 = vadd.f32 %v721, %v1354
      %1356 = vmatprep.mubr.bf16.mxu0 0
      %1357 = vmatmul.mubr.bf16.gmra.mrb[0].mxu0 %v613
      %v1358 = vpop.f32.mrb[0].mxu0
      %v1359 = vadd.f32 %v717, %v1358
      %v1360 = vpop.f32.mrb[0].mxu0
      %v1361 = vadd.f32 %v721, %v1360
      %v1362 = vpop.f32.mrb[0].mxu0
      %v1363 = vadd.f32 %v717, %v1362
      %v1364 = vpop.f32.mrb[0].mxu0
      %v1365 = vadd.f32 %v721, %v1364
      %1366 = vdwg.mxu0
      %1367 = vmatprep.subr.bf16.mxu0 %v995
      %1368 = vmatpush1.bf16.msra.mxu0 %v994
      %1369 = vmatprep.subr.bf16.mxu0 %v1005
      %1370 = vmatpush1.bf16.msra.mxu0 %v1004
      %1371 = vmatprep.subr.bf16.mxu0 %v1015
      %1372 = vmatpush1.bf16.msra.mxu0 %v1014
      %1373 = vmatprep.subr.bf16.mxu0 %v1025
      %1374 = vmatpush1.bf16.msra.mxu0 %v1024
      %1375 = vmatprep.subr.bf16.mxu0 %v1035
      %1376 = vmatpush1.bf16.msra.mxu0 %v1034
      %1377 = vmatprep.subr.bf16.mxu0 %v1045
      %1378 = vmatpush1.bf16.msra.mxu0 %v1044
      %1379 = vmatprep.subr.bf16.mxu0 %v1055
      %1380 = vmatpush1.bf16.msra.mxu0 %v1054
      %1381 = vmatprep.subr.bf16.mxu0 %v1065
      %1382 = vmatpush1.bf16.msra.mxu0 %v1064
      %1383 = vmatprep.subr.bf16.mxu0 0
      %1384 = vmatpush1.bf16.msra.mxu0 0
      %1385 = vmatprep.subr.bf16.mxu0 0
      %1386 = vmatpush1.bf16.msra.mxu0 0
      %1387 = vmatprep.subr.bf16.mxu0 0
      %1388 = vmatpush1.bf16.msra.mxu0 0
      %1389 = vmatprep.subr.bf16.mxu0 0
      %1390 = vmatpush1.bf16.msra.mxu0 0
      %1391 = vmatprep.subr.bf16.mxu0 0
      %1392 = vmatpush1.bf16.msra.mxu0 0
      %1393 = vmatprep.subr.bf16.mxu0 0
      %1394 = vmatpush1.bf16.msra.mxu0 0
      %1395 = vmatprep.subr.bf16.mxu0 0
      %1396 = vmatpush1.bf16.msra.mxu0 0
      %1397 = vmatprep.subr.bf16.mxu0 0
      %1398 = vmatpush1.bf16.msra.mxu0 0
      %1399 = vmatprep.mubr.bf16.mxu0 0
      %1400 = vmatmul.mubr.bf16.gmra.mrb[0].mxu0 %v610
      %v1401 = vpop.f32.mrb[0].mxu0
      %v1402 = vadd.f32 %v725, %v1401
      %v1403 = vpop.f32.mrb[0].mxu0
      %v1404 = vadd.f32 %v729, %v1403
      %v1405 = vpop.f32.mrb[0].mxu0
      %v1406 = vadd.f32 %v725, %v1405
      %v1407 = vpop.f32.mrb[0].mxu0
      %v1408 = vadd.f32 %v729, %v1407
      %1409 = vmatprep.mubr.bf16.mxu0 0
      %1410 = vmatmul.mubr.bf16.gmra.mrb[0].mxu0 %v611
      %v1411 = vpop.f32.mrb[0].mxu0
      %v1412 = vadd.f32 %v725, %v1411
      %v1413 = vpop.f32.mrb[0].mxu0
      %v1414 = vadd.f32 %v729, %v1413
      %v1415 = vpop.f32.mrb[0].mxu0
      %v1416 = vadd.f32 %v725, %v1415
      %v1417 = vpop.f32.mrb[0].mxu0
      %v1418 = vadd.f32 %v729, %v1417
      %1419 = vmatprep.mubr.bf16.mxu0 0
      %1420 = vmatmul.mubr.bf16.gmra.mrb[0].mxu0 %v612
      %v1421 = vpop.f32.mrb[0].mxu0
      %v1422 = vadd.f32 %v725, %v1421
      %v1423 = vpop.f32.mrb[0].mxu0
      %v1424 = vadd.f32 %v729, %v1423
      %v1425 = vpop.f32.mrb[0].mxu0
      %v1426 = vadd.f32 %v725, %v1425
      %v1427 = vpop.f32.mrb[0].mxu0
      %v1428 = vadd.f32 %v729, %v1427
      %1429 = vmatprep.mubr.bf16.mxu0 0
      %1430 = vmatmul.mubr.bf16.gmra.mrb[0].mxu0 %v613
      %v1431 = vpop.f32.mrb[0].mxu0
      %v1432 = vadd.f32 %v725, %v1431
      %v1433 = vpop.f32.mrb[0].mxu0
      %v1434 = vadd.f32 %v729, %v1433
      %v1435 = vpop.f32.mrb[0].mxu0
      %v1436 = vadd.f32 %v725, %v1435
      %v1437 = vpop.f32.mrb[0].mxu0
      %v1438 = vadd.f32 %v729, %v1437
      %1439 = vdwg.mxu0
      %1440 = vmatprep.subr.bf16.mxu0 %v997
      %1441 = vmatpush1.bf16.msra.mxu0 %v996
      %1442 = vmatprep.subr.bf16.mxu0 %v1007
      %1443 = vmatpush1.bf16.msra.mxu0 %v1006
      %1444 = vmatprep.subr.bf16.mxu0 %v1017
      %1445 = vmatpush1.bf16.msra.mxu0 %v1016
      %1446 = vmatprep.subr.bf16.mxu0 %v1027
      %1447 = vmatpush1.bf16.msra.mxu0 %v1026
      %1448 = vmatprep.subr.bf16.mxu0 %v1037
      %1449 = vmatpush1.bf16.msra.mxu0 %v1036
      %1450 = vmatprep.subr.bf16.mxu0 %v1047
      %1451 = vmatpush1.bf16.msra.mxu0 %v1046
      %1452 = vmatprep.subr.bf16.mxu0 %v1057
      %1453 = vmatpush1.bf16.msra.mxu0 %v1056
      %1454 = vmatprep.subr.bf16.mxu0 %v1067
      %1455 = vmatpush1.bf16.msra.mxu0 %v1066
      %1456 = vmatprep.subr.bf16.mxu0 0
      %1457 = vmatpush1.bf16.msra.mxu0 0
      %1458 = vmatprep.subr.bf16.mxu0 0
      %1459 = vmatpush1.bf16.msra.mxu0 0
      %1460 = vmatprep.subr.bf16.mxu0 0
      %1461 = vmatpush1.bf16.msra.mxu0 0
      %1462 = vmatprep.subr.bf16.mxu0 0
      %1463 = vmatpush1.bf16.msra.mxu0 0
      %1464 = vmatprep.subr.bf16.mxu0 0
      %1465 = vmatpush1.bf16.msra.mxu0 0
      %1466 = vmatprep.subr.bf16.mxu0 0
      %1467 = vmatpush1.bf16.msra.mxu0 0
      %1468 = vmatprep.subr.bf16.mxu0 0
      %1469 = vmatpush1.bf16.msra.mxu0 0
      %1470 = vmatprep.subr.bf16.mxu0 0
      %1471 = vmatpush1.bf16.msra.mxu0 0
      %1472 = vmatprep.mubr.bf16.mxu0 0
      %1473 = vmatmul.mubr.bf16.gmra.mrb[0].mxu0 %v610
      %v1474 = vpop.f32.mrb[0].mxu0
      %v1475 = vadd.f32 %v733, %v1474
      %v1476 = vpop.f32.mrb[0].mxu0
      %v1477 = vadd.f32 %v737, %v1476
      %v1478 = vpop.f32.mrb[0].mxu0
      %v1479 = vadd.f32 %v733, %v1478
      %v1480 = vpop.f32.mrb[0].mxu0
      %v1481 = vadd.f32 %v737, %v1480
      %1482 = vmatprep.mubr.bf16.mxu0 0
      %1483 = vmatmul.mubr.bf16.gmra.mrb[0].mxu0 %v611
      %v1484 = vpop.f32.mrb[0].mxu0
      %v1485 = vadd.f32 %v733, %v1484
      %v1486 = vpop.f32.mrb[0].mxu0
      %v1487 = vadd.f32 %v737, %v1486
      %v1488 = vpop.f32.mrb[0].mxu0
      %v1489 = vadd.f32 %v733, %v1488
      %v1490 = vpop.f32.mrb[0].mxu0
      %v1491 = vadd.f32 %v737, %v1490
      %1492 = vmatprep.mubr.bf16.mxu0 0
      %1493 = vmatmul.mubr.bf16.gmra.mrb[0].mxu0 %v612
      %v1494 = vpop.f32.mrb[0].mxu0
      %v1495 = vadd.f32 %v733, %v1494
      %v1496 = vpop.f32.mrb[0].mxu0
      %v1497 = vadd.f32 %v737, %v1496
      %v1498 = vpop.f32.mrb[0].mxu0
      %v1499 = vadd.f32 %v733, %v1498
      %v1500 = vpop.f32.mrb[0].mxu0
      %v1501 = vadd.f32 %v737, %v1500
      %1502 = vmatprep.mubr.bf16.mxu0 0
      %1503 = vmatmul.mubr.bf16.gmra.mrb[0].mxu0 %v613
      %v1504 = vpop.f32.mrb[0].mxu0
      %v1505 = vadd.f32 %v733, %v1504
      %v1506 = vpop.f32.mrb[0].mxu0
      %v1507 = vadd.f32 %v737, %v1506
      %v1508 = vpop.f32.mrb[0].mxu0
      %v1509 = vadd.f32 %v733, %v1508
      %v1510 = vpop.f32.mrb[0].mxu0
      %v1511 = vadd.f32 %v737, %v1510
      %1512 = vdwg.mxu0
      %v1513 = vpack.c.bf16 %v1187, %v1183
      %v1514 = vpack.c.bf16 %v1189, %v1185
      %v1515 = vpack.c.bf16 %v1260, %v1256
      %v1516 = vpack.c.bf16 %v1262, %v1258
      %v1517 = vpack.c.bf16 %v1333, %v1329
      %v1518 = vpack.c.bf16 %v1335, %v1331
      %v1519 = vpack.c.bf16 %v1406, %v1402
      %v1520 = vpack.c.bf16 %v1408, %v1404
      %v1521 = vpack.c.bf16 %v1479, %v1475
      %v1522 = vpack.c.bf16 %v1481, %v1477
      %v1523 = vpack.c.bf16 %v1197, %v1193
      %v1524 = vpack.c.bf16 %v1199, %v1195
      %v1525 = vpack.c.bf16 %v1270, %v1266
      %v1526 = vpack.c.bf16 %v1272, %v1268
      %v1527 = vpack.c.bf16 %v1343, %v1339
      %v1528 = vpack.c.bf16 %v1345, %v1341
      %v1529 = vpack.c.bf16 %v1416, %v1412
      %v1530 = vpack.c.bf16 %v1418, %v1414
      %v1531 = vpack.c.bf16 %v1489, %v1485
      %v1532 = vpack.c.bf16 %v1491, %v1487
      %v1533 = vpack.c.bf16 %v1207, %v1203
      %v1534 = vpack.c.bf16 %v1209, %v1205
      %v1535 = vpack.c.bf16 %v1280, %v1276
      %v1536 = vpack.c.bf16 %v1282, %v1278
      %v1537 = vpack.c.bf16 %v1353, %v1349
      %v1538 = vpack.c.bf16 %v1355, %v1351
      %v1539 = vpack.c.bf16 %v1426, %v1422
      %v1540 = vpack.c.bf16 %v1428, %v1424
      %v1541 = vpack.c.bf16 %v1499, %v1495
      %v1542 = vpack.c.bf16 %v1501, %v1497
      %v1543 = vpack.c.bf16 %v1217, %v1213
      %v1544 = vpack.c.bf16 %v1219, %v1215
      %v1545 = vpack.c.bf16 %v1290, %v1286
      %v1546 = vpack.c.bf16 %v1292, %v1288
      %v1547 = vpack.c.bf16 %v1363, %v1359
      %v1548 = vpack.c.bf16 %v1365, %v1361
      %v1549 = vpack.c.bf16 %v1436, %v1432
      %v1550 = vpack.c.bf16 %v1438, %v1434
      %v1551 = vpack.c.bf16 %v1509, %v1505
      %v1552 = vpack.c.bf16 %v1511, %v1507
      %v1553 = vxor.u32 %v1513, 2147516416
      %v1554 = vxor.u32 %v1514, 2147516416
      %v1555 = vxor.u32 %v1515, 2147516416
      %v1556 = vxor.u32 %v1516, 2147516416
      %v1557 = vxor.u32 %v1517, 2147516416
      %v1558 = vxor.u32 %v1518, 2147516416
      %v1559 = vxor.u32 %v1519, 2147516416
      %v1560 = vxor.u32 %v1520, 2147516416
      %v1561 = vxor.u32 %v1521, 2147516416
      %v1562 = vxor.u32 %v1522, 2147516416
      %v1563 = vxor.u32 %v1523, 2147516416
      %v1564 = vxor.u32 %v1524, 2147516416
      %v1565 = vxor.u32 %v1525, 2147516416
      %v1566 = vxor.u32 %v1526, 2147516416
      %v1567 = vxor.u32 %v1527, 2147516416
      %v1568 = vxor.u32 %v1528, 2147516416
      %v1569 = vxor.u32 %v1529, 2147516416
      %v1570 = vxor.u32 %v1530, 2147516416
      %v1571 = vxor.u32 %v1531, 2147516416
      %v1572 = vxor.u32 %v1532, 2147516416
      %v1573 = vxor.u32 %v1533, 2147516416
      %v1574 = vxor.u32 %v1534, 2147516416
      %v1575 = vxor.u32 %v1535, 2147516416
      %v1576 = vxor.u32 %v1536, 2147516416
      %v1577 = vxor.u32 %v1537, 2147516416
      %v1578 = vxor.u32 %v1538, 2147516416
      %v1579 = vxor.u32 %v1539, 2147516416
      %v1580 = vxor.u32 %v1540, 2147516416
      %v1581 = vxor.u32 %v1541, 2147516416
      %v1582 = vxor.u32 %v1542, 2147516416
      %v1583 = vxor.u32 %v1543, 2147516416
      %v1584 = vxor.u32 %v1544, 2147516416
      %v1585 = vxor.u32 %v1545, 2147516416
      %v1586 = vxor.u32 %v1546, 2147516416
      %v1587 = vxor.u32 %v1547, 2147516416
      %v1588 = vxor.u32 %v1548, 2147516416
      %v1589 = vxor.u32 %v1549, 2147516416
      %v1590 = vxor.u32 %v1550, 2147516416
      %v1591 = vxor.u32 %v1551, 2147516416
      %v1592 = vxor.u32 %v1552, 2147516416
      %v1594 = vmul.bf16 %v1553, 1069105081
      %v1595 = vpow.bf16.pop %v1594
      %v1597 = vmul.bf16 %v1554, 1069105081
      %v1598 = vpow.bf16.pop %v1597
      %v1600 = vmul.bf16 %v1555, 1069105081
      %v1601 = vpow.bf16.pop %v1600
      %v1603 = vmul.bf16 %v1556, 1069105081
      %v1604 = vpow.bf16.pop %v1603
      %v1606 = vmul.bf16 %v1557, 1069105081
      %v1607 = vpow.bf16.pop %v1606
      %v1609 = vmul.bf16 %v1558, 1069105081
      %v1610 = vpow.bf16.pop %v1609
      %v1612 = vmul.bf16 %v1559, 1069105081
      %v1613 = vpow.bf16.pop %v1612
      %v1615 = vmul.bf16 %v1560, 1069105081
      %v1616 = vpow.bf16.pop %v1615
      %v1618 = vmul.bf16 %v1561, 1069105081
      %v1619 = vpow.bf16.pop %v1618
      %v1621 = vmul.bf16 %v1562, 1069105081
      %v1622 = vpow.bf16.pop %v1621
      %v1624 = vmul.bf16 %v1563, 1069105081
      %v1625 = vpow.bf16.pop %v1624
      %v1627 = vmul.bf16 %v1564, 1069105081
      %v1628 = vpow.bf16.pop %v1627
      %v1630 = vmul.bf16 %v1565, 1069105081
      %v1631 = vpow.bf16.pop %v1630
      %v1633 = vmul.bf16 %v1566, 1069105081
      %v1634 = vpow.bf16.pop %v1633
      %v1636 = vmul.bf16 %v1567, 1069105081
      %v1637 = vpow.bf16.pop %v1636
      %v1639 = vmul.bf16 %v1568, 1069105081
      %v1640 = vpow.bf16.pop %v1639
      %v1642 = vmul.bf16 %v1569, 1069105081
      %v1643 = vpow.bf16.pop %v1642
      %v1645 = vmul.bf16 %v1570, 1069105081
      %v1646 = vpow.bf16.pop %v1645
      %v1648 = vmul.bf16 %v1571, 1069105081
      %v1649 = vpow.bf16.pop %v1648
      %v1651 = vmul.bf16 %v1572, 1069105081
      %v1652 = vpow.bf16.pop %v1651
      %v1654 = vmul.bf16 %v1573, 1069105081
      %v1655 = vpow.bf16.pop %v1654
      %v1657 = vmul.bf16 %v1574, 1069105081
      %v1658 = vpow.bf16.pop %v1657
      %v1660 = vmul.bf16 %v1575, 1069105081
      %v1661 = vpow.bf16.pop %v1660
      %v1663 = vmul.bf16 %v1576, 1069105081
      %v1664 = vpow.bf16.pop %v1663
      %v1666 = vmul.bf16 %v1577, 1069105081
      %v1667 = vpow.bf16.pop %v1666
      %v1669 = vmul.bf16 %v1578, 1069105081
      %v1670 = vpow.bf16.pop %v1669
      %v1672 = vmul.bf16 %v1579, 1069105081
      %v1673 = vpow.bf16.pop %v1672
      %v1675 = vmul.bf16 %v1580, 1069105081
      %v1676 = vpow.bf16.pop %v1675
      %v1678 = vmul.bf16 %v1581, 1069105081
      %v1679 = vpow.bf16.pop %v1678
      %v1681 = vmul.bf16 %v1582, 1069105081
      %v1682 = vpow.bf16.pop %v1681
      %v1684 = vmul.bf16 %v1583, 1069105081
      %v1685 = vpow.bf16.pop %v1684
      %v1687 = vmul.bf16 %v1584, 1069105081
      %v1688 = vpow.bf16.pop %v1687
      %v1690 = vmul.bf16 %v1585, 1069105081
      %v1691 = vpow.bf16.pop %v1690
      %v1693 = vmul.bf16 %v1586, 1069105081
      %v1694 = vpow.bf16.pop %v1693
      %v1696 = vmul.bf16 %v1587, 1069105081
      %v1697 = vpow.bf16.pop %v1696
      %v1699 = vmul.bf16 %v1588, 1069105081
      %v1700 = vpow.bf16.pop %v1699
      %v1702 = vmul.bf16 %v1589, 1069105081
      %v1703 = vpow.bf16.pop %v1702
      %v1705 = vmul.bf16 %v1590, 1069105081
      %v1706 = vpow.bf16.pop %v1705
      %v1708 = vmul.bf16 %v1591, 1069105081
      %v1709 = vpow.bf16.pop %v1708
      %v1711 = vmul.bf16 %v1592, 1069105081
      %v1712 = vpow.bf16.pop %v1711
      %v1713 = vadd.bf16 %v1595, 1065369472
      %v1714 = vadd.bf16 %v1598, 1065369472
      %v1715 = vadd.bf16 %v1601, 1065369472
      %v1716 = vadd.bf16 %v1604, 1065369472
      %v1717 = vadd.bf16 %v1607, 1065369472
      %v1718 = vadd.bf16 %v1610, 1065369472
      %v1719 = vadd.bf16 %v1613, 1065369472
      %v1720 = vadd.bf16 %v1616, 1065369472
      %v1721 = vadd.bf16 %v1619, 1065369472
      %v1722 = vadd.bf16 %v1622, 1065369472
      %v1723 = vadd.bf16 %v1625, 1065369472
      %v1724 = vadd.bf16 %v1628, 1065369472
      %v1725 = vadd.bf16 %v1631, 1065369472
      %v1726 = vadd.bf16 %v1634, 1065369472
      %v1727 = vadd.bf16 %v1637, 1065369472
      %v1728 = vadd.bf16 %v1640, 1065369472
      %v1729 = vadd.bf16 %v1643, 1065369472
      %v1730 = vadd.bf16 %v1646, 1065369472
      %v1731 = vadd.bf16 %v1649, 1065369472
      %v1732 = vadd.bf16 %v1652, 1065369472
      %v1733 = vadd.bf16 %v1655, 1065369472
      %v1734 = vadd.bf16 %v1658, 1065369472
      %v1735 = vadd.bf16 %v1661, 1065369472
      %v1736 = vadd.bf16 %v1664, 1065369472
      %v1737 = vadd.bf16 %v1667, 1065369472
      %v1738 = vadd.bf16 %v1670, 1065369472
      %v1739 = vadd.bf16 %v1673, 1065369472
      %v1740 = vadd.bf16 %v1676, 1065369472
      %v1741 = vadd.bf16 %v1679, 1065369472
      %v1742 = vadd.bf16 %v1682, 1065369472
      %v1743 = vadd.bf16 %v1685, 1065369472
      %v1744 = vadd.bf16 %v1688, 1065369472
      %v1745 = vadd.bf16 %v1691, 1065369472
      %v1746 = vadd.bf16 %v1694, 1065369472
      %v1747 = vadd.bf16 %v1697, 1065369472
      %v1748 = vadd.bf16 %v1700, 1065369472
      %v1749 = vadd.bf16 %v1703, 1065369472
      %v1750 = vadd.bf16 %v1706, 1065369472
      %v1751 = vadd.bf16 %v1709, 1065369472
      %v1752 = vadd.bf16 %v1712, 1065369472
      %v1753 = vrcp.bf16.pop %v1713
      %v1754 = vmul.bf16 1065369472, %v1753
      %v1755 = vrcp.bf16.pop %v1714
      %v1756 = vmul.bf16 1065369472, %v1755
      %v1757 = vrcp.bf16.pop %v1715
      %v1758 = vmul.bf16 1065369472, %v1757
      %v1759 = vrcp.bf16.pop %v1716
      %v1760 = vmul.bf16 1065369472, %v1759
      %v1761 = vrcp.bf16.pop %v1717
      %v1762 = vmul.bf16 1065369472, %v1761
      %v1763 = vrcp.bf16.pop %v1718
      %v1764 = vmul.bf16 1065369472, %v1763
      %v1765 = vrcp.bf16.pop %v1719
      %v1766 = vmul.bf16 1065369472, %v1765
      %v1767 = vrcp.bf16.pop %v1720
      %v1768 = vmul.bf16 1065369472, %v1767
      %v1769 = vrcp.bf16.pop %v1721
      %v1770 = vmul.bf16 1065369472, %v1769
      %v1771 = vrcp.bf16.pop %v1722
      %v1772 = vmul.bf16 1065369472, %v1771
      %v1773 = vrcp.bf16.pop %v1723
      %v1774 = vmul.bf16 1065369472, %v1773
      %v1775 = vrcp.bf16.pop %v1724
      %v1776 = vmul.bf16 1065369472, %v1775
      %v1777 = vrcp.bf16.pop %v1725
      %v1778 = vmul.bf16 1065369472, %v1777
      %v1779 = vrcp.bf16.pop %v1726
      %v1780 = vmul.bf16 1065369472, %v1779
      %v1781 = vrcp.bf16.pop %v1727
      %v1782 = vmul.bf16 1065369472, %v1781
      %v1783 = vrcp.bf16.pop %v1728
      %v1784 = vmul.bf16 1065369472, %v1783
      %v1785 = vrcp.bf16.pop %v1729
      %v1786 = vmul.bf16 1065369472, %v1785
      %v1787 = vrcp.bf16.pop %v1730
      %v1788 = vmul.bf16 1065369472, %v1787
      %v1789 = vrcp.bf16.pop %v1731
      %v1790 = vmul.bf16 1065369472, %v1789
      %v1791 = vrcp.bf16.pop %v1732
      %v1792 = vmul.bf16 1065369472, %v1791
      %v1793 = vrcp.bf16.pop %v1733
      %v1794 = vmul.bf16 1065369472, %v1793
      %v1795 = vrcp.bf16.pop %v1734
      %v1796 = vmul.bf16 1065369472, %v1795
      %v1797 = vrcp.bf16.pop %v1735
      %v1798 = vmul.bf16 1065369472, %v1797
      %v1799 = vrcp.bf16.pop %v1736
      %v1800 = vmul.bf16 1065369472, %v1799
      %v1801 = vrcp.bf16.pop %v1737
      %v1802 = vmul.bf16 1065369472, %v1801
      %v1803 = vrcp.bf16.pop %v1738
      %v1804 = vmul.bf16 1065369472, %v1803
      %v1805 = vrcp.bf16.pop %v1739
      %v1806 = vmul.bf16 1065369472, %v1805
      %v1807 = vrcp.bf16.pop %v1740
      %v1808 = vmul.bf16 1065369472, %v1807
      %v1809 = vrcp.bf16.pop %v1741
      %v1810 = vmul.bf16 1065369472, %v1809
      %v1811 = vrcp.bf16.pop %v1742
      %v1812 = vmul.bf16 1065369472, %v1811
      %v1813 = vrcp.bf16.pop %v1743
      %v1814 = vmul.bf16 1065369472, %v1813
      %v1815 = vrcp.bf16.pop %v1744
      %v1816 = vmul.bf16 1065369472, %v1815
      %v1817 = vrcp.bf16.pop %v1745
      %v1818 = vmul.bf16 1065369472, %v1817
      %v1819 = vrcp.bf16.pop %v1746
      %v1820 = vmul.bf16 1065369472, %v1819
      %v1821 = vrcp.bf16.pop %v1747
      %v1822 = vmul.bf16 1065369472, %v1821
      %v1823 = vrcp.bf16.pop %v1748
      %v1824 = vmul.bf16 1065369472, %v1823
      %v1825 = vrcp.bf16.pop %v1749
      %v1826 = vmul.bf16 1065369472, %v1825
      %v1827 = vrcp.bf16.pop %v1750
      %v1828 = vmul.bf16 1065369472, %v1827
      %v1829 = vrcp.bf16.pop %v1751
      %v1830 = vmul.bf16 1065369472, %v1829
      %v1831 = vrcp.bf16.pop %v1752
      %v1832 = vmul.bf16 1065369472, %v1831
      %v1833 = vmul.bf16 %v1513, %v1754
      %v1834 = vmul.bf16 %v1514, %v1756
      %v1835 = vmul.bf16 %v1515, %v1758
      %v1836 = vmul.bf16 %v1516, %v1760
      %v1837 = vmul.bf16 %v1517, %v1762
      %v1838 = vmul.bf16 %v1518, %v1764
      %v1839 = vmul.bf16 %v1519, %v1766
      %v1840 = vmul.bf16 %v1520, %v1768
      %v1841 = vmul.bf16 %v1521, %v1770
      %v1842 = vmul.bf16 %v1522, %v1772
      %v1843 = vmul.bf16 %v1523, %v1774
      %v1844 = vmul.bf16 %v1524, %v1776
      %v1845 = vmul.bf16 %v1525, %v1778
      %v1846 = vmul.bf16 %v1526, %v1780
      %v1847 = vmul.bf16 %v1527, %v1782
      %v1848 = vmul.bf16 %v1528, %v1784
      %v1849 = vmul.bf16 %v1529, %v1786
      %v1850 = vmul.bf16 %v1530, %v1788
      %v1851 = vmul.bf16 %v1531, %v1790
      %v1852 = vmul.bf16 %v1532, %v1792
      %v1853 = vmul.bf16 %v1533, %v1794
      %v1854 = vmul.bf16 %v1534, %v1796
      %v1855 = vmul.bf16 %v1535, %v1798
      %v1856 = vmul.bf16 %v1536, %v1800
      %v1857 = vmul.bf16 %v1537, %v1802
      %v1858 = vmul.bf16 %v1538, %v1804
      %v1859 = vmul.bf16 %v1539, %v1806
      %v1860 = vmul.bf16 %v1540, %v1808
      %v1861 = vmul.bf16 %v1541, %v1810
      %v1862 = vmul.bf16 %v1542, %v1812
      %v1863 = vmul.bf16 %v1543, %v1814
      %v1864 = vmul.bf16 %v1544, %v1816
      %v1865 = vmul.bf16 %v1545, %v1818
      %v1866 = vmul.bf16 %v1546, %v1820
      %v1867 = vmul.bf16 %v1547, %v1822
      %v1868 = vmul.bf16 %v1548, %v1824
      %v1869 = vmul.bf16 %v1549, %v1826
      %v1870 = vmul.bf16 %v1550, %v1828
      %v1871 = vmul.bf16 %v1551, %v1830
      %v1872 = vmul.bf16 %v1552, %v1832
      %v1873 = vunpack.c.l.bf16 %v1833
      %v1874 = vunpack.c.l.bf16 %v1834
      %v1875 = vunpack.c.l.bf16 %v1835
      %v1876 = vunpack.c.l.bf16 %v1836
      %v1877 = vunpack.c.l.bf16 %v1837
      %v1878 = vunpack.c.l.bf16 %v1838
      %v1879 = vunpack.c.l.bf16 %v1839
      %v1880 = vunpack.c.l.bf16 %v1840
      %v1881 = vunpack.c.l.bf16 %v1841
      %v1882 = vunpack.c.l.bf16 %v1842
      %v1883 = vunpack.c.h.bf16 %v1833
      %v1884 = vunpack.c.h.bf16 %v1834
      %v1885 = vunpack.c.h.bf16 %v1835
      %v1886 = vunpack.c.h.bf16 %v1836
      %v1887 = vunpack.c.h.bf16 %v1837
      %v1888 = vunpack.c.h.bf16 %v1838
      %v1889 = vunpack.c.h.bf16 %v1839
      %v1890 = vunpack.c.h.bf16 %v1840
      %v1891 = vunpack.c.h.bf16 %v1841
      %v1892 = vunpack.c.h.bf16 %v1842
      %v1893 = vunpack.c.l.bf16 %v1843
      %v1894 = vunpack.c.l.bf16 %v1844
      %v1895 = vunpack.c.l.bf16 %v1845
      %v1896 = vunpack.c.l.bf16 %v1846
      %v1897 = vunpack.c.l.bf16 %v1847
      %v1898 = vunpack.c.l.bf16 %v1848
      %v1899 = vunpack.c.l.bf16 %v1849
      %v1900 = vunpack.c.l.bf16 %v1850
      %v1901 = vunpack.c.l.bf16 %v1851
      %v1902 = vunpack.c.l.bf16 %v1852
      %v1903 = vunpack.c.h.bf16 %v1843
      %v1904 = vunpack.c.h.bf16 %v1844
      %v1905 = vunpack.c.h.bf16 %v1845
      %v1906 = vunpack.c.h.bf16 %v1846
      %v1907 = vunpack.c.h.bf16 %v1847
      %v1908 = vunpack.c.h.bf16 %v1848
      %v1909 = vunpack.c.h.bf16 %v1849
      %v1910 = vunpack.c.h.bf16 %v1850
      %v1911 = vunpack.c.h.bf16 %v1851
      %v1912 = vunpack.c.h.bf16 %v1852
      %v1913 = vunpack.c.l.bf16 %v1853
      %v1914 = vunpack.c.l.bf16 %v1854
      %v1915 = vunpack.c.l.bf16 %v1855
      %v1916 = vunpack.c.l.bf16 %v1856
      %v1917 = vunpack.c.l.bf16 %v1857
      %v1918 = vunpack.c.l.bf16 %v1858
      %v1919 = vunpack.c.l.bf16 %v1859
      %v1920 = vunpack.c.l.bf16 %v1860
      %v1921 = vunpack.c.l.bf16 %v1861
      %v1922 = vunpack.c.l.bf16 %v1862
      %v1923 = vunpack.c.h.bf16 %v1853
      %v1924 = vunpack.c.h.bf16 %v1854
      %v1925 = vunpack.c.h.bf16 %v1855
      %v1926 = vunpack.c.h.bf16 %v1856
      %v1927 = vunpack.c.h.bf16 %v1857
      %v1928 = vunpack.c.h.bf16 %v1858
      %v1929 = vunpack.c.h.bf16 %v1859
      %v1930 = vunpack.c.h.bf16 %v1860
      %v1931 = vunpack.c.h.bf16 %v1861
      %v1932 = vunpack.c.h.bf16 %v1862
      %v1933 = vunpack.c.l.bf16 %v1863
      %v1934 = vunpack.c.l.bf16 %v1864
      %v1935 = vunpack.c.l.bf16 %v1865
      %v1936 = vunpack.c.l.bf16 %v1866
      %v1937 = vunpack.c.l.bf16 %v1867
      %v1938 = vunpack.c.l.bf16 %v1868
      %v1939 = vunpack.c.l.bf16 %v1869
      %v1940 = vunpack.c.l.bf16 %v1870
      %v1941 = vunpack.c.l.bf16 %v1871
      %v1942 = vunpack.c.l.bf16 %v1872
      %v1943 = vunpack.c.h.bf16 %v1863
      %v1944 = vunpack.c.h.bf16 %v1864
      %v1945 = vunpack.c.h.bf16 %v1865
      %v1946 = vunpack.c.h.bf16 %v1866
      %v1947 = vunpack.c.h.bf16 %v1867
      %v1948 = vunpack.c.h.bf16 %v1868
      %v1949 = vunpack.c.h.bf16 %v1869
      %v1950 = vunpack.c.h.bf16 %v1870
      %v1951 = vunpack.c.h.bf16 %v1871
      %v1952 = vunpack.c.h.bf16 %v1872
      %v1953 = vld [vmem:[#allocation2] sm:$0xff]
      %v1954 = vld [vmem:[#allocation2 + $0x8] sm:$0x3]
      %v1955 = vadd.f32 %v1873, %v1883
      %v1956 = vadd.f32 %v1955, %v1893
      %v1957 = vadd.f32 %v1956, %v1903
      %v1958 = vadd.f32 %v1957, %v1913
      %v1959 = vadd.f32 %v1958, %v1923
      %v1960 = vadd.f32 %v1959, %v1933
      %v1961 = vadd.f32 %v1960, %v1943
      %v1962 = vrot.slane %v1961, 4
      %v1963 = vadd.f32 %v1961, %v1962
      %v1964 = vrot.slane %v1963, 2
      %v1965 = vadd.f32 %v1963, %v1964
      %v1966 = vrot.slane %v1965, 1
      %v1967 = vadd.f32 %v1965, %v1966
      %v1968 = vadd.f32 %v1874, %v1884
      %v1969 = vadd.f32 %v1968, %v1894
      %v1970 = vadd.f32 %v1969, %v1904
      %v1971 = vadd.f32 %v1970, %v1914
      %v1972 = vadd.f32 %v1971, %v1924
      %v1973 = vadd.f32 %v1972, %v1934
      %v1974 = vadd.f32 %v1973, %v1944
      %v1975 = vrot.slane %v1974, 4
      %v1976 = vadd.f32 %v1974, %v1975
      %v1977 = vrot.slane %v1976, 2
      %v1978 = vadd.f32 %v1976, %v1977
      %v1979 = vrot.slane %v1978, 1
      %v1980 = vadd.f32 %v1978, %v1979
      %v1981 = vadd.f32 %v1875, %v1885
      %v1982 = vadd.f32 %v1981, %v1895
      %v1983 = vadd.f32 %v1982, %v1905
      %v1984 = vadd.f32 %v1983, %v1915
      %v1985 = vadd.f32 %v1984, %v1925
      %v1986 = vadd.f32 %v1985, %v1935
      %v1987 = vadd.f32 %v1986, %v1945
      %v1988 = vrot.slane %v1987, 4
      %v1989 = vadd.f32 %v1987, %v1988
      %v1990 = vrot.slane %v1989, 2
      %v1991 = vadd.f32 %v1989, %v1990
      %v1992 = vrot.slane %v1991, 1
      %v1993 = vadd.f32 %v1991, %v1992
      %v1994 = vadd.f32 %v1876, %v1886
      %v1995 = vadd.f32 %v1994, %v1896
      %v1996 = vadd.f32 %v1995, %v1906
      %v1997 = vadd.f32 %v1996, %v1916
      %v1998 = vadd.f32 %v1997, %v1926
      %v1999 = vadd.f32 %v1998, %v1936
      %v2000 = vadd.f32 %v1999, %v1946
      %v2001 = vrot.slane %v2000, 4
      %v2002 = vadd.f32 %v2000, %v2001
      %v2003 = vrot.slane %v2002, 2
      %v2004 = vadd.f32 %v2002, %v2003
      %v2005 = vrot.slane %v2004, 1
      %v2006 = vadd.f32 %v2004, %v2005
      %v2007 = vadd.f32 %v1877, %v1887
      %v2008 = vadd.f32 %v2007, %v1897
      %v2009 = vadd.f32 %v2008, %v1907
      %v2010 = vadd.f32 %v2009, %v1917
      %v2011 = vadd.f32 %v2010, %v1927
      %v2012 = vadd.f32 %v2011, %v1937
      %v2013 = vadd.f32 %v2012, %v1947
      %v2014 = vrot.slane %v2013, 4
      %v2015 = vadd.f32 %v2013, %v2014
      %v2016 = vrot.slane %v2015, 2
      %v2017 = vadd.f32 %v2015, %v2016
      %v2018 = vrot.slane %v2017, 1
      %v2019 = vadd.f32 %v2017, %v2018
      %v2020 = vadd.f32 %v1878, %v1888
      %v2021 = vadd.f32 %v2020, %v1898
      %v2022 = vadd.f32 %v2021, %v1908
      %v2023 = vadd.f32 %v2022, %v1918
      %v2024 = vadd.f32 %v2023, %v1928
      %v2025 = vadd.f32 %v2024, %v1938
      %v2026 = vadd.f32 %v2025, %v1948
      %v2027 = vrot.slane %v2026, 4
      %v2028 = vadd.f32 %v2026, %v2027
      %v2029 = vrot.slane %v2028, 2
      %v2030 = vadd.f32 %v2028, %v2029
      %v2031 = vrot.slane %v2030, 1
      %v2032 = vadd.f32 %v2030, %v2031
      %v2033 = vadd.f32 %v1879, %v1889
      %v2034 = vadd.f32 %v2033, %v1899
      %v2035 = vadd.f32 %v2034, %v1909
      %v2036 = vadd.f32 %v2035, %v1919
      %v2037 = vadd.f32 %v2036, %v1929
      %v2038 = vadd.f32 %v2037, %v1939
      %v2039 = vadd.f32 %v2038, %v1949
      %v2040 = vrot.slane %v2039, 4
      %v2041 = vadd.f32 %v2039, %v2040
      %v2042 = vrot.slane %v2041, 2
      %v2043 = vadd.f32 %v2041, %v2042
      %v2044 = vrot.slane %v2043, 1
      %v2045 = vadd.f32 %v2043, %v2044
      %v2046 = vadd.f32 %v1880, %v1890
      %v2047 = vadd.f32 %v2046, %v1900
      %v2048 = vadd.f32 %v2047, %v1910
      %v2049 = vadd.f32 %v2048, %v1920
      %v2050 = vadd.f32 %v2049, %v1930
      %v2051 = vadd.f32 %v2050, %v1940
      %v2052 = vadd.f32 %v2051, %v1950
      %v2053 = vrot.slane %v2052, 4
      %v2054 = vadd.f32 %v2052, %v2053
      %v2055 = vrot.slane %v2054, 2
      %v2056 = vadd.f32 %v2054, %v2055
      %v2057 = vrot.slane %v2056, 1
      %v2058 = vadd.f32 %v2056, %v2057
      %v2059 = vadd.f32 %v1881, %v1891
      %v2060 = vadd.f32 %v2059, %v1901
      %v2061 = vadd.f32 %v2060, %v1911
      %v2062 = vadd.f32 %v2061, %v1921
      %v2063 = vadd.f32 %v2062, %v1931
      %v2064 = vadd.f32 %v2063, %v1941
      %v2065 = vadd.f32 %v2064, %v1951
      %v2066 = vrot.slane %v2065, 4
      %v2067 = vadd.f32 %v2065, %v2066
      %v2068 = vrot.slane %v2067, 2
      %v2069 = vadd.f32 %v2067, %v2068
      %v2070 = vrot.slane %v2069, 1
      %v2071 = vadd.f32 %v2069, %v2070
      %v2072 = vadd.f32 %v1882, %v1892
      %v2073 = vadd.f32 %v2072, %v1902
      %v2074 = vadd.f32 %v2073, %v1912
      %v2075 = vadd.f32 %v2074, %v1922
      %v2076 = vadd.f32 %v2075, %v1932
      %v2077 = vadd.f32 %v2076, %v1942
      %v2078 = vadd.f32 %v2077, %v1952
      %v2079 = vrot.slane %v2078, 4
      %v2080 = vadd.f32 %v2078, %v2079
      %v2081 = vrot.slane %v2080, 2
      %v2082 = vadd.f32 %v2080, %v2081
      %v2083 = vrot.slane %v2082, 1
      %v2084 = vadd.f32 %v2082, %v2083
      %v2095 = vcombine.low %v1967, %v1980
      %v2096 = vcombine.low %v1993, %v2006
      %v2097 = vcombine.low %v2019, %v2032
      %v2098 = vcombine.low %v2045, %v2058
      %v2100 = vunpack.c.l.s4 1966171168
      %v2101 = vunpack.c.0.s8 %v2100
      %v2102 = vlaneseq
      %v2103 = vshrl.u32 %v2102, 7
      %v2104 = vsub.s32 %v2101, %v2103
      %v2105 = vrot.slane %v2095, %v2104
      %v2107 = vunpack.c.l.s4 1966171168
      %v2108 = vunpack.c.0.s8 %v2107
      %v2109 = vlaneseq
      %v2110 = vshrl.u32 %v2109, 7
      %v2111 = vsub.s32 %v2108, %v2110
      %v2112 = vrot.slane %v2096, %v2111
      %v2114 = vunpack.c.l.s4 1966171168
      %v2115 = vunpack.c.0.s8 %v2114
      %v2116 = vlaneseq
      %v2117 = vshrl.u32 %v2116, 7
      %v2118 = vsub.s32 %v2115, %v2117
      %v2119 = vrot.slane %v2097, %v2118
      %v2121 = vunpack.c.l.s4 1966171168
      %v2122 = vunpack.c.0.s8 %v2121
      %v2123 = vlaneseq
      %v2124 = vshrl.u32 %v2123, 7
      %v2125 = vsub.s32 %v2122, %v2124
      %v2126 = vrot.slane %v2098, %v2125
      %v2127 = vcombine.low %v2105, %v2112
      %v2128 = vcombine.low %v2119, %v2126
      %v2130 = vunpack.c.l.s4 1966171168
      %v2131 = vunpack.c.0.s8 %v2130
      %v2132 = vlaneseq
      %v2133 = vshrl.u32 %v2132, 7
      %v2134 = vsub.s32 %v2131, %v2133
      %v2135 = vrot.slane %v2127, %v2134
      %v2137 = vunpack.c.l.s4 1966171168
      %v2138 = vunpack.c.0.s8 %v2137
      %v2139 = vlaneseq
      %v2140 = vshrl.u32 %v2139, 7
      %v2141 = vsub.s32 %v2138, %v2140
      %v2142 = vrot.slane %v2128, %v2141
      %v2143 = vcombine.low %v2135, %v2142
      %v2144 = vcombine.low %v2071, %v2084
      %v2146 = vunpack.c.l.s4 1966171168
      %v2147 = vunpack.c.0.s8 %v2146
      %v2148 = vlaneseq
      %v2149 = vshrl.u32 %v2148, 7
      %v2150 = vsub.s32 %v2147, %v2149
      %v2151 = vrot.slane %v2144, %v2150
      %v2153 = vunpack.c.l.s4 1966171168
      %v2154 = vunpack.c.0.s8 %v2153
      %v2155 = vlaneseq
      %v2156 = vshrl.u32 %v2155, 7
      %v2157 = vsub.s32 %v2154, %v2156
      %v2158 = vrot.slane %v2151, %v2157
      %v2161 = vadd.f32 %v1953, %v2143
      %v2162 = vadd.f32 %v1954, %v2158
      %2163 = vst [vmem:[#allocation2] sm:$0xff] %v2161
      %v2164 = vlaneseq
      %vm2165 = vcmp.ge.s32.totalorder %v2164, 0
      %vm2166 = vcmp.lt.s32.totalorder %v2164, 256
      %vm2167 = vmand %vm2165, %vm2166
      %2168 = vst.msk [vmem:[#allocation2 + $0x8] sm:$0x3] %vm2167, %v2162
      // Predicated region
      $region69: #{me621_forward.1} parent=63 // pred_check
        %p2169 = pneg %p415
      $region70: #{me621_forward.1} parent=63 // pred_check_branch
        %2171 = sbr.rel (%p2169) target = $region72
      $region71: #{me621_forward.1} parent=63 // pred_region
        %v2172 = vld [vmem:[#allocation2] sm:$0xff]
        %v2173 = vld [vmem:[#allocation2 + $0x8] sm:$0x3]
        %v2174 = vmul.f32 %v2172, 0.015625
        %v2175 = vmul.f32 %v2173, 0.015625
        %v2178 = vlaneseq
        %v2179 = vshrl.u32 %v2178, 7
        %v2180 = vsub.s32 0, %v2179
        %v2181 = vrot.slane %v2174, %v2180
        %v2182 = vlaneseq
        %v2183 = vshrl.u32 %v2182, 7
        %v2184 = vsub.s32 1, %v2183
        %v2185 = vrot.slane %v2174, %v2184
        %v2186 = vlaneseq
        %v2187 = vshrl.u32 %v2186, 7
        %v2188 = vsub.s32 2, %v2187
        %v2189 = vrot.slane %v2174, %v2188
        %v2190 = vlaneseq
        %v2191 = vshrl.u32 %v2190, 7
        %v2192 = vsub.s32 3, %v2191
        %v2193 = vrot.slane %v2174, %v2192
        %v2194 = vlaneseq
        %v2195 = vshrl.u32 %v2194, 7
        %v2196 = vsub.s32 4, %v2195
        %v2197 = vrot.slane %v2174, %v2196
        %v2198 = vlaneseq
        %v2199 = vshrl.u32 %v2198, 7
        %v2200 = vsub.s32 5, %v2199
        %v2201 = vrot.slane %v2174, %v2200
        %v2202 = vlaneseq
        %v2203 = vshrl.u32 %v2202, 7
        %v2204 = vsub.s32 6, %v2203
        %v2205 = vrot.slane %v2174, %v2204
        %v2206 = vlaneseq
        %v2207 = vshrl.u32 %v2206, 7
        %v2208 = vsub.s32 7, %v2207
        %v2209 = vrot.slane %v2174, %v2208
        %v2210 = vlaneseq
        %v2211 = vshrl.u32 %v2210, 7
        %v2212 = vsub.s32 0, %v2211
        %v2213 = vrot.slane %v2175, %v2212
        %v2214 = vlaneseq
        %v2215 = vshrl.u32 %v2214, 7
        %v2216 = vsub.s32 1, %v2215
        %v2217 = vrot.slane %v2175, %v2216
        %v2228 = vpack.c.bf16 %v2181, %v2181
        %v2229 = vpack.c.bf16 %v2185, %v2185
        %v2230 = vpack.c.bf16 %v2189, %v2189
        %v2231 = vpack.c.bf16 %v2193, %v2193
        %v2232 = vpack.c.bf16 %v2197, %v2197
        %v2233 = vpack.c.bf16 %v2201, %v2201
        %v2234 = vpack.c.bf16 %v2205, %v2205
        %v2235 = vpack.c.bf16 %v2209, %v2209
        %v2236 = vpack.c.bf16 %v2213, %v2213
        %v2237 = vpack.c.bf16 %v2217, %v2217
        %v2238 = vld [vmem:[%s5] sm:$0xff]
        %v2239 = vld [vmem:[%s5 + $0x8] sm:$0xff]
        %v2240 = vld [vmem:[%s5 + $0x10] sm:$0xff]
        %v2241 = vld [vmem:[%s5 + $0x18] sm:$0xff]
        %v2242 = vld [vmem:[%s5 + $0x20] sm:$0xff]
        %v2243 = vld [vmem:[%s5 + $0x28] sm:$0xff]
        %v2244 = vld [vmem:[%s5 + $0x30] sm:$0xff]
        %v2245 = vld [vmem:[%s5 + $0x38] sm:$0xff]
        %v2246 = vld [vmem:[%s5 + $0x40] sm:$0xff]
        %v2247 = vld [vmem:[%s5 + $0x48] sm:$0xff]
        %v2248 = vld [vmem:[%s5 + $0x50] sm:$0xff]
        %v2249 = vld [vmem:[%s5 + $0x58] sm:$0xff]
        %v2250 = vld [vmem:[%s5 + $0x60] sm:$0xff]
        %v2251 = vld [vmem:[%s5 + $0x68] sm:$0xff]
        %v2252 = vld [vmem:[%s5 + $0x70] sm:$0xff]
        %v2253 = vld [vmem:[%s5 + $0x78] sm:$0xff]
        %v2254 = vld [vmem:[%s5 + $0x80] sm:$0xff]
        %v2255 = vld [vmem:[%s5 + $0x88] sm:$0xff]
        %v2256 = vld [vmem:[%s5 + $0x90] sm:$0xff]
        %v2257 = vld [vmem:[%s5 + $0x98] sm:$0xff]
        %v2258 = vld [vmem:[%s5 + $0xa0] sm:$0xff]
        %v2259 = vld [vmem:[%s5 + $0xa8] sm:$0xff]
        %v2260 = vld [vmem:[%s5 + $0xb0] sm:$0xff]
        %v2261 = vld [vmem:[%s5 + $0xb8] sm:$0xff]
        %v2262 = vld [vmem:[%s5 + $0xc0] sm:$0xff]
        %v2263 = vld [vmem:[%s5 + $0xc8] sm:$0xff]
        %v2264 = vld [vmem:[%s5 + $0xd0] sm:$0xff]
        %v2265 = vld [vmem:[%s5 + $0xd8] sm:$0xff]
        %v2266 = vld [vmem:[%s5 + $0xe0] sm:$0xff]
        %v2267 = vld [vmem:[%s5 + $0xe8] sm:$0xff]
        %v2268 = vld [vmem:[%s5 + $0xf0] sm:$0xff]
        %v2269 = vld [vmem:[%s5 + $0xf8] sm:$0xff]
        %v2270 = vld [vmem:[%s5 + $0x100] sm:$0xff]
        %v2271 = vld [vmem:[%s5 + $0x108] sm:$0xff]
        %v2272 = vld [vmem:[%s5 + $0x110] sm:$0xff]
        %v2273 = vld [vmem:[%s5 + $0x118] sm:$0xff]
        %v2274 = vld [vmem:[%s5 + $0x120] sm:$0xff]
        %v2275 = vld [vmem:[%s5 + $0x128] sm:$0xff]
        %v2276 = vld [vmem:[%s5 + $0x130] sm:$0xff]
        %v2277 = vld [vmem:[%s5 + $0x138] sm:$0xff]
        %v2278 = vld [vmem:[%s5 + $0x140] sm:$0xff]
        %v2279 = vld [vmem:[%s5 + $0x148] sm:$0xff]
        %v2280 = vld [vmem:[%s5 + $0x150] sm:$0xff]
        %v2281 = vld [vmem:[%s5 + $0x158] sm:$0xff]
        %v2282 = vld [vmem:[%s5 + $0x160] sm:$0xff]
        %v2283 = vld [vmem:[%s5 + $0x168] sm:$0xff]
        %v2284 = vld [vmem:[%s5 + $0x170] sm:$0xff]
        %v2285 = vld [vmem:[%s5 + $0x178] sm:$0xff]
        %v2286 = vld [vmem:[%s5 + $0x180] sm:$0xff]
        %v2287 = vld [vmem:[%s5 + $0x188] sm:$0xff]
        %v2288 = vld [vmem:[%s5 + $0x190] sm:$0xff]
        %v2289 = vld [vmem:[%s5 + $0x198] sm:$0xff]
        %v2290 = vld [vmem:[%s5 + $0x1a0] sm:$0xff]
        %v2291 = vld [vmem:[%s5 + $0x1a8] sm:$0xff]
        %v2292 = vld [vmem:[%s5 + $0x1b0] sm:$0xff]
        %v2293 = vld [vmem:[%s5 + $0x1b8] sm:$0xff]
        %v2294 = vld [vmem:[%s5 + $0x1c0] sm:$0xff]
        %v2295 = vld [vmem:[%s5 + $0x1c8] sm:$0xff]
        %v2296 = vld [vmem:[%s5 + $0x1d0] sm:$0xff]
        %v2297 = vld [vmem:[%s5 + $0x1d8] sm:$0xff]
        %v2298 = vld [vmem:[%s5 + $0x1e0] sm:$0xff]
        %v2299 = vld [vmem:[%s5 + $0x1e8] sm:$0xff]
        %v2300 = vld [vmem:[%s5 + $0x1f0] sm:$0xff]
        %v2301 = vld [vmem:[%s5 + $0x1f8] sm:$0xff]
        %v2302 = vld [vmem:[%s5 + $0x200] sm:$0xff]
        %v2303 = vld [vmem:[%s5 + $0x208] sm:$0xff]
        %v2304 = vld [vmem:[%s5 + $0x210] sm:$0xff]
        %v2305 = vld [vmem:[%s5 + $0x218] sm:$0xff]
        %v2306 = vld [vmem:[%s5 + $0x220] sm:$0xff]
        %v2307 = vld [vmem:[%s5 + $0x228] sm:$0xff]
        %v2308 = vld [vmem:[%s5 + $0x230] sm:$0xff]
        %v2309 = vld [vmem:[%s5 + $0x238] sm:$0xff]
        %v2310 = vld [vmem:[%s5 + $0x240] sm:$0xff]
        %v2311 = vld [vmem:[%s5 + $0x248] sm:$0xff]
        %v2312 = vld [vmem:[%s5 + $0x250] sm:$0xff]
        %v2313 = vld [vmem:[%s5 + $0x258] sm:$0xff]
        %v2314 = vld [vmem:[%s5 + $0x260] sm:$0xff]
        %v2315 = vld [vmem:[%s5 + $0x268] sm:$0xff]
        %v2316 = vld [vmem:[%s5 + $0x270] sm:$0xff]
        %v2317 = vld [vmem:[%s5 + $0x278] sm:$0xff]
        %v2318 = vld [vmem:[%s5 + $0x280] sm:$0xff]
        %v2319 = vld [vmem:[%s5 + $0x288] sm:$0xff]
        %v2320 = vld [vmem:[%s5 + $0x290] sm:$0xff]
        %v2321 = vld [vmem:[%s5 + $0x298] sm:$0xff]
        %v2322 = vld [vmem:[%s5 + $0x2a0] sm:$0xff]
        %v2323 = vld [vmem:[%s5 + $0x2a8] sm:$0xff]
        %v2324 = vld [vmem:[%s5 + $0x2b0] sm:$0xff]
        %v2325 = vld [vmem:[%s5 + $0x2b8] sm:$0xff]
        %v2326 = vld [vmem:[%s5 + $0x2c0] sm:$0xff]
        %v2327 = vld [vmem:[%s5 + $0x2c8] sm:$0xff]
        %v2328 = vld [vmem:[%s5 + $0x2d0] sm:$0xff]
        %v2329 = vld [vmem:[%s5 + $0x2d8] sm:$0xff]
        %v2330 = vld [vmem:[%s5 + $0x2e0] sm:$0xff]
        %v2331 = vld [vmem:[%s5 + $0x2e8] sm:$0xff]
        %v2332 = vld [vmem:[%s5 + $0x2f0] sm:$0xff]
        %v2333 = vld [vmem:[%s5 + $0x2f8] sm:$0xff]
        %v2334 = vld [vmem:[%s5 + $0x300] sm:$0xff]
        %v2335 = vld [vmem:[%s5 + $0x308] sm:$0xff]
        %v2336 = vld [vmem:[%s5 + $0x310] sm:$0xff]
        %v2337 = vld [vmem:[%s5 + $0x318] sm:$0xff]
        %v2338 = vld [vmem:[%s5 + $0x320] sm:$0xff]
        %v2339 = vld [vmem:[%s5 + $0x328] sm:$0xff]
        %v2340 = vld [vmem:[%s5 + $0x330] sm:$0xff]
        %v2341 = vld [vmem:[%s5 + $0x338] sm:$0xff]
        %v2342 = vld [vmem:[%s5 + $0x340] sm:$0xff]
        %v2343 = vld [vmem:[%s5 + $0x348] sm:$0xff]
        %v2344 = vld [vmem:[%s5 + $0x350] sm:$0xff]
        %v2345 = vld [vmem:[%s5 + $0x358] sm:$0xff]
        %v2346 = vld [vmem:[%s5 + $0x360] sm:$0xff]
        %v2347 = vld [vmem:[%s5 + $0x368] sm:$0xff]
        %v2348 = vld [vmem:[%s5 + $0x370] sm:$0xff]
        %v2349 = vld [vmem:[%s5 + $0x378] sm:$0xff]
        %v2350 = vld [vmem:[%s5 + $0x380] sm:$0xff]
        %v2351 = vld [vmem:[%s5 + $0x388] sm:$0xff]
        %v2352 = vld [vmem:[%s5 + $0x390] sm:$0xff]
        %v2353 = vld [vmem:[%s5 + $0x398] sm:$0xff]
        %v2354 = vld [vmem:[%s5 + $0x3a0] sm:$0xff]
        %v2355 = vld [vmem:[%s5 + $0x3a8] sm:$0xff]
        %v2356 = vld [vmem:[%s5 + $0x3b0] sm:$0xff]
        %v2357 = vld [vmem:[%s5 + $0x3b8] sm:$0xff]
        %v2358 = vld [vmem:[%s5 + $0x3c0] sm:$0xff]
        %v2359 = vld [vmem:[%s5 + $0x3c8] sm:$0xff]
        %v2360 = vld [vmem:[%s5 + $0x3d0] sm:$0xff]
        %v2361 = vld [vmem:[%s5 + $0x3d8] sm:$0xff]
        %v2362 = vld [vmem:[%s5 + $0x3e0] sm:$0xff]
        %v2363 = vld [vmem:[%s5 + $0x3e8] sm:$0xff]
        %v2364 = vld [vmem:[%s5 + $0x3f0] sm:$0xff]
        %v2365 = vld [vmem:[%s5 + $0x3f8] sm:$0xff]
        %v2366 = vld [vmem:[%s5 + $0x400] sm:$0xff]
        %v2367 = vld [vmem:[%s5 + $0x408] sm:$0xff]
        %v2368 = vld [vmem:[%s5 + $0x410] sm:$0xff]
        %v2369 = vld [vmem:[%s5 + $0x418] sm:$0xff]
        %v2370 = vld [vmem:[%s5 + $0x420] sm:$0xff]
        %v2371 = vld [vmem:[%s5 + $0x428] sm:$0xff]
        %v2372 = vld [vmem:[%s5 + $0x430] sm:$0xff]
        %v2373 = vld [vmem:[%s5 + $0x438] sm:$0xff]
        %v2374 = vld [vmem:[%s5 + $0x440] sm:$0xff]
        %v2375 = vld [vmem:[%s5 + $0x448] sm:$0xff]
        %v2376 = vld [vmem:[%s5 + $0x450] sm:$0xff]
        %v2377 = vld [vmem:[%s5 + $0x458] sm:$0xff]
        %v2378 = vld [vmem:[%s5 + $0x460] sm:$0xff]
        %v2379 = vld [vmem:[%s5 + $0x468] sm:$0xff]
        %v2380 = vld [vmem:[%s5 + $0x470] sm:$0xff]
        %v2381 = vld [vmem:[%s5 + $0x478] sm:$0xff]
        %v2382 = vld [vmem:[%s5 + $0x480] sm:$0xff]
        %v2383 = vld [vmem:[%s5 + $0x488] sm:$0xff]
        %v2384 = vld [vmem:[%s5 + $0x490] sm:$0xff]
        %v2385 = vld [vmem:[%s5 + $0x498] sm:$0xff]
        %v2386 = vld [vmem:[%s5 + $0x4a0] sm:$0xff]
        %v2387 = vld [vmem:[%s5 + $0x4a8] sm:$0xff]
        %v2388 = vld [vmem:[%s5 + $0x4b0] sm:$0xff]
        %v2389 = vld [vmem:[%s5 + $0x4b8] sm:$0xff]
        %v2390 = vld [vmem:[%s5 + $0x4c0] sm:$0xff]
        %v2391 = vld [vmem:[%s5 + $0x4c8] sm:$0xff]
        %v2392 = vld [vmem:[%s5 + $0x4d0] sm:$0xff]
        %v2393 = vld [vmem:[%s5 + $0x4d8] sm:$0xff]
        %v2394 = vld [vmem:[%s5 + $0x4e0] sm:$0xff]
        %v2395 = vld [vmem:[%s5 + $0x4e8] sm:$0xff]
        %v2396 = vld [vmem:[%s5 + $0x4f0] sm:$0xff]
        %v2397 = vld [vmem:[%s5 + $0x4f8] sm:$0xff]
        %v2398 = vld [vmem:[%s5 + $0x500] sm:$0xff]
        %v2399 = vld [vmem:[%s5 + $0x508] sm:$0xff]
        %v2400 = vld [vmem:[%s5 + $0x510] sm:$0xff]
        %v2401 = vld [vmem:[%s5 + $0x518] sm:$0xff]
        %v2402 = vld [vmem:[%s5 + $0x520] sm:$0xff]
        %v2403 = vld [vmem:[%s5 + $0x528] sm:$0xff]
        %v2404 = vld [vmem:[%s5 + $0x530] sm:$0xff]
        %v2405 = vld [vmem:[%s5 + $0x538] sm:$0xff]
        %v2406 = vld [vmem:[%s5 + $0x540] sm:$0xff]
        %v2407 = vld [vmem:[%s5 + $0x548] sm:$0xff]
        %v2408 = vld [vmem:[%s5 + $0x550] sm:$0xff]
        %v2409 = vld [vmem:[%s5 + $0x558] sm:$0xff]
        %v2410 = vld [vmem:[%s5 + $0x560] sm:$0xff]
        %v2411 = vld [vmem:[%s5 + $0x568] sm:$0xff]
        %v2412 = vld [vmem:[%s5 + $0x570] sm:$0xff]
        %v2413 = vld [vmem:[%s5 + $0x578] sm:$0xff]
        %v2414 = vld [vmem:[%s5 + $0x580] sm:$0xff]
        %v2415 = vld [vmem:[%s5 + $0x588] sm:$0xff]
        %v2416 = vld [vmem:[%s5 + $0x590] sm:$0xff]
        %v2417 = vld [vmem:[%s5 + $0x598] sm:$0xff]
        %v2418 = vld [vmem:[%s5 + $0x5a0] sm:$0xff]
        %v2419 = vld [vmem:[%s5 + $0x5a8] sm:$0xff]
        %v2420 = vld [vmem:[%s5 + $0x5b0] sm:$0xff]
        %v2421 = vld [vmem:[%s5 + $0x5b8] sm:$0xff]
        %v2422 = vld [vmem:[%s5 + $0x5c0] sm:$0xff]
        %v2423 = vld [vmem:[%s5 + $0x5c8] sm:$0xff]
        %v2424 = vld [vmem:[%s5 + $0x5d0] sm:$0xff]
        %v2425 = vld [vmem:[%s5 + $0x5d8] sm:$0xff]
        %v2426 = vld [vmem:[%s5 + $0x5e0] sm:$0xff]
        %v2427 = vld [vmem:[%s5 + $0x5e8] sm:$0xff]
        %v2428 = vld [vmem:[%s5 + $0x5f0] sm:$0xff]
        %v2429 = vld [vmem:[%s5 + $0x5f8] sm:$0xff]
        %v2430 = vld [vmem:[%s5 + $0x600] sm:$0xff]
        %v2431 = vld [vmem:[%s5 + $0x608] sm:$0xff]
        %v2432 = vld [vmem:[%s5 + $0x610] sm:$0xff]
        %v2433 = vld [vmem:[%s5 + $0x618] sm:$0xff]
        %v2434 = vld [vmem:[%s5 + $0x620] sm:$0xff]
        %v2435 = vld [vmem:[%s5 + $0x628] sm:$0xff]
        %v2436 = vld [vmem:[%s5 + $0x630] sm:$0xff]
        %v2437 = vld [vmem:[%s5 + $0x638] sm:$0xff]
        %v2438 = vld [vmem:[%s5 + $0x640] sm:$0xff]
        %v2439 = vld [vmem:[%s5 + $0x648] sm:$0xff]
        %v2440 = vld [vmem:[%s5 + $0x650] sm:$0xff]
        %v2441 = vld [vmem:[%s5 + $0x658] sm:$0xff]
        %v2442 = vld [vmem:[%s5 + $0x660] sm:$0xff]
        %v2443 = vld [vmem:[%s5 + $0x668] sm:$0xff]
        %v2444 = vld [vmem:[%s5 + $0x670] sm:$0xff]
        %v2445 = vld [vmem:[%s5 + $0x678] sm:$0xff]
        %v2446 = vld [vmem:[%s5 + $0x680] sm:$0xff]
        %v2447 = vld [vmem:[%s5 + $0x688] sm:$0xff]
        %v2448 = vld [vmem:[%s5 + $0x690] sm:$0xff]
        %v2449 = vld [vmem:[%s5 + $0x698] sm:$0xff]
        %v2450 = vld [vmem:[%s5 + $0x6a0] sm:$0xff]
        %v2451 = vld [vmem:[%s5 + $0x6a8] sm:$0xff]
        %v2452 = vld [vmem:[%s5 + $0x6b0] sm:$0xff]
        %v2453 = vld [vmem:[%s5 + $0x6b8] sm:$0xff]
        %v2454 = vld [vmem:[%s5 + $0x6c0] sm:$0xff]
        %v2455 = vld [vmem:[%s5 + $0x6c8] sm:$0xff]
        %v2456 = vld [vmem:[%s5 + $0x6d0] sm:$0xff]
        %v2457 = vld [vmem:[%s5 + $0x6d8] sm:$0xff]
        %v2458 = vld [vmem:[%s5 + $0x6e0] sm:$0xff]
        %v2459 = vld [vmem:[%s5 + $0x6e8] sm:$0xff]
        %v2460 = vld [vmem:[%s5 + $0x6f0] sm:$0xff]
        %v2461 = vld [vmem:[%s5 + $0x6f8] sm:$0xff]
        %v2462 = vld [vmem:[%s5 + $0x700] sm:$0xff]
        %v2463 = vld [vmem:[%s5 + $0x708] sm:$0xff]
        %v2464 = vld [vmem:[%s5 + $0x710] sm:$0xff]
        %v2465 = vld [vmem:[%s5 + $0x718] sm:$0xff]
        %v2466 = vld [vmem:[%s5 + $0x720] sm:$0xff]
        %v2467 = vld [vmem:[%s5 + $0x728] sm:$0xff]
        %v2468 = vld [vmem:[%s5 + $0x730] sm:$0xff]
        %v2469 = vld [vmem:[%s5 + $0x738] sm:$0xff]
        %v2470 = vld [vmem:[%s5 + $0x740] sm:$0xff]
        %v2471 = vld [vmem:[%s5 + $0x748] sm:$0xff]
        %v2472 = vld [vmem:[%s5 + $0x750] sm:$0xff]
        %v2473 = vld [vmem:[%s5 + $0x758] sm:$0xff]
        %v2474 = vld [vmem:[%s5 + $0x760] sm:$0xff]
        %v2475 = vld [vmem:[%s5 + $0x768] sm:$0xff]
        %v2476 = vld [vmem:[%s5 + $0x770] sm:$0xff]
        %v2477 = vld [vmem:[%s5 + $0x778] sm:$0xff]
        %v2478 = vld [vmem:[%s5 + $0x780] sm:$0xff]
        %v2479 = vld [vmem:[%s5 + $0x788] sm:$0xff]
        %v2480 = vld [vmem:[%s5 + $0x790] sm:$0xff]
        %v2481 = vld [vmem:[%s5 + $0x798] sm:$0xff]
        %v2482 = vld [vmem:[%s5 + $0x7a0] sm:$0xff]
        %v2483 = vld [vmem:[%s5 + $0x7a8] sm:$0xff]
        %v2484 = vld [vmem:[%s5 + $0x7b0] sm:$0xff]
        %v2485 = vld [vmem:[%s5 + $0x7b8] sm:$0xff]
        %v2486 = vld [vmem:[%s5 + $0x7c0] sm:$0xff]
        %v2487 = vld [vmem:[%s5 + $0x7c8] sm:$0xff]
        %v2488 = vld [vmem:[%s5 + $0x7d0] sm:$0xff]
        %v2489 = vld [vmem:[%s5 + $0x7d8] sm:$0xff]
        %v2490 = vld [vmem:[%s5 + $0x7e0] sm:$0xff]
        %v2491 = vld [vmem:[%s5 + $0x7e8] sm:$0xff]
        %v2492 = vld [vmem:[%s5 + $0x7f0] sm:$0xff]
        %v2493 = vld [vmem:[%s5 + $0x7f8] sm:$0xff]
        %v2494 = vld [vmem:[%s5 + $0x800] sm:$0xff]
        %v2495 = vld [vmem:[%s5 + $0x808] sm:$0xff]
        %v2496 = vld [vmem:[%s5 + $0x810] sm:$0xff]
        %v2497 = vld [vmem:[%s5 + $0x818] sm:$0xff]
        %v2498 = vld [vmem:[%s5 + $0x820] sm:$0xff]
        %v2499 = vld [vmem:[%s5 + $0x828] sm:$0xff]
        %v2500 = vld [vmem:[%s5 + $0x830] sm:$0xff]
        %v2501 = vld [vmem:[%s5 + $0x838] sm:$0xff]
        %v2502 = vld [vmem:[%s5 + $0x840] sm:$0xff]
        %v2503 = vld [vmem:[%s5 + $0x848] sm:$0xff]
        %v2504 = vld [vmem:[%s5 + $0x850] sm:$0xff]
        %v2505 = vld [vmem:[%s5 + $0x858] sm:$0xff]
        %v2506 = vld [vmem:[%s5 + $0x860] sm:$0xff]
        %v2507 = vld [vmem:[%s5 + $0x868] sm:$0xff]
        %v2508 = vld [vmem:[%s5 + $0x870] sm:$0xff]
        %v2509 = vld [vmem:[%s5 + $0x878] sm:$0xff]
        %v2510 = vld [vmem:[%s5 + $0x880] sm:$0xff]
        %v2511 = vld [vmem:[%s5 + $0x888] sm:$0xff]
        %v2512 = vld [vmem:[%s5 + $0x890] sm:$0xff]
        %v2513 = vld [vmem:[%s5 + $0x898] sm:$0xff]
        %v2514 = vld [vmem:[%s5 + $0x8a0] sm:$0xff]
        %v2515 = vld [vmem:[%s5 + $0x8a8] sm:$0xff]
        %v2516 = vld [vmem:[%s5 + $0x8b0] sm:$0xff]
        %v2517 = vld [vmem:[%s5 + $0x8b8] sm:$0xff]
        %v2518 = vld [vmem:[%s5 + $0x8c0] sm:$0xff]
        %v2519 = vld [vmem:[%s5 + $0x8c8] sm:$0xff]
        %v2520 = vld [vmem:[%s5 + $0x8d0] sm:$0xff]
        %v2521 = vld [vmem:[%s5 + $0x8d8] sm:$0xff]
        %v2522 = vld [vmem:[%s5 + $0x8e0] sm:$0xff]
        %v2523 = vld [vmem:[%s5 + $0x8e8] sm:$0xff]
        %v2524 = vld [vmem:[%s5 + $0x8f0] sm:$0xff]
        %v2525 = vld [vmem:[%s5 + $0x8f8] sm:$0xff]
        %v2526 = vld [vmem:[%s5 + $0x900] sm:$0xff]
        %v2527 = vld [vmem:[%s5 + $0x908] sm:$0xff]
        %v2528 = vld [vmem:[%s5 + $0x910] sm:$0xff]
        %v2529 = vld [vmem:[%s5 + $0x918] sm:$0xff]
        %v2530 = vld [vmem:[%s5 + $0x920] sm:$0xff]
        %v2531 = vld [vmem:[%s5 + $0x928] sm:$0xff]
        %v2532 = vld [vmem:[%s5 + $0x930] sm:$0xff]
        %v2533 = vld [vmem:[%s5 + $0x938] sm:$0xff]
        %v2534 = vld [vmem:[%s5 + $0x940] sm:$0xff]
        %v2535 = vld [vmem:[%s5 + $0x948] sm:$0xff]
        %v2536 = vld [vmem:[%s5 + $0x950] sm:$0xff]
        %v2537 = vld [vmem:[%s5 + $0x958] sm:$0xff]
        %v2538 = vld [vmem:[%s5 + $0x960] sm:$0xff]
        %v2539 = vld [vmem:[%s5 + $0x968] sm:$0xff]
        %v2540 = vld [vmem:[%s5 + $0x970] sm:$0xff]
        %v2541 = vld [vmem:[%s5 + $0x978] sm:$0xff]
        %v2542 = vld [vmem:[%s5 + $0x980] sm:$0xff]
        %v2543 = vld [vmem:[%s5 + $0x988] sm:$0xff]
        %v2544 = vld [vmem:[%s5 + $0x990] sm:$0xff]
        %v2545 = vld [vmem:[%s5 + $0x998] sm:$0xff]
        %v2546 = vld [vmem:[%s5 + $0x9a0] sm:$0xff]
        %v2547 = vld [vmem:[%s5 + $0x9a8] sm:$0xff]
        %v2548 = vld [vmem:[%s5 + $0x9b0] sm:$0xff]
        %v2549 = vld [vmem:[%s5 + $0x9b8] sm:$0xff]
        %v2550 = vld [vmem:[%s5 + $0x9c0] sm:$0xff]
        %v2551 = vld [vmem:[%s5 + $0x9c8] sm:$0xff]
        %v2552 = vld [vmem:[%s5 + $0x9d0] sm:$0xff]
        %v2553 = vld [vmem:[%s5 + $0x9d8] sm:$0xff]
        %v2554 = vld [vmem:[%s5 + $0x9e0] sm:$0xff]
        %v2555 = vld [vmem:[%s5 + $0x9e8] sm:$0xff]
        %v2556 = vld [vmem:[%s5 + $0x9f0] sm:$0xff]
        %v2557 = vld [vmem:[%s5 + $0x9f8] sm:$0xff]
        %v2558 = vld [vmem:[%s6] sm:$0xf]
        %v2879 = vunpack.c.l.b16 %v2238
        %v2880 = vunpack.c.h.b16 %v2238
        %v2881 = vunpack.c.l.b16 %v2239
        %v2882 = vunpack.c.h.b16 %v2239
        %v2883 = vunpack.c.l.b16 %v2240
        %v2884 = vunpack.c.h.b16 %v2240
        %v2885 = vunpack.c.l.b16 %v2241
        %v2886 = vunpack.c.h.b16 %v2241
        %v2887 = vunpack.c.l.b16 %v2242
        %v2888 = vunpack.c.h.b16 %v2242
        %v2889 = vunpack.c.l.b16 %v2243
        %v2890 = vunpack.c.h.b16 %v2243
        %v2891 = vunpack.c.l.b16 %v2244
        %v2892 = vunpack.c.h.b16 %v2244
        %v2893 = vunpack.c.l.b16 %v2245
        %v2894 = vunpack.c.h.b16 %v2245
        %v2895 = vunpack.c.l.b16 %v2246
        %v2896 = vunpack.c.h.b16 %v2246
        %v2897 = vunpack.c.l.b16 %v2247
        %v2898 = vunpack.c.h.b16 %v2247
        %v2899 = vunpack.c.l.b16 %v2248
        %v2900 = vunpack.c.h.b16 %v2248
        %v2901 = vunpack.c.l.b16 %v2249
        %v2902 = vunpack.c.h.b16 %v2249
        %v2903 = vunpack.c.l.b16 %v2250
        %v2904 = vunpack.c.h.b16 %v2250
        %v2905 = vunpack.c.l.b16 %v2251
        %v2906 = vunpack.c.h.b16 %v2251
        %v2907 = vunpack.c.l.b16 %v2252
        %v2908 = vunpack.c.h.b16 %v2252
        %v2909 = vunpack.c.l.b16 %v2253
        %v2910 = vunpack.c.h.b16 %v2253
        %v2911 = vunpack.c.l.b16 %v2254
        %v2912 = vunpack.c.h.b16 %v2254
        %v2913 = vunpack.c.l.b16 %v2255
        %v2914 = vunpack.c.h.b16 %v2255
        %v2915 = vunpack.c.l.b16 %v2256
        %v2916 = vunpack.c.h.b16 %v2256
        %v2917 = vunpack.c.l.b16 %v2257
        %v2918 = vunpack.c.h.b16 %v2257
        %v2919 = vunpack.c.l.b16 %v2258
        %v2920 = vunpack.c.h.b16 %v2258
        %v2921 = vunpack.c.l.b16 %v2259
        %v2922 = vunpack.c.h.b16 %v2259
        %v2923 = vunpack.c.l.b16 %v2260
        %v2924 = vunpack.c.h.b16 %v2260
        %v2925 = vunpack.c.l.b16 %v2261
        %v2926 = vunpack.c.h.b16 %v2261
        %v2927 = vunpack.c.l.b16 %v2262
        %v2928 = vunpack.c.h.b16 %v2262
        %v2929 = vunpack.c.l.b16 %v2263
        %v2930 = vunpack.c.h.b16 %v2263
        %v2931 = vunpack.c.l.b16 %v2264
        %v2932 = vunpack.c.h.b16 %v2264
        %v2933 = vunpack.c.l.b16 %v2265
        %v2934 = vunpack.c.h.b16 %v2265
        %v2935 = vunpack.c.l.b16 %v2266
        %v2936 = vunpack.c.h.b16 %v2266
        %v2937 = vunpack.c.l.b16 %v2267
        %v2938 = vunpack.c.h.b16 %v2267
        %v2939 = vunpack.c.l.b16 %v2268
        %v2940 = vunpack.c.h.b16 %v2268
        %v2941 = vunpack.c.l.b16 %v2269
        %v2942 = vunpack.c.h.b16 %v2269
        %v2943 = vunpack.c.l.b16 %v2270
        %v2944 = vunpack.c.h.b16 %v2270
        %v2945 = vunpack.c.l.b16 %v2271
        %v2946 = vunpack.c.h.b16 %v2271
        %v2947 = vunpack.c.l.b16 %v2272
        %v2948 = vunpack.c.h.b16 %v2272
        %v2949 = vunpack.c.l.b16 %v2273
        %v2950 = vunpack.c.h.b16 %v2273
        %v2951 = vunpack.c.l.b16 %v2274
        %v2952 = vunpack.c.h.b16 %v2274
        %v2953 = vunpack.c.l.b16 %v2275
        %v2954 = vunpack.c.h.b16 %v2275
        %v2955 = vunpack.c.l.b16 %v2276
        %v2956 = vunpack.c.h.b16 %v2276
        %v2957 = vunpack.c.l.b16 %v2277
        %v2958 = vunpack.c.h.b16 %v2277
        %v2959 = vunpack.c.l.b16 %v2278
        %v2960 = vunpack.c.h.b16 %v2278
        %v2961 = vunpack.c.l.b16 %v2279
        %v2962 = vunpack.c.h.b16 %v2279
        %v2963 = vunpack.c.l.b16 %v2280
        %v2964 = vunpack.c.h.b16 %v2280
        %v2965 = vunpack.c.l.b16 %v2281
        %v2966 = vunpack.c.h.b16 %v2281
        %v2967 = vunpack.c.l.b16 %v2282
        %v2968 = vunpack.c.h.b16 %v2282
        %v2969 = vunpack.c.l.b16 %v2283
        %v2970 = vunpack.c.h.b16 %v2283
        %v2971 = vunpack.c.l.b16 %v2284
        %v2972 = vunpack.c.h.b16 %v2284
        %v2973 = vunpack.c.l.b16 %v2285
        %v2974 = vunpack.c.h.b16 %v2285
        %v2975 = vunpack.c.l.b16 %v2286
        %v2976 = vunpack.c.h.b16 %v2286
        %v2977 = vunpack.c.l.b16 %v2287
        %v2978 = vunpack.c.h.b16 %v2287
        %v2979 = vunpack.c.l.b16 %v2288
        %v2980 = vunpack.c.h.b16 %v2288
        %v2981 = vunpack.c.l.b16 %v2289
        %v2982 = vunpack.c.h.b16 %v2289
        %v2983 = vunpack.c.l.b16 %v2290
        %v2984 = vunpack.c.h.b16 %v2290
        %v2985 = vunpack.c.l.b16 %v2291
        %v2986 = vunpack.c.h.b16 %v2291
        %v2987 = vunpack.c.l.b16 %v2292
        %v2988 = vunpack.c.h.b16 %v2292
        %v2989 = vunpack.c.l.b16 %v2293
        %v2990 = vunpack.c.h.b16 %v2293
        %v2991 = vunpack.c.l.b16 %v2294
        %v2992 = vunpack.c.h.b16 %v2294
        %v2993 = vunpack.c.l.b16 %v2295
        %v2994 = vunpack.c.h.b16 %v2295
        %v2995 = vunpack.c.l.b16 %v2296
        %v2996 = vunpack.c.h.b16 %v2296
        %v2997 = vunpack.c.l.b16 %v2297
        %v2998 = vunpack.c.h.b16 %v2297
        %v2999 = vunpack.c.l.b16 %v2298
        %v3000 = vunpack.c.h.b16 %v2298
        %v3001 = vunpack.c.l.b16 %v2299
        %v3002 = vunpack.c.h.b16 %v2299
        %v3003 = vunpack.c.l.b16 %v2300
        %v3004 = vunpack.c.h.b16 %v2300
        %v3005 = vunpack.c.l.b16 %v2301
        %v3006 = vunpack.c.h.b16 %v2301
        %v3007 = vunpack.c.l.b16 %v2302
        %v3008 = vunpack.c.h.b16 %v2302
        %v3009 = vunpack.c.l.b16 %v2303
        %v3010 = vunpack.c.h.b16 %v2303
        %v3011 = vunpack.c.l.b16 %v2304
        %v3012 = vunpack.c.h.b16 %v2304
        %v3013 = vunpack.c.l.b16 %v2305
        %v3014 = vunpack.c.h.b16 %v2305
        %v3015 = vunpack.c.l.b16 %v2306
        %v3016 = vunpack.c.h.b16 %v2306
        %v3017 = vunpack.c.l.b16 %v2307
        %v3018 = vunpack.c.h.b16 %v2307
        %v3019 = vunpack.c.l.b16 %v2308
        %v3020 = vunpack.c.h.b16 %v2308
        %v3021 = vunpack.c.l.b16 %v2309
        %v3022 = vunpack.c.h.b16 %v2309
        %v3023 = vunpack.c.l.b16 %v2310
        %v3024 = vunpack.c.h.b16 %v2310
        %v3025 = vunpack.c.l.b16 %v2311
        %v3026 = vunpack.c.h.b16 %v2311
        %v3027 = vunpack.c.l.b16 %v2312
        %v3028 = vunpack.c.h.b16 %v2312
        %v3029 = vunpack.c.l.b16 %v2313
        %v3030 = vunpack.c.h.b16 %v2313
        %v3031 = vunpack.c.l.b16 %v2314
        %v3032 = vunpack.c.h.b16 %v2314
        %v3033 = vunpack.c.l.b16 %v2315
        %v3034 = vunpack.c.h.b16 %v2315
        %v3035 = vunpack.c.l.b16 %v2316
        %v3036 = vunpack.c.h.b16 %v2316
        %v3037 = vunpack.c.l.b16 %v2317
        %v3038 = vunpack.c.h.b16 %v2317
        %v3039 = vunpack.c.l.b16 %v2318
        %v3040 = vunpack.c.h.b16 %v2318
        %v3041 = vunpack.c.l.b16 %v2319
        %v3042 = vunpack.c.h.b16 %v2319
        %v3043 = vunpack.c.l.b16 %v2320
        %v3044 = vunpack.c.h.b16 %v2320
        %v3045 = vunpack.c.l.b16 %v2321
        %v3046 = vunpack.c.h.b16 %v2321
        %v3047 = vunpack.c.l.b16 %v2322
        %v3048 = vunpack.c.h.b16 %v2322
        %v3049 = vunpack.c.l.b16 %v2323
        %v3050 = vunpack.c.h.b16 %v2323
        %v3051 = vunpack.c.l.b16 %v2324
        %v3052 = vunpack.c.h.b16 %v2324
        %v3053 = vunpack.c.l.b16 %v2325
        %v3054 = vunpack.c.h.b16 %v2325
        %v3055 = vunpack.c.l.b16 %v2326
        %v3056 = vunpack.c.h.b16 %v2326
        %v3057 = vunpack.c.l.b16 %v2327
        %v3058 = vunpack.c.h.b16 %v2327
        %v3059 = vunpack.c.l.b16 %v2328
        %v3060 = vunpack.c.h.b16 %v2328
        %v3061 = vunpack.c.l.b16 %v2329
        %v3062 = vunpack.c.h.b16 %v2329
        %v3063 = vunpack.c.l.b16 %v2330
        %v3064 = vunpack.c.h.b16 %v2330
        %v3065 = vunpack.c.l.b16 %v2331
        %v3066 = vunpack.c.h.b16 %v2331
        %v3067 = vunpack.c.l.b16 %v2332
        %v3068 = vunpack.c.h.b16 %v2332
        %v3069 = vunpack.c.l.b16 %v2333
        %v3070 = vunpack.c.h.b16 %v2333
        %v3071 = vunpack.c.l.b16 %v2334
        %v3072 = vunpack.c.h.b16 %v2334
        %v3073 = vunpack.c.l.b16 %v2335
        %v3074 = vunpack.c.h.b16 %v2335
        %v3075 = vunpack.c.l.b16 %v2336
        %v3076 = vunpack.c.h.b16 %v2336
        %v3077 = vunpack.c.l.b16 %v2337
        %v3078 = vunpack.c.h.b16 %v2337
        %v3079 = vunpack.c.l.b16 %v2338
        %v3080 = vunpack.c.h.b16 %v2338
        %v3081 = vunpack.c.l.b16 %v2339
        %v3082 = vunpack.c.h.b16 %v2339
        %v3083 = vunpack.c.l.b16 %v2340
        %v3084 = vunpack.c.h.b16 %v2340
        %v3085 = vunpack.c.l.b16 %v2341
        %v3086 = vunpack.c.h.b16 %v2341
        %v3087 = vunpack.c.l.b16 %v2342
        %v3088 = vunpack.c.h.b16 %v2342
        %v3089 = vunpack.c.l.b16 %v2343
        %v3090 = vunpack.c.h.b16 %v2343
        %v3091 = vunpack.c.l.b16 %v2344
        %v3092 = vunpack.c.h.b16 %v2344
        %v3093 = vunpack.c.l.b16 %v2345
        %v3094 = vunpack.c.h.b16 %v2345
        %v3095 = vunpack.c.l.b16 %v2346
        %v3096 = vunpack.c.h.b16 %v2346
        %v3097 = vunpack.c.l.b16 %v2347
        %v3098 = vunpack.c.h.b16 %v2347
        %v3099 = vunpack.c.l.b16 %v2348
        %v3100 = vunpack.c.h.b16 %v2348
        %v3101 = vunpack.c.l.b16 %v2349
        %v3102 = vunpack.c.h.b16 %v2349
        %v3103 = vunpack.c.l.b16 %v2350
        %v3104 = vunpack.c.h.b16 %v2350
        %v3105 = vunpack.c.l.b16 %v2351
        %v3106 = vunpack.c.h.b16 %v2351
        %v3107 = vunpack.c.l.b16 %v2352
        %v3108 = vunpack.c.h.b16 %v2352
        %v3109 = vunpack.c.l.b16 %v2353
        %v3110 = vunpack.c.h.b16 %v2353
        %v3111 = vunpack.c.l.b16 %v2354
        %v3112 = vunpack.c.h.b16 %v2354
        %v3113 = vunpack.c.l.b16 %v2355
        %v3114 = vunpack.c.h.b16 %v2355
        %v3115 = vunpack.c.l.b16 %v2356
        %v3116 = vunpack.c.h.b16 %v2356
        %v3117 = vunpack.c.l.b16 %v2357
        %v3118 = vunpack.c.h.b16 %v2357
        %v3119 = vunpack.c.l.b16 %v2358
        %v3120 = vunpack.c.h.b16 %v2358
        %v3121 = vunpack.c.l.b16 %v2359
        %v3122 = vunpack.c.h.b16 %v2359
        %v3123 = vunpack.c.l.b16 %v2360
        %v3124 = vunpack.c.h.b16 %v2360
        %v3125 = vunpack.c.l.b16 %v2361
        %v3126 = vunpack.c.h.b16 %v2361
        %v3127 = vunpack.c.l.b16 %v2362
        %v3128 = vunpack.c.h.b16 %v2362
        %v3129 = vunpack.c.l.b16 %v2363
        %v3130 = vunpack.c.h.b16 %v2363
        %v3131 = vunpack.c.l.b16 %v2364
        %v3132 = vunpack.c.h.b16 %v2364
        %v3133 = vunpack.c.l.b16 %v2365
        %v3134 = vunpack.c.h.b16 %v2365
        %v3135 = vunpack.c.l.b16 %v2366
        %v3136 = vunpack.c.h.b16 %v2366
        %v3137 = vunpack.c.l.b16 %v2367
        %v3138 = vunpack.c.h.b16 %v2367
        %v3139 = vunpack.c.l.b16 %v2368
        %v3140 = vunpack.c.h.b16 %v2368
        %v3141 = vunpack.c.l.b16 %v2369
        %v3142 = vunpack.c.h.b16 %v2369
        %v3143 = vunpack.c.l.b16 %v2370
        %v3144 = vunpack.c.h.b16 %v2370
        %v3145 = vunpack.c.l.b16 %v2371
        %v3146 = vunpack.c.h.b16 %v2371
        %v3147 = vunpack.c.l.b16 %v2372
        %v3148 = vunpack.c.h.b16 %v2372
        %v3149 = vunpack.c.l.b16 %v2373
        %v3150 = vunpack.c.h.b16 %v2373
        %v3151 = vunpack.c.l.b16 %v2374
        %v3152 = vunpack.c.h.b16 %v2374
        %v3153 = vunpack.c.l.b16 %v2375
        %v3154 = vunpack.c.h.b16 %v2375
        %v3155 = vunpack.c.l.b16 %v2376
        %v3156 = vunpack.c.h.b16 %v2376
        %v3157 = vunpack.c.l.b16 %v2377
        %v3158 = vunpack.c.h.b16 %v2377
        %v3159 = vunpack.c.l.b16 %v2378
        %v3160 = vunpack.c.h.b16 %v2378
        %v3161 = vunpack.c.l.b16 %v2379
        %v3162 = vunpack.c.h.b16 %v2379
        %v3163 = vunpack.c.l.b16 %v2380
        %v3164 = vunpack.c.h.b16 %v2380
        %v3165 = vunpack.c.l.b16 %v2381
        %v3166 = vunpack.c.h.b16 %v2381
        %v3167 = vunpack.c.l.b16 %v2382
        %v3168 = vunpack.c.h.b16 %v2382
        %v3169 = vunpack.c.l.b16 %v2383
        %v3170 = vunpack.c.h.b16 %v2383
        %v3171 = vunpack.c.l.b16 %v2384
        %v3172 = vunpack.c.h.b16 %v2384
        %v3173 = vunpack.c.l.b16 %v2385
        %v3174 = vunpack.c.h.b16 %v2385
        %v3175 = vunpack.c.l.b16 %v2386
        %v3176 = vunpack.c.h.b16 %v2386
        %v3177 = vunpack.c.l.b16 %v2387
        %v3178 = vunpack.c.h.b16 %v2387
        %v3179 = vunpack.c.l.b16 %v2388
        %v3180 = vunpack.c.h.b16 %v2388
        %v3181 = vunpack.c.l.b16 %v2389
        %v3182 = vunpack.c.h.b16 %v2389
        %v3183 = vunpack.c.l.b16 %v2390
        %v3184 = vunpack.c.h.b16 %v2390
        %v3185 = vunpack.c.l.b16 %v2391
        %v3186 = vunpack.c.h.b16 %v2391
        %v3187 = vunpack.c.l.b16 %v2392
        %v3188 = vunpack.c.h.b16 %v2392
        %v3189 = vunpack.c.l.b16 %v2393
        %v3190 = vunpack.c.h.b16 %v2393
        %v3191 = vunpack.c.l.b16 %v2394
        %v3192 = vunpack.c.h.b16 %v2394
        %v3193 = vunpack.c.l.b16 %v2395
        %v3194 = vunpack.c.h.b16 %v2395
        %v3195 = vunpack.c.l.b16 %v2396
        %v3196 = vunpack.c.h.b16 %v2396
        %v3197 = vunpack.c.l.b16 %v2397
        %v3198 = vunpack.c.h.b16 %v2397
        %v3199 = vunpack.c.l.b16 %v2398
        %v3200 = vunpack.c.h.b16 %v2398
        %v3201 = vunpack.c.l.b16 %v2399
        %v3202 = vunpack.c.h.b16 %v2399
        %v3203 = vunpack.c.l.b16 %v2400
        %v3204 = vunpack.c.h.b16 %v2400
        %v3205 = vunpack.c.l.b16 %v2401
        %v3206 = vunpack.c.h.b16 %v2401
        %v3207 = vunpack.c.l.b16 %v2402
        %v3208 = vunpack.c.h.b16 %v2402
        %v3209 = vunpack.c.l.b16 %v2403
        %v3210 = vunpack.c.h.b16 %v2403
        %v3211 = vunpack.c.l.b16 %v2404
        %v3212 = vunpack.c.h.b16 %v2404
        %v3213 = vunpack.c.l.b16 %v2405
        %v3214 = vunpack.c.h.b16 %v2405
        %v3215 = vunpack.c.l.b16 %v2406
        %v3216 = vunpack.c.h.b16 %v2406
        %v3217 = vunpack.c.l.b16 %v2407
        %v3218 = vunpack.c.h.b16 %v2407
        %v3219 = vunpack.c.l.b16 %v2408
        %v3220 = vunpack.c.h.b16 %v2408
        %v3221 = vunpack.c.l.b16 %v2409
        %v3222 = vunpack.c.h.b16 %v2409
        %v3223 = vunpack.c.l.b16 %v2410
        %v3224 = vunpack.c.h.b16 %v2410
        %v3225 = vunpack.c.l.b16 %v2411
        %v3226 = vunpack.c.h.b16 %v2411
        %v3227 = vunpack.c.l.b16 %v2412
        %v3228 = vunpack.c.h.b16 %v2412
        %v3229 = vunpack.c.l.b16 %v2413
        %v3230 = vunpack.c.h.b16 %v2413
        %v3231 = vunpack.c.l.b16 %v2414
        %v3232 = vunpack.c.h.b16 %v2414
        %v3233 = vunpack.c.l.b16 %v2415
        %v3234 = vunpack.c.h.b16 %v2415
        %v3235 = vunpack.c.l.b16 %v2416
        %v3236 = vunpack.c.h.b16 %v2416
        %v3237 = vunpack.c.l.b16 %v2417
        %v3238 = vunpack.c.h.b16 %v2417
        %v3239 = vunpack.c.l.b16 %v2418
        %v3240 = vunpack.c.h.b16 %v2418
        %v3241 = vunpack.c.l.b16 %v2419
        %v3242 = vunpack.c.h.b16 %v2419
        %v3243 = vunpack.c.l.b16 %v2420
        %v3244 = vunpack.c.h.b16 %v2420
        %v3245 = vunpack.c.l.b16 %v2421
        %v3246 = vunpack.c.h.b16 %v2421
        %v3247 = vunpack.c.l.b16 %v2422
        %v3248 = vunpack.c.h.b16 %v2422
        %v3249 = vunpack.c.l.b16 %v2423
        %v3250 = vunpack.c.h.b16 %v2423
        %v3251 = vunpack.c.l.b16 %v2424
        %v3252 = vunpack.c.h.b16 %v2424
        %v3253 = vunpack.c.l.b16 %v2425
        %v3254 = vunpack.c.h.b16 %v2425
        %v3255 = vunpack.c.l.b16 %v2426
        %v3256 = vunpack.c.h.b16 %v2426
        %v3257 = vunpack.c.l.b16 %v2427
        %v3258 = vunpack.c.h.b16 %v2427
        %v3259 = vunpack.c.l.b16 %v2428
        %v3260 = vunpack.c.h.b16 %v2428
        %v3261 = vunpack.c.l.b16 %v2429
        %v3262 = vunpack.c.h.b16 %v2429
        %v3263 = vunpack.c.l.b16 %v2430
        %v3264 = vunpack.c.h.b16 %v2430
        %v3265 = vunpack.c.l.b16 %v2431
        %v3266 = vunpack.c.h.b16 %v2431
        %v3267 = vunpack.c.l.b16 %v2432
        %v3268 = vunpack.c.h.b16 %v2432
        %v3269 = vunpack.c.l.b16 %v2433
        %v3270 = vunpack.c.h.b16 %v2433
        %v3271 = vunpack.c.l.b16 %v2434
        %v3272 = vunpack.c.h.b16 %v2434
        %v3273 = vunpack.c.l.b16 %v2435
        %v3274 = vunpack.c.h.b16 %v2435
        %v3275 = vunpack.c.l.b16 %v2436
        %v3276 = vunpack.c.h.b16 %v2436
        %v3277 = vunpack.c.l.b16 %v2437
        %v3278 = vunpack.c.h.b16 %v2437
        %v3279 = vunpack.c.l.b16 %v2438
        %v3280 = vunpack.c.h.b16 %v2438
        %v3281 = vunpack.c.l.b16 %v2439
        %v3282 = vunpack.c.h.b16 %v2439
        %v3283 = vunpack.c.l.b16 %v2440
        %v3284 = vunpack.c.h.b16 %v2440
        %v3285 = vunpack.c.l.b16 %v2441
        %v3286 = vunpack.c.h.b16 %v2441
        %v3287 = vunpack.c.l.b16 %v2442
        %v3288 = vunpack.c.h.b16 %v2442
        %v3289 = vunpack.c.l.b16 %v2443
        %v3290 = vunpack.c.h.b16 %v2443
        %v3291 = vunpack.c.l.b16 %v2444
        %v3292 = vunpack.c.h.b16 %v2444
        %v3293 = vunpack.c.l.b16 %v2445
        %v3294 = vunpack.c.h.b16 %v2445
        %v3295 = vunpack.c.l.b16 %v2446
        %v3296 = vunpack.c.h.b16 %v2446
        %v3297 = vunpack.c.l.b16 %v2447
        %v3298 = vunpack.c.h.b16 %v2447
        %v3299 = vunpack.c.l.b16 %v2448
        %v3300 = vunpack.c.h.b16 %v2448
        %v3301 = vunpack.c.l.b16 %v2449
        %v3302 = vunpack.c.h.b16 %v2449
        %v3303 = vunpack.c.l.b16 %v2450
        %v3304 = vunpack.c.h.b16 %v2450
        %v3305 = vunpack.c.l.b16 %v2451
        %v3306 = vunpack.c.h.b16 %v2451
        %v3307 = vunpack.c.l.b16 %v2452
        %v3308 = vunpack.c.h.b16 %v2452
        %v3309 = vunpack.c.l.b16 %v2453
        %v3310 = vunpack.c.h.b16 %v2453
        %v3311 = vunpack.c.l.b16 %v2454
        %v3312 = vunpack.c.h.b16 %v2454
        %v3313 = vunpack.c.l.b16 %v2455
        %v3314 = vunpack.c.h.b16 %v2455
        %v3315 = vunpack.c.l.b16 %v2456
        %v3316 = vunpack.c.h.b16 %v2456
        %v3317 = vunpack.c.l.b16 %v2457
        %v3318 = vunpack.c.h.b16 %v2457
        %v3319 = vunpack.c.l.b16 %v2458
        %v3320 = vunpack.c.h.b16 %v2458
        %v3321 = vunpack.c.l.b16 %v2459
        %v3322 = vunpack.c.h.b16 %v2459
        %v3323 = vunpack.c.l.b16 %v2460
        %v3324 = vunpack.c.h.b16 %v2460
        %v3325 = vunpack.c.l.b16 %v2461
        %v3326 = vunpack.c.h.b16 %v2461
        %v3327 = vunpack.c.l.b16 %v2462
        %v3328 = vunpack.c.h.b16 %v2462
        %v3329 = vunpack.c.l.b16 %v2463
        %v3330 = vunpack.c.h.b16 %v2463
        %v3331 = vunpack.c.l.b16 %v2464
        %v3332 = vunpack.c.h.b16 %v2464
        %v3333 = vunpack.c.l.b16 %v2465
        %v3334 = vunpack.c.h.b16 %v2465
        %v3335 = vunpack.c.l.b16 %v2466
        %v3336 = vunpack.c.h.b16 %v2466
        %v3337 = vunpack.c.l.b16 %v2467
        %v3338 = vunpack.c.h.b16 %v2467
        %v3339 = vunpack.c.l.b16 %v2468
        %v3340 = vunpack.c.h.b16 %v2468
        %v3341 = vunpack.c.l.b16 %v2469
        %v3342 = vunpack.c.h.b16 %v2469
        %v3343 = vunpack.c.l.b16 %v2470
        %v3344 = vunpack.c.h.b16 %v2470
        %v3345 = vunpack.c.l.b16 %v2471
        %v3346 = vunpack.c.h.b16 %v2471
        %v3347 = vunpack.c.l.b16 %v2472
        %v3348 = vunpack.c.h.b16 %v2472
        %v3349 = vunpack.c.l.b16 %v2473
        %v3350 = vunpack.c.h.b16 %v2473
        %v3351 = vunpack.c.l.b16 %v2474
        %v3352 = vunpack.c.h.b16 %v2474
        %v3353 = vunpack.c.l.b16 %v2475
        %v3354 = vunpack.c.h.b16 %v2475
        %v3355 = vunpack.c.l.b16 %v2476
        %v3356 = vunpack.c.h.b16 %v2476
        %v3357 = vunpack.c.l.b16 %v2477
        %v3358 = vunpack.c.h.b16 %v2477
        %v3359 = vunpack.c.l.b16 %v2478
        %v3360 = vunpack.c.h.b16 %v2478
        %v3361 = vunpack.c.l.b16 %v2479
        %v3362 = vunpack.c.h.b16 %v2479
        %v3363 = vunpack.c.l.b16 %v2480
        %v3364 = vunpack.c.h.b16 %v2480
        %v3365 = vunpack.c.l.b16 %v2481
        %v3366 = vunpack.c.h.b16 %v2481
        %v3367 = vunpack.c.l.b16 %v2482
        %v3368 = vunpack.c.h.b16 %v2482
        %v3369 = vunpack.c.l.b16 %v2483
        %v3370 = vunpack.c.h.b16 %v2483
        %v3371 = vunpack.c.l.b16 %v2484
        %v3372 = vunpack.c.h.b16 %v2484
        %v3373 = vunpack.c.l.b16 %v2485
        %v3374 = vunpack.c.h.b16 %v2485
        %v3375 = vunpack.c.l.b16 %v2486
        %v3376 = vunpack.c.h.b16 %v2486
        %v3377 = vunpack.c.l.b16 %v2487
        %v3378 = vunpack.c.h.b16 %v2487
        %v3379 = vunpack.c.l.b16 %v2488
        %v3380 = vunpack.c.h.b16 %v2488
        %v3381 = vunpack.c.l.b16 %v2489
        %v3382 = vunpack.c.h.b16 %v2489
        %v3383 = vunpack.c.l.b16 %v2490
        %v3384 = vunpack.c.h.b16 %v2490
        %v3385 = vunpack.c.l.b16 %v2491
        %v3386 = vunpack.c.h.b16 %v2491
        %v3387 = vunpack.c.l.b16 %v2492
        %v3388 = vunpack.c.h.b16 %v2492
        %v3389 = vunpack.c.l.b16 %v2493
        %v3390 = vunpack.c.h.b16 %v2493
        %v3391 = vunpack.c.l.b16 %v2494
        %v3392 = vunpack.c.h.b16 %v2494
        %v3393 = vunpack.c.l.b16 %v2495
        %v3394 = vunpack.c.h.b16 %v2495
        %v3395 = vunpack.c.l.b16 %v2496
        %v3396 = vunpack.c.h.b16 %v2496
        %v3397 = vunpack.c.l.b16 %v2497
        %v3398 = vunpack.c.h.b16 %v2497
        %v3399 = vunpack.c.l.b16 %v2498
        %v3400 = vunpack.c.h.b16 %v2498
        %v3401 = vunpack.c.l.b16 %v2499
        %v3402 = vunpack.c.h.b16 %v2499
        %v3403 = vunpack.c.l.b16 %v2500
        %v3404 = vunpack.c.h.b16 %v2500
        %v3405 = vunpack.c.l.b16 %v2501
        %v3406 = vunpack.c.h.b16 %v2501
        %v3407 = vunpack.c.l.b16 %v2502
        %v3408 = vunpack.c.h.b16 %v2502
        %v3409 = vunpack.c.l.b16 %v2503
        %v3410 = vunpack.c.h.b16 %v2503
        %v3411 = vunpack.c.l.b16 %v2504
        %v3412 = vunpack.c.h.b16 %v2504
        %v3413 = vunpack.c.l.b16 %v2505
        %v3414 = vunpack.c.h.b16 %v2505
        %v3415 = vunpack.c.l.b16 %v2506
        %v3416 = vunpack.c.h.b16 %v2506
        %v3417 = vunpack.c.l.b16 %v2507
        %v3418 = vunpack.c.h.b16 %v2507
        %v3419 = vunpack.c.l.b16 %v2508
        %v3420 = vunpack.c.h.b16 %v2508
        %v3421 = vunpack.c.l.b16 %v2509
        %v3422 = vunpack.c.h.b16 %v2509
        %v3423 = vunpack.c.l.b16 %v2510
        %v3424 = vunpack.c.h.b16 %v2510
        %v3425 = vunpack.c.l.b16 %v2511
        %v3426 = vunpack.c.h.b16 %v2511
        %v3427 = vunpack.c.l.b16 %v2512
        %v3428 = vunpack.c.h.b16 %v2512
        %v3429 = vunpack.c.l.b16 %v2513
        %v3430 = vunpack.c.h.b16 %v2513
        %v3431 = vunpack.c.l.b16 %v2514
        %v3432 = vunpack.c.h.b16 %v2514
        %v3433 = vunpack.c.l.b16 %v2515
        %v3434 = vunpack.c.h.b16 %v2515
        %v3435 = vunpack.c.l.b16 %v2516
        %v3436 = vunpack.c.h.b16 %v2516
        %v3437 = vunpack.c.l.b16 %v2517
        %v3438 = vunpack.c.h.b16 %v2517
        %v3439 = vunpack.c.l.b16 %v2518
        %v3440 = vunpack.c.h.b16 %v2518
        %v3441 = vunpack.c.l.b16 %v2519
        %v3442 = vunpack.c.h.b16 %v2519
        %v3443 = vunpack.c.l.b16 %v2520
        %v3444 = vunpack.c.h.b16 %v2520
        %v3445 = vunpack.c.l.b16 %v2521
        %v3446 = vunpack.c.h.b16 %v2521
        %v3447 = vunpack.c.l.b16 %v2522
        %v3448 = vunpack.c.h.b16 %v2522
        %v3449 = vunpack.c.l.b16 %v2523
        %v3450 = vunpack.c.h.b16 %v2523
        %v3451 = vunpack.c.l.b16 %v2524
        %v3452 = vunpack.c.h.b16 %v2524
        %v3453 = vunpack.c.l.b16 %v2525
        %v3454 = vunpack.c.h.b16 %v2525
        %v3455 = vunpack.c.l.b16 %v2526
        %v3456 = vunpack.c.h.b16 %v2526
        %v3457 = vunpack.c.l.b16 %v2527
        %v3458 = vunpack.c.h.b16 %v2527
        %v3459 = vunpack.c.l.b16 %v2528
        %v3460 = vunpack.c.h.b16 %v2528
        %v3461 = vunpack.c.l.b16 %v2529
        %v3462 = vunpack.c.h.b16 %v2529
        %v3463 = vunpack.c.l.b16 %v2530
        %v3464 = vunpack.c.h.b16 %v2530
        %v3465 = vunpack.c.l.b16 %v2531
        %v3466 = vunpack.c.h.b16 %v2531
        %v3467 = vunpack.c.l.b16 %v2532
        %v3468 = vunpack.c.h.b16 %v2532
        %v3469 = vunpack.c.l.b16 %v2533
        %v3470 = vunpack.c.h.b16 %v2533
        %v3471 = vunpack.c.l.b16 %v2534
        %v3472 = vunpack.c.h.b16 %v2534
        %v3473 = vunpack.c.l.b16 %v2535
        %v3474 = vunpack.c.h.b16 %v2535
        %v3475 = vunpack.c.l.b16 %v2536
        %v3476 = vunpack.c.h.b16 %v2536
        %v3477 = vunpack.c.l.b16 %v2537
        %v3478 = vunpack.c.h.b16 %v2537
        %v3479 = vunpack.c.l.b16 %v2538
        %v3480 = vunpack.c.h.b16 %v2538
        %v3481 = vunpack.c.l.b16 %v2539
        %v3482 = vunpack.c.h.b16 %v2539
        %v3483 = vunpack.c.l.b16 %v2540
        %v3484 = vunpack.c.h.b16 %v2540
        %v3485 = vunpack.c.l.b16 %v2541
        %v3486 = vunpack.c.h.b16 %v2541
        %v3487 = vunpack.c.l.b16 %v2542
        %v3488 = vunpack.c.h.b16 %v2542
        %v3489 = vunpack.c.l.b16 %v2543
        %v3490 = vunpack.c.h.b16 %v2543
        %v3491 = vunpack.c.l.b16 %v2544
        %v3492 = vunpack.c.h.b16 %v2544
        %v3493 = vunpack.c.l.b16 %v2545
        %v3494 = vunpack.c.h.b16 %v2545
        %v3495 = vunpack.c.l.b16 %v2546
        %v3496 = vunpack.c.h.b16 %v2546
        %v3497 = vunpack.c.l.b16 %v2547
        %v3498 = vunpack.c.h.b16 %v2547
        %v3499 = vunpack.c.l.b16 %v2548
        %v3500 = vunpack.c.h.b16 %v2548
        %v3501 = vunpack.c.l.b16 %v2549
        %v3502 = vunpack.c.h.b16 %v2549
        %v3503 = vunpack.c.l.b16 %v2550
        %v3504 = vunpack.c.h.b16 %v2550
        %v3505 = vunpack.c.l.b16 %v2551
        %v3506 = vunpack.c.h.b16 %v2551
        %v3507 = vunpack.c.l.b16 %v2552
        %v3508 = vunpack.c.h.b16 %v2552
        %v3509 = vunpack.c.l.b16 %v2553
        %v3510 = vunpack.c.h.b16 %v2553
        %v3511 = vunpack.c.l.b16 %v2554
        %v3512 = vunpack.c.h.b16 %v2554
        %v3513 = vunpack.c.l.b16 %v2555
        %v3514 = vunpack.c.h.b16 %v2555
        %v3515 = vunpack.c.l.b16 %v2556
        %v3516 = vunpack.c.h.b16 %v2556
        %v3517 = vunpack.c.l.b16 %v2557
        %v3518 = vunpack.c.h.b16 %v2557
        %v3519 = vpack.c.b16 %v2883, %v2879
        %v3520 = vpack.c.b16 %v2884, %v2880
        %v3521 = vpack.c.b16 %v2885, %v2881
        %v3522 = vpack.c.b16 %v2886, %v2882
        %v3523 = vpack.c.b16 %v2891, %v2887
        %v3524 = vpack.c.b16 %v2892, %v2888
        %v3525 = vpack.c.b16 %v2893, %v2889
        %v3526 = vpack.c.b16 %v2894, %v2890
        %v3527 = vpack.c.b16 %v2899, %v2895
        %v3528 = vpack.c.b16 %v2900, %v2896
        %v3529 = vpack.c.b16 %v2901, %v2897
        %v3530 = vpack.c.b16 %v2902, %v2898
        %v3531 = vpack.c.b16 %v2907, %v2903
        %v3532 = vpack.c.b16 %v2908, %v2904
        %v3533 = vpack.c.b16 %v2909, %v2905
        %v3534 = vpack.c.b16 %v2910, %v2906
        %v3535 = vpack.c.b16 %v2915, %v2911
        %v3536 = vpack.c.b16 %v2916, %v2912
        %v3537 = vpack.c.b16 %v2917, %v2913
        %v3538 = vpack.c.b16 %v2918, %v2914
        %v3539 = vpack.c.b16 %v2923, %v2919
        %v3540 = vpack.c.b16 %v2924, %v2920
        %v3541 = vpack.c.b16 %v2925, %v2921
        %v3542 = vpack.c.b16 %v2926, %v2922
        %v3543 = vpack.c.b16 %v2931, %v2927
        %v3544 = vpack.c.b16 %v2932, %v2928
        %v3545 = vpack.c.b16 %v2933, %v2929
        %v3546 = vpack.c.b16 %v2934, %v2930
        %v3547 = vpack.c.b16 %v2939, %v2935
        %v3548 = vpack.c.b16 %v2940, %v2936
        %v3549 = vpack.c.b16 %v2941, %v2937
        %v3550 = vpack.c.b16 %v2942, %v2938
        %v3551 = vpack.c.b16 %v2947, %v2943
        %v3552 = vpack.c.b16 %v2948, %v2944
        %v3553 = vpack.c.b16 %v2949, %v2945
        %v3554 = vpack.c.b16 %v2950, %v2946
        %v3555 = vpack.c.b16 %v2955, %v2951
        %v3556 = vpack.c.b16 %v2956, %v2952
        %v3557 = vpack.c.b16 %v2957, %v2953
        %v3558 = vpack.c.b16 %v2958, %v2954
        %v3559 = vpack.c.b16 %v2963, %v2959
        %v3560 = vpack.c.b16 %v2964, %v2960
        %v3561 = vpack.c.b16 %v2965, %v2961
        %v3562 = vpack.c.b16 %v2966, %v2962
        %v3563 = vpack.c.b16 %v2971, %v2967
        %v3564 = vpack.c.b16 %v2972, %v2968
        %v3565 = vpack.c.b16 %v2973, %v2969
        %v3566 = vpack.c.b16 %v2974, %v2970
        %v3567 = vpack.c.b16 %v2979, %v2975
        %v3568 = vpack.c.b16 %v2980, %v2976
        %v3569 = vpack.c.b16 %v2981, %v2977
        %v3570 = vpack.c.b16 %v2982, %v2978
        %v3571 = vpack.c.b16 %v2987, %v2983
        %v3572 = vpack.c.b16 %v2988, %v2984
        %v3573 = vpack.c.b16 %v2989, %v2985
        %v3574 = vpack.c.b16 %v2990, %v2986
        %v3575 = vpack.c.b16 %v2995, %v2991
        %v3576 = vpack.c.b16 %v2996, %v2992
        %v3577 = vpack.c.b16 %v2997, %v2993
        %v3578 = vpack.c.b16 %v2998, %v2994
        %v3579 = vpack.c.b16 %v3003, %v2999
        %v3580 = vpack.c.b16 %v3004, %v3000
        %v3581 = vpack.c.b16 %v3005, %v3001
        %v3582 = vpack.c.b16 %v3006, %v3002
        %v3583 = vpack.c.b16 %v3011, %v3007
        %v3584 = vpack.c.b16 %v3012, %v3008
        %v3585 = vpack.c.b16 %v3013, %v3009
        %v3586 = vpack.c.b16 %v3014, %v3010
        %v3587 = vpack.c.b16 %v3019, %v3015
        %v3588 = vpack.c.b16 %v3020, %v3016
        %v3589 = vpack.c.b16 %v3021, %v3017
        %v3590 = vpack.c.b16 %v3022, %v3018
        %v3591 = vpack.c.b16 %v3027, %v3023
        %v3592 = vpack.c.b16 %v3028, %v3024
        %v3593 = vpack.c.b16 %v3029, %v3025
        %v3594 = vpack.c.b16 %v3030, %v3026
        %v3595 = vpack.c.b16 %v3035, %v3031
        %v3596 = vpack.c.b16 %v3036, %v3032
        %v3597 = vpack.c.b16 %v3037, %v3033
        %v3598 = vpack.c.b16 %v3038, %v3034
        %v3599 = vpack.c.b16 %v3043, %v3039
        %v3600 = vpack.c.b16 %v3044, %v3040
        %v3601 = vpack.c.b16 %v3045, %v3041
        %v3602 = vpack.c.b16 %v3046, %v3042
        %v3603 = vpack.c.b16 %v3051, %v3047
        %v3604 = vpack.c.b16 %v3052, %v3048
        %v3605 = vpack.c.b16 %v3053, %v3049
        %v3606 = vpack.c.b16 %v3054, %v3050
        %v3607 = vpack.c.b16 %v3059, %v3055
        %v3608 = vpack.c.b16 %v3060, %v3056
        %v3609 = vpack.c.b16 %v3061, %v3057
        %v3610 = vpack.c.b16 %v3062, %v3058
        %v3611 = vpack.c.b16 %v3067, %v3063
        %v3612 = vpack.c.b16 %v3068, %v3064
        %v3613 = vpack.c.b16 %v3069, %v3065
        %v3614 = vpack.c.b16 %v3070, %v3066
        %v3615 = vpack.c.b16 %v3075, %v3071
        %v3616 = vpack.c.b16 %v3076, %v3072
        %v3617 = vpack.c.b16 %v3077, %v3073
        %v3618 = vpack.c.b16 %v3078, %v3074
        %v3619 = vpack.c.b16 %v3083, %v3079
        %v3620 = vpack.c.b16 %v3084, %v3080
        %v3621 = vpack.c.b16 %v3085, %v3081
        %v3622 = vpack.c.b16 %v3086, %v3082
        %v3623 = vpack.c.b16 %v3091, %v3087
        %v3624 = vpack.c.b16 %v3092, %v3088
        %v3625 = vpack.c.b16 %v3093, %v3089
        %v3626 = vpack.c.b16 %v3094, %v3090
        %v3627 = vpack.c.b16 %v3099, %v3095
        %v3628 = vpack.c.b16 %v3100, %v3096
        %v3629 = vpack.c.b16 %v3101, %v3097
        %v3630 = vpack.c.b16 %v3102, %v3098
        %v3631 = vpack.c.b16 %v3107, %v3103
        %v3632 = vpack.c.b16 %v3108, %v3104
        %v3633 = vpack.c.b16 %v3109, %v3105
        %v3634 = vpack.c.b16 %v3110, %v3106
        %v3635 = vpack.c.b16 %v3115, %v3111
        %v3636 = vpack.c.b16 %v3116, %v3112
        %v3637 = vpack.c.b16 %v3117, %v3113
        %v3638 = vpack.c.b16 %v3118, %v3114
        %v3639 = vpack.c.b16 %v3123, %v3119
        %v3640 = vpack.c.b16 %v3124, %v3120
        %v3641 = vpack.c.b16 %v3125, %v3121
        %v3642 = vpack.c.b16 %v3126, %v3122
        %v3643 = vpack.c.b16 %v3131, %v3127
        %v3644 = vpack.c.b16 %v3132, %v3128
        %v3645 = vpack.c.b16 %v3133, %v3129
        %v3646 = vpack.c.b16 %v3134, %v3130
        %v3647 = vpack.c.b16 %v3139, %v3135
        %v3648 = vpack.c.b16 %v3140, %v3136
        %v3649 = vpack.c.b16 %v3141, %v3137
        %v3650 = vpack.c.b16 %v3142, %v3138
        %v3651 = vpack.c.b16 %v3147, %v3143
        %v3652 = vpack.c.b16 %v3148, %v3144
        %v3653 = vpack.c.b16 %v3149, %v3145
        %v3654 = vpack.c.b16 %v3150, %v3146
        %v3655 = vpack.c.b16 %v3155, %v3151
        %v3656 = vpack.c.b16 %v3156, %v3152
        %v3657 = vpack.c.b16 %v3157, %v3153
        %v3658 = vpack.c.b16 %v3158, %v3154
        %v3659 = vpack.c.b16 %v3163, %v3159
        %v3660 = vpack.c.b16 %v3164, %v3160
        %v3661 = vpack.c.b16 %v3165, %v3161
        %v3662 = vpack.c.b16 %v3166, %v3162
        %v3663 = vpack.c.b16 %v3171, %v3167
        %v3664 = vpack.c.b16 %v3172, %v3168
        %v3665 = vpack.c.b16 %v3173, %v3169
        %v3666 = vpack.c.b16 %v3174, %v3170
        %v3667 = vpack.c.b16 %v3179, %v3175
        %v3668 = vpack.c.b16 %v3180, %v3176
        %v3669 = vpack.c.b16 %v3181, %v3177
        %v3670 = vpack.c.b16 %v3182, %v3178
        %v3671 = vpack.c.b16 %v3187, %v3183
        %v3672 = vpack.c.b16 %v3188, %v3184
        %v3673 = vpack.c.b16 %v3189, %v3185
        %v3674 = vpack.c.b16 %v3190, %v3186
        %v3675 = vpack.c.b16 %v3195, %v3191
        %v3676 = vpack.c.b16 %v3196, %v3192
        %v3677 = vpack.c.b16 %v3197, %v3193
        %v3678 = vpack.c.b16 %v3198, %v3194
        %v3679 = vpack.c.b16 %v3203, %v3199
        %v3680 = vpack.c.b16 %v3204, %v3200
        %v3681 = vpack.c.b16 %v3205, %v3201
        %v3682 = vpack.c.b16 %v3206, %v3202
        %v3683 = vpack.c.b16 %v3211, %v3207
        %v3684 = vpack.c.b16 %v3212, %v3208
        %v3685 = vpack.c.b16 %v3213, %v3209
        %v3686 = vpack.c.b16 %v3214, %v3210
        %v3687 = vpack.c.b16 %v3219, %v3215
        %v3688 = vpack.c.b16 %v3220, %v3216
        %v3689 = vpack.c.b16 %v3221, %v3217
        %v3690 = vpack.c.b16 %v3222, %v3218
        %v3691 = vpack.c.b16 %v3227, %v3223
        %v3692 = vpack.c.b16 %v3228, %v3224
        %v3693 = vpack.c.b16 %v3229, %v3225
        %v3694 = vpack.c.b16 %v3230, %v3226
        %v3695 = vpack.c.b16 %v3235, %v3231
        %v3696 = vpack.c.b16 %v3236, %v3232
        %v3697 = vpack.c.b16 %v3237, %v3233
        %v3698 = vpack.c.b16 %v3238, %v3234
        %v3699 = vpack.c.b16 %v3243, %v3239
        %v3700 = vpack.c.b16 %v3244, %v3240
        %v3701 = vpack.c.b16 %v3245, %v3241
        %v3702 = vpack.c.b16 %v3246, %v3242
        %v3703 = vpack.c.b16 %v3251, %v3247
        %v3704 = vpack.c.b16 %v3252, %v3248
        %v3705 = vpack.c.b16 %v3253, %v3249
        %v3706 = vpack.c.b16 %v3254, %v3250
        %v3707 = vpack.c.b16 %v3259, %v3255
        %v3708 = vpack.c.b16 %v3260, %v3256
        %v3709 = vpack.c.b16 %v3261, %v3257
        %v3710 = vpack.c.b16 %v3262, %v3258
        %v3711 = vpack.c.b16 %v3267, %v3263
        %v3712 = vpack.c.b16 %v3268, %v3264
        %v3713 = vpack.c.b16 %v3269, %v3265
        %v3714 = vpack.c.b16 %v3270, %v3266
        %v3715 = vpack.c.b16 %v3275, %v3271
        %v3716 = vpack.c.b16 %v3276, %v3272
        %v3717 = vpack.c.b16 %v3277, %v3273
        %v3718 = vpack.c.b16 %v3278, %v3274
        %v3719 = vpack.c.b16 %v3283, %v3279
        %v3720 = vpack.c.b16 %v3284, %v3280
        %v3721 = vpack.c.b16 %v3285, %v3281
        %v3722 = vpack.c.b16 %v3286, %v3282
        %v3723 = vpack.c.b16 %v3291, %v3287
        %v3724 = vpack.c.b16 %v3292, %v3288
        %v3725 = vpack.c.b16 %v3293, %v3289
        %v3726 = vpack.c.b16 %v3294, %v3290
        %v3727 = vpack.c.b16 %v3299, %v3295
        %v3728 = vpack.c.b16 %v3300, %v3296
        %v3729 = vpack.c.b16 %v3301, %v3297
        %v3730 = vpack.c.b16 %v3302, %v3298
        %v3731 = vpack.c.b16 %v3307, %v3303
        %v3732 = vpack.c.b16 %v3308, %v3304
        %v3733 = vpack.c.b16 %v3309, %v3305
        %v3734 = vpack.c.b16 %v3310, %v3306
        %v3735 = vpack.c.b16 %v3315, %v3311
        %v3736 = vpack.c.b16 %v3316, %v3312
        %v3737 = vpack.c.b16 %v3317, %v3313
        %v3738 = vpack.c.b16 %v3318, %v3314
        %v3739 = vpack.c.b16 %v3323, %v3319
        %v3740 = vpack.c.b16 %v3324, %v3320
        %v3741 = vpack.c.b16 %v3325, %v3321
        %v3742 = vpack.c.b16 %v3326, %v3322
        %v3743 = vpack.c.b16 %v3331, %v3327
        %v3744 = vpack.c.b16 %v3332, %v3328
        %v3745 = vpack.c.b16 %v3333, %v3329
        %v3746 = vpack.c.b16 %v3334, %v3330
        %v3747 = vpack.c.b16 %v3339, %v3335
        %v3748 = vpack.c.b16 %v3340, %v3336
        %v3749 = vpack.c.b16 %v3341, %v3337
        %v3750 = vpack.c.b16 %v3342, %v3338
        %v3751 = vpack.c.b16 %v3347, %v3343
        %v3752 = vpack.c.b16 %v3348, %v3344
        %v3753 = vpack.c.b16 %v3349, %v3345
        %v3754 = vpack.c.b16 %v3350, %v3346
        %v3755 = vpack.c.b16 %v3355, %v3351
        %v3756 = vpack.c.b16 %v3356, %v3352
        %v3757 = vpack.c.b16 %v3357, %v3353
        %v3758 = vpack.c.b16 %v3358, %v3354
        %v3759 = vpack.c.b16 %v3363, %v3359
        %v3760 = vpack.c.b16 %v3364, %v3360
        %v3761 = vpack.c.b16 %v3365, %v3361
        %v3762 = vpack.c.b16 %v3366, %v3362
        %v3763 = vpack.c.b16 %v3371, %v3367
        %v3764 = vpack.c.b16 %v3372, %v3368
        %v3765 = vpack.c.b16 %v3373, %v3369
        %v3766 = vpack.c.b16 %v3374, %v3370
        %v3767 = vpack.c.b16 %v3379, %v3375
        %v3768 = vpack.c.b16 %v3380, %v3376
        %v3769 = vpack.c.b16 %v3381, %v3377
        %v3770 = vpack.c.b16 %v3382, %v3378
        %v3771 = vpack.c.b16 %v3387, %v3383
        %v3772 = vpack.c.b16 %v3388, %v3384
        %v3773 = vpack.c.b16 %v3389, %v3385
        %v3774 = vpack.c.b16 %v3390, %v3386
        %v3775 = vpack.c.b16 %v3395, %v3391
        %v3776 = vpack.c.b16 %v3396, %v3392
        %v3777 = vpack.c.b16 %v3397, %v3393
        %v3778 = vpack.c.b16 %v3398, %v3394
        %v3779 = vpack.c.b16 %v3403, %v3399
        %v3780 = vpack.c.b16 %v3404, %v3400
        %v3781 = vpack.c.b16 %v3405, %v3401
        %v3782 = vpack.c.b16 %v3406, %v3402
        %v3783 = vpack.c.b16 %v3411, %v3407
        %v3784 = vpack.c.b16 %v3412, %v3408
        %v3785 = vpack.c.b16 %v3413, %v3409
        %v3786 = vpack.c.b16 %v3414, %v3410
        %v3787 = vpack.c.b16 %v3419, %v3415
        %v3788 = vpack.c.b16 %v3420, %v3416
        %v3789 = vpack.c.b16 %v3421, %v3417
        %v3790 = vpack.c.b16 %v3422, %v3418
        %v3791 = vpack.c.b16 %v3427, %v3423
        %v3792 = vpack.c.b16 %v3428, %v3424
        %v3793 = vpack.c.b16 %v3429, %v3425
        %v3794 = vpack.c.b16 %v3430, %v3426
        %v3795 = vpack.c.b16 %v3435, %v3431
        %v3796 = vpack.c.b16 %v3436, %v3432
        %v3797 = vpack.c.b16 %v3437, %v3433
        %v3798 = vpack.c.b16 %v3438, %v3434
        %v3799 = vpack.c.b16 %v3443, %v3439
        %v3800 = vpack.c.b16 %v3444, %v3440
        %v3801 = vpack.c.b16 %v3445, %v3441
        %v3802 = vpack.c.b16 %v3446, %v3442
        %v3803 = vpack.c.b16 %v3451, %v3447
        %v3804 = vpack.c.b16 %v3452, %v3448
        %v3805 = vpack.c.b16 %v3453, %v3449
        %v3806 = vpack.c.b16 %v3454, %v3450
        %v3807 = vpack.c.b16 %v3459, %v3455
        %v3808 = vpack.c.b16 %v3460, %v3456
        %v3809 = vpack.c.b16 %v3461, %v3457
        %v3810 = vpack.c.b16 %v3462, %v3458
        %v3811 = vpack.c.b16 %v3467, %v3463
        %v3812 = vpack.c.b16 %v3468, %v3464
        %v3813 = vpack.c.b16 %v3469, %v3465
        %v3814 = vpack.c.b16 %v3470, %v3466
        %v3815 = vpack.c.b16 %v3475, %v3471
        %v3816 = vpack.c.b16 %v3476, %v3472
        %v3817 = vpack.c.b16 %v3477, %v3473
        %v3818 = vpack.c.b16 %v3478, %v3474
        %v3819 = vpack.c.b16 %v3483, %v3479
        %v3820 = vpack.c.b16 %v3484, %v3480
        %v3821 = vpack.c.b16 %v3485, %v3481
        %v3822 = vpack.c.b16 %v3486, %v3482
        %v3823 = vpack.c.b16 %v3491, %v3487
        %v3824 = vpack.c.b16 %v3492, %v3488
        %v3825 = vpack.c.b16 %v3493, %v3489
        %v3826 = vpack.c.b16 %v3494, %v3490
        %v3827 = vpack.c.b16 %v3499, %v3495
        %v3828 = vpack.c.b16 %v3500, %v3496
        %v3829 = vpack.c.b16 %v3501, %v3497
        %v3830 = vpack.c.b16 %v3502, %v3498
        %v3831 = vpack.c.b16 %v3507, %v3503
        %v3832 = vpack.c.b16 %v3508, %v3504
        %v3833 = vpack.c.b16 %v3509, %v3505
        %v3834 = vpack.c.b16 %v3510, %v3506
        %v3835 = vpack.c.b16 %v3515, %v3511
        %v3836 = vpack.c.b16 %v3516, %v3512
        %v3837 = vpack.c.b16 %v3517, %v3513
        %v3838 = vpack.c.b16 %v3518, %v3514
        %v4160 = vlaneseq
        %v4161 = vshrl.u32 %v4160, 7
        %v4162 = vsub.s32 0, %v4161
        %v4163 = vrot.slane %v2558, %v4162
        %v4164 = vlaneseq
        %v4165 = vshrl.u32 %v4164, 7
        %v4166 = vsub.s32 1, %v4165
        %v4167 = vrot.slane %v2558, %v4166
        %v4168 = vlaneseq
        %v4169 = vshrl.u32 %v4168, 7
        %v4170 = vsub.s32 2, %v4169
        %v4171 = vrot.slane %v2558, %v4170
        %v4172 = vlaneseq
        %v4173 = vshrl.u32 %v4172, 7
        %v4174 = vsub.s32 3, %v4173
        %v4175 = vrot.slane %v2558, %v4174
        %4180 = vmatprep.subr.bf16.mxu0 %v3520
        %4181 = vmatpush1.bf16.msra.mxu0 %v3519
        %4182 = vmatprep.subr.bf16.mxu0 %v3524
        %4183 = vmatpush1.bf16.msra.mxu0 %v3523
        %4184 = vmatprep.subr.bf16.mxu0 %v3528
        %4185 = vmatpush1.bf16.msra.mxu0 %v3527
        %4186 = vmatprep.subr.bf16.mxu0 %v3532
        %4187 = vmatpush1.bf16.msra.mxu0 %v3531
        %4188 = vmatprep.subr.bf16.mxu0 %v3536
        %4189 = vmatpush1.bf16.msra.mxu0 %v3535
        %4190 = vmatprep.subr.bf16.mxu0 %v3540
        %4191 = vmatpush1.bf16.msra.mxu0 %v3539
        %4192 = vmatprep.subr.bf16.mxu0 %v3544
        %4193 = vmatpush1.bf16.msra.mxu0 %v3543
        %4194 = vmatprep.subr.bf16.mxu0 %v3548
        %4195 = vmatpush1.bf16.msra.mxu0 %v3547
        %4196 = vmatprep.subr.bf16.mxu0 %v3552
        %4197 = vmatpush1.bf16.msra.mxu0 %v3551
        %4198 = vmatprep.subr.bf16.mxu0 %v3556
        %4199 = vmatpush1.bf16.msra.mxu0 %v3555
        %4200 = vmatprep.subr.bf16.mxu0 %v3560
        %4201 = vmatpush1.bf16.msra.mxu0 %v3559
        %4202 = vmatprep.subr.bf16.mxu0 %v3564
        %4203 = vmatpush1.bf16.msra.mxu0 %v3563
        %4204 = vmatprep.subr.bf16.mxu0 %v3568
        %4205 = vmatpush1.bf16.msra.mxu0 %v3567
        %4206 = vmatprep.subr.bf16.mxu0 %v3572
        %4207 = vmatpush1.bf16.msra.mxu0 %v3571
        %4208 = vmatprep.subr.bf16.mxu0 %v3576
        %4209 = vmatpush1.bf16.msra.mxu0 %v3575
        %4210 = vmatprep.subr.bf16.mxu0 %v3580
        %4211 = vmatpush1.bf16.msra.mxu0 %v3579
        %4212 = vmatprep.mubr.bf16.mxu0 %v2229
        %4213 = vmatmul.mubr.bf16.gmra.mrb[0].mxu0 %v2228
        %v4214 = vpop.f32.mrb[0].mxu0
        %v4215 = vadd.f32 %v4163, %v4214
        %v4216 = vpop.f32.mrb[0].mxu0
        %v4217 = vadd.f32 %v4167, %v4216
        %v4218 = vpop.f32.mrb[0].mxu0
        %v4219 = vpop.f32.mrb[0].mxu0
        %4220 = vdwg.mxu0
        %4221 = vmatprep.subr.bf16.mxu0 %v3584
        %4222 = vmatpush1.bf16.msra.mxu0 %v3583
        %4223 = vmatprep.subr.bf16.mxu0 %v3588
        %4224 = vmatpush1.bf16.msra.mxu0 %v3587
        %4225 = vmatprep.subr.bf16.mxu0 %v3592
        %4226 = vmatpush1.bf16.msra.mxu0 %v3591
        %4227 = vmatprep.subr.bf16.mxu0 %v3596
        %4228 = vmatpush1.bf16.msra.mxu0 %v3595
        %4229 = vmatprep.subr.bf16.mxu0 %v3600
        %4230 = vmatpush1.bf16.msra.mxu0 %v3599
        %4231 = vmatprep.subr.bf16.mxu0 %v3604
        %4232 = vmatpush1.bf16.msra.mxu0 %v3603
        %4233 = vmatprep.subr.bf16.mxu0 %v3608
        %4234 = vmatpush1.bf16.msra.mxu0 %v3607
        %4235 = vmatprep.subr.bf16.mxu0 %v3612
        %4236 = vmatpush1.bf16.msra.mxu0 %v3611
        %4237 = vmatprep.subr.bf16.mxu0 %v3616
        %4238 = vmatpush1.bf16.msra.mxu0 %v3615
        %4239 = vmatprep.subr.bf16.mxu0 %v3620
        %4240 = vmatpush1.bf16.msra.mxu0 %v3619
        %4241 = vmatprep.subr.bf16.mxu0 %v3624
        %4242 = vmatpush1.bf16.msra.mxu0 %v3623
        %4243 = vmatprep.subr.bf16.mxu0 %v3628
        %4244 = vmatpush1.bf16.msra.mxu0 %v3627
        %4245 = vmatprep.subr.bf16.mxu0 %v3632
        %4246 = vmatpush1.bf16.msra.mxu0 %v3631
        %4247 = vmatprep.subr.bf16.mxu0 %v3636
        %4248 = vmatpush1.bf16.msra.mxu0 %v3635
        %4249 = vmatprep.subr.bf16.mxu0 %v3640
        %4250 = vmatpush1.bf16.msra.mxu0 %v3639
        %4251 = vmatprep.subr.bf16.mxu0 %v3644
        %4252 = vmatpush1.bf16.msra.mxu0 %v3643
        %4253 = vmatprep.mubr.bf16.mxu0 %v2231
        %4254 = vmatmul.mubr.bf16.gmra.mrb[0].mxu0 %v2230
        %v4255 = vpop.f32.mrb[0].mxu0
        %v4256 = vadd.f32 %v4215, %v4255
        %v4257 = vpop.f32.mrb[0].mxu0
        %v4258 = vadd.f32 %v4217, %v4257
        %v4259 = vpop.f32.mrb[0].mxu0
        %v4260 = vpop.f32.mrb[0].mxu0
        %4261 = vdwg.mxu0
        %4262 = vmatprep.subr.bf16.mxu0 %v3648
        %4263 = vmatpush1.bf16.msra.mxu0 %v3647
        %4264 = vmatprep.subr.bf16.mxu0 %v3652
        %4265 = vmatpush1.bf16.msra.mxu0 %v3651
        %4266 = vmatprep.subr.bf16.mxu0 %v3656
        %4267 = vmatpush1.bf16.msra.mxu0 %v3655
        %4268 = vmatprep.subr.bf16.mxu0 %v3660
        %4269 = vmatpush1.bf16.msra.mxu0 %v3659
        %4270 = vmatprep.subr.bf16.mxu0 %v3664
        %4271 = vmatpush1.bf16.msra.mxu0 %v3663
        %4272 = vmatprep.subr.bf16.mxu0 %v3668
        %4273 = vmatpush1.bf16.msra.mxu0 %v3667
        %4274 = vmatprep.subr.bf16.mxu0 %v3672
        %4275 = vmatpush1.bf16.msra.mxu0 %v3671
        %4276 = vmatprep.subr.bf16.mxu0 %v3676
        %4277 = vmatpush1.bf16.msra.mxu0 %v3675
        %4278 = vmatprep.subr.bf16.mxu0 %v3680
        %4279 = vmatpush1.bf16.msra.mxu0 %v3679
        %4280 = vmatprep.subr.bf16.mxu0 %v3684
        %4281 = vmatpush1.bf16.msra.mxu0 %v3683
        %4282 = vmatprep.subr.bf16.mxu0 %v3688
        %4283 = vmatpush1.bf16.msra.mxu0 %v3687
        %4284 = vmatprep.subr.bf16.mxu0 %v3692
        %4285 = vmatpush1.bf16.msra.mxu0 %v3691
        %4286 = vmatprep.subr.bf16.mxu0 %v3696
        %4287 = vmatpush1.bf16.msra.mxu0 %v3695
        %4288 = vmatprep.subr.bf16.mxu0 %v3700
        %4289 = vmatpush1.bf16.msra.mxu0 %v3699
        %4290 = vmatprep.subr.bf16.mxu0 %v3704
        %4291 = vmatpush1.bf16.msra.mxu0 %v3703
        %4292 = vmatprep.subr.bf16.mxu0 %v3708
        %4293 = vmatpush1.bf16.msra.mxu0 %v3707
        %4294 = vmatprep.mubr.bf16.mxu0 %v2233
        %4295 = vmatmul.mubr.bf16.gmra.mrb[0].mxu0 %v2232
        %v4296 = vpop.f32.mrb[0].mxu0
        %v4297 = vadd.f32 %v4256, %v4296
        %v4298 = vpop.f32.mrb[0].mxu0
        %v4299 = vadd.f32 %v4258, %v4298
        %v4300 = vpop.f32.mrb[0].mxu0
        %v4301 = vpop.f32.mrb[0].mxu0
        %4302 = vdwg.mxu0
        %4303 = vmatprep.subr.bf16.mxu0 %v3712
        %4304 = vmatpush1.bf16.msra.mxu0 %v3711
        %4305 = vmatprep.subr.bf16.mxu0 %v3716
        %4306 = vmatpush1.bf16.msra.mxu0 %v3715
        %4307 = vmatprep.subr.bf16.mxu0 %v3720
        %4308 = vmatpush1.bf16.msra.mxu0 %v3719
        %4309 = vmatprep.subr.bf16.mxu0 %v3724
        %4310 = vmatpush1.bf16.msra.mxu0 %v3723
        %4311 = vmatprep.subr.bf16.mxu0 %v3728
        %4312 = vmatpush1.bf16.msra.mxu0 %v3727
        %4313 = vmatprep.subr.bf16.mxu0 %v3732
        %4314 = vmatpush1.bf16.msra.mxu0 %v3731
        %4315 = vmatprep.subr.bf16.mxu0 %v3736
        %4316 = vmatpush1.bf16.msra.mxu0 %v3735
        %4317 = vmatprep.subr.bf16.mxu0 %v3740
        %4318 = vmatpush1.bf16.msra.mxu0 %v3739
        %4319 = vmatprep.subr.bf16.mxu0 %v3744
        %4320 = vmatpush1.bf16.msra.mxu0 %v3743
        %4321 = vmatprep.subr.bf16.mxu0 %v3748
        %4322 = vmatpush1.bf16.msra.mxu0 %v3747
        %4323 = vmatprep.subr.bf16.mxu0 %v3752
        %4324 = vmatpush1.bf16.msra.mxu0 %v3751
        %4325 = vmatprep.subr.bf16.mxu0 %v3756
        %4326 = vmatpush1.bf16.msra.mxu0 %v3755
        %4327 = vmatprep.subr.bf16.mxu0 %v3760
        %4328 = vmatpush1.bf16.msra.mxu0 %v3759
        %4329 = vmatprep.subr.bf16.mxu0 %v3764
        %4330 = vmatpush1.bf16.msra.mxu0 %v3763
        %4331 = vmatprep.subr.bf16.mxu0 %v3768
        %4332 = vmatpush1.bf16.msra.mxu0 %v3767
        %4333 = vmatprep.subr.bf16.mxu0 %v3772
        %4334 = vmatpush1.bf16.msra.mxu0 %v3771
        %4335 = vmatprep.mubr.bf16.mxu0 %v2235
        %4336 = vmatmul.mubr.bf16.gmra.mrb[0].mxu0 %v2234
        %v4337 = vpop.f32.mrb[0].mxu0
        %v4338 = vadd.f32 %v4297, %v4337
        %v4339 = vpop.f32.mrb[0].mxu0
        %v4340 = vadd.f32 %v4299, %v4339
        %v4341 = vpop.f32.mrb[0].mxu0
        %v4342 = vpop.f32.mrb[0].mxu0
        %4343 = vdwg.mxu0
        %4344 = vmatprep.subr.bf16.mxu0 %v3776
        %4345 = vmatpush1.bf16.msra.mxu0 %v3775
        %4346 = vmatprep.subr.bf16.mxu0 %v3780
        %4347 = vmatpush1.bf16.msra.mxu0 %v3779
        %4348 = vmatprep.subr.bf16.mxu0 %v3784
        %4349 = vmatpush1.bf16.msra.mxu0 %v3783
        %4350 = vmatprep.subr.bf16.mxu0 %v3788
        %4351 = vmatpush1.bf16.msra.mxu0 %v3787
        %4352 = vmatprep.subr.bf16.mxu0 %v3792
        %4353 = vmatpush1.bf16.msra.mxu0 %v3791
        %4354 = vmatprep.subr.bf16.mxu0 %v3796
        %4355 = vmatpush1.bf16.msra.mxu0 %v3795
        %4356 = vmatprep.subr.bf16.mxu0 %v3800
        %4357 = vmatpush1.bf16.msra.mxu0 %v3799
        %4358 = vmatprep.subr.bf16.mxu0 %v3804
        %4359 = vmatpush1.bf16.msra.mxu0 %v3803
        %4360 = vmatprep.subr.bf16.mxu0 %v3808
        %4361 = vmatpush1.bf16.msra.mxu0 %v3807
        %4362 = vmatprep.subr.bf16.mxu0 %v3812
        %4363 = vmatpush1.bf16.msra.mxu0 %v3811
        %4364 = vmatprep.subr.bf16.mxu0 %v3816
        %4365 = vmatpush1.bf16.msra.mxu0 %v3815
        %4366 = vmatprep.subr.bf16.mxu0 %v3820
        %4367 = vmatpush1.bf16.msra.mxu0 %v3819
        %4368 = vmatprep.subr.bf16.mxu0 %v3824
        %4369 = vmatpush1.bf16.msra.mxu0 %v3823
        %4370 = vmatprep.subr.bf16.mxu0 %v3828
        %4371 = vmatpush1.bf16.msra.mxu0 %v3827
        %4372 = vmatprep.subr.bf16.mxu0 %v3832
        %4373 = vmatpush1.bf16.msra.mxu0 %v3831
        %4374 = vmatprep.subr.bf16.mxu0 %v3836
        %4375 = vmatpush1.bf16.msra.mxu0 %v3835
        %4376 = vmatprep.mubr.bf16.mxu0 %v2237
        %4377 = vmatmul.mubr.bf16.gmra.mrb[0].mxu0 %v2236
        %v4378 = vpop.f32.mrb[0].mxu0
        %v4379 = vadd.f32 %v4338, %v4378
        %v4380 = vpop.f32.mrb[0].mxu0
        %v4381 = vadd.f32 %v4340, %v4380
        %v4382 = vpop.f32.mrb[0].mxu0
        %v4383 = vpop.f32.mrb[0].mxu0
        %4384 = vdwg.mxu0
        %4385 = vmatprep.subr.bf16.mxu0 %v3522
        %4386 = vmatpush1.bf16.msra.mxu0 %v3521
        %4387 = vmatprep.subr.bf16.mxu0 %v3526
        %4388 = vmatpush1.bf16.msra.mxu0 %v3525
        %4389 = vmatprep.subr.bf16.mxu0 %v3530
        %4390 = vmatpush1.bf16.msra.mxu0 %v3529
        %4391 = vmatprep.subr.bf16.mxu0 %v3534
        %4392 = vmatpush1.bf16.msra.mxu0 %v3533
        %4393 = vmatprep.subr.bf16.mxu0 %v3538
        %4394 = vmatpush1.bf16.msra.mxu0 %v3537
        %4395 = vmatprep.subr.bf16.mxu0 %v3542
        %4396 = vmatpush1.bf16.msra.mxu0 %v3541
        %4397 = vmatprep.subr.bf16.mxu0 %v3546
        %4398 = vmatpush1.bf16.msra.mxu0 %v3545
        %4399 = vmatprep.subr.bf16.mxu0 %v3550
        %4400 = vmatpush1.bf16.msra.mxu0 %v3549
        %4401 = vmatprep.subr.bf16.mxu0 %v3554
        %4402 = vmatpush1.bf16.msra.mxu0 %v3553
        %4403 = vmatprep.subr.bf16.mxu0 %v3558
        %4404 = vmatpush1.bf16.msra.mxu0 %v3557
        %4405 = vmatprep.subr.bf16.mxu0 %v3562
        %4406 = vmatpush1.bf16.msra.mxu0 %v3561
        %4407 = vmatprep.subr.bf16.mxu0 %v3566
        %4408 = vmatpush1.bf16.msra.mxu0 %v3565
        %4409 = vmatprep.subr.bf16.mxu0 %v3570
        %4410 = vmatpush1.bf16.msra.mxu0 %v3569
        %4411 = vmatprep.subr.bf16.mxu0 %v3574
        %4412 = vmatpush1.bf16.msra.mxu0 %v3573
        %4413 = vmatprep.subr.bf16.mxu0 %v3578
        %4414 = vmatpush1.bf16.msra.mxu0 %v3577
        %4415 = vmatprep.subr.bf16.mxu0 %v3582
        %4416 = vmatpush1.bf16.msra.mxu0 %v3581
        %4417 = vmatprep.mubr.bf16.mxu0 %v2229
        %4418 = vmatmul.mubr.bf16.gmra.mrb[0].mxu0 %v2228
        %v4419 = vpop.f32.mrb[0].mxu0
        %v4420 = vadd.f32 %v4171, %v4419
        %v4421 = vpop.f32.mrb[0].mxu0
        %v4422 = vadd.f32 %v4175, %v4421
        %v4423 = vpop.f32.mrb[0].mxu0
        %v4424 = vpop.f32.mrb[0].mxu0
        %4425 = vdwg.mxu0
        %4426 = vmatprep.subr.bf16.mxu0 %v3586
        %4427 = vmatpush1.bf16.msra.mxu0 %v3585
        %4428 = vmatprep.subr.bf16.mxu0 %v3590
        %4429 = vmatpush1.bf16.msra.mxu0 %v3589
        %4430 = vmatprep.subr.bf16.mxu0 %v3594
        %4431 = vmatpush1.bf16.msra.mxu0 %v3593
        %4432 = vmatprep.subr.bf16.mxu0 %v3598
        %4433 = vmatpush1.bf16.msra.mxu0 %v3597
        %4434 = vmatprep.subr.bf16.mxu0 %v3602
        %4435 = vmatpush1.bf16.msra.mxu0 %v3601
        %4436 = vmatprep.subr.bf16.mxu0 %v3606
        %4437 = vmatpush1.bf16.msra.mxu0 %v3605
        %4438 = vmatprep.subr.bf16.mxu0 %v3610
        %4439 = vmatpush1.bf16.msra.mxu0 %v3609
        %4440 = vmatprep.subr.bf16.mxu0 %v3614
        %4441 = vmatpush1.bf16.msra.mxu0 %v3613
        %4442 = vmatprep.subr.bf16.mxu0 %v3618
        %4443 = vmatpush1.bf16.msra.mxu0 %v3617
        %4444 = vmatprep.subr.bf16.mxu0 %v3622
        %4445 = vmatpush1.bf16.msra.mxu0 %v3621
        %4446 = vmatprep.subr.bf16.mxu0 %v3626
        %4447 = vmatpush1.bf16.msra.mxu0 %v3625
        %4448 = vmatprep.subr.bf16.mxu0 %v3630
        %4449 = vmatpush1.bf16.msra.mxu0 %v3629
        %4450 = vmatprep.subr.bf16.mxu0 %v3634
        %4451 = vmatpush1.bf16.msra.mxu0 %v3633
        %4452 = vmatprep.subr.bf16.mxu0 %v3638
        %4453 = vmatpush1.bf16.msra.mxu0 %v3637
        %4454 = vmatprep.subr.bf16.mxu0 %v3642
        %4455 = vmatpush1.bf16.msra.mxu0 %v3641
        %4456 = vmatprep.subr.bf16.mxu0 %v3646
        %4457 = vmatpush1.bf16.msra.mxu0 %v3645
        %4458 = vmatprep.mubr.bf16.mxu0 %v2231
        %4459 = vmatmul.mubr.bf16.gmra.mrb[0].mxu0 %v2230
        %v4460 = vpop.f32.mrb[0].mxu0
        %v4461 = vadd.f32 %v4420, %v4460
        %v4462 = vpop.f32.mrb[0].mxu0
        %v4463 = vadd.f32 %v4422, %v4462
        %v4464 = vpop.f32.mrb[0].mxu0
        %v4465 = vpop.f32.mrb[0].mxu0
        %4466 = vdwg.mxu0
        %4467 = vmatprep.subr.bf16.mxu0 %v3650
        %4468 = vmatpush1.bf16.msra.mxu0 %v3649
        %4469 = vmatprep.subr.bf16.mxu0 %v3654
        %4470 = vmatpush1.bf16.msra.mxu0 %v3653
        %4471 = vmatprep.subr.bf16.mxu0 %v3658
        %4472 = vmatpush1.bf16.msra.mxu0 %v3657
        %4473 = vmatprep.subr.bf16.mxu0 %v3662
        %4474 = vmatpush1.bf16.msra.mxu0 %v3661
        %4475 = vmatprep.subr.bf16.mxu0 %v3666
        %4476 = vmatpush1.bf16.msra.mxu0 %v3665
        %4477 = vmatprep.subr.bf16.mxu0 %v3670
        %4478 = vmatpush1.bf16.msra.mxu0 %v3669
        %4479 = vmatprep.subr.bf16.mxu0 %v3674
        %4480 = vmatpush1.bf16.msra.mxu0 %v3673
        %4481 = vmatprep.subr.bf16.mxu0 %v3678
        %4482 = vmatpush1.bf16.msra.mxu0 %v3677
        %4483 = vmatprep.subr.bf16.mxu0 %v3682
        %4484 = vmatpush1.bf16.msra.mxu0 %v3681
        %4485 = vmatprep.subr.bf16.mxu0 %v3686
        %4486 = vmatpush1.bf16.msra.mxu0 %v3685
        %4487 = vmatprep.subr.bf16.mxu0 %v3690
        %4488 = vmatpush1.bf16.msra.mxu0 %v3689
        %4489 = vmatprep.subr.bf16.mxu0 %v3694
        %4490 = vmatpush1.bf16.msra.mxu0 %v3693
        %4491 = vmatprep.subr.bf16.mxu0 %v3698
        %4492 = vmatpush1.bf16.msra.mxu0 %v3697
        %4493 = vmatprep.subr.bf16.mxu0 %v3702
        %4494 = vmatpush1.bf16.msra.mxu0 %v3701
        %4495 = vmatprep.subr.bf16.mxu0 %v3706
        %4496 = vmatpush1.bf16.msra.mxu0 %v3705
        %4497 = vmatprep.subr.bf16.mxu0 %v3710
        %4498 = vmatpush1.bf16.msra.mxu0 %v3709
        %4499 = vmatprep.mubr.bf16.mxu0 %v2233
        %4500 = vmatmul.mubr.bf16.gmra.mrb[0].mxu0 %v2232
        %v4501 = vpop.f32.mrb[0].mxu0
        %v4502 = vadd.f32 %v4461, %v4501
        %v4503 = vpop.f32.mrb[0].mxu0
        %v4504 = vadd.f32 %v4463, %v4503
        %v4505 = vpop.f32.mrb[0].mxu0
        %v4506 = vpop.f32.mrb[0].mxu0
        %4507 = vdwg.mxu0
        %4508 = vmatprep.subr.bf16.mxu0 %v3714
        %4509 = vmatpush1.bf16.msra.mxu0 %v3713
        %4510 = vmatprep.subr.bf16.mxu0 %v3718
        %4511 = vmatpush1.bf16.msra.mxu0 %v3717
        %4512 = vmatprep.subr.bf16.mxu0 %v3722
        %4513 = vmatpush1.bf16.msra.mxu0 %v3721
        %4514 = vmatprep.subr.bf16.mxu0 %v3726
        %4515 = vmatpush1.bf16.msra.mxu0 %v3725
        %4516 = vmatprep.subr.bf16.mxu0 %v3730
        %4517 = vmatpush1.bf16.msra.mxu0 %v3729
        %4518 = vmatprep.subr.bf16.mxu0 %v3734
        %4519 = vmatpush1.bf16.msra.mxu0 %v3733
        %4520 = vmatprep.subr.bf16.mxu0 %v3738
        %4521 = vmatpush1.bf16.msra.mxu0 %v3737
        %4522 = vmatprep.subr.bf16.mxu0 %v3742
        %4523 = vmatpush1.bf16.msra.mxu0 %v3741
        %4524 = vmatprep.subr.bf16.mxu0 %v3746
        %4525 = vmatpush1.bf16.msra.mxu0 %v3745
        %4526 = vmatprep.subr.bf16.mxu0 %v3750
        %4527 = vmatpush1.bf16.msra.mxu0 %v3749
        %4528 = vmatprep.subr.bf16.mxu0 %v3754
        %4529 = vmatpush1.bf16.msra.mxu0 %v3753
        %4530 = vmatprep.subr.bf16.mxu0 %v3758
        %4531 = vmatpush1.bf16.msra.mxu0 %v3757
        %4532 = vmatprep.subr.bf16.mxu0 %v3762
        %4533 = vmatpush1.bf16.msra.mxu0 %v3761
        %4534 = vmatprep.subr.bf16.mxu0 %v3766
        %4535 = vmatpush1.bf16.msra.mxu0 %v3765
        %4536 = vmatprep.subr.bf16.mxu0 %v3770
        %4537 = vmatpush1.bf16.msra.mxu0 %v3769
        %4538 = vmatprep.subr.bf16.mxu0 %v3774
        %4539 = vmatpush1.bf16.msra.mxu0 %v3773
        %4540 = vmatprep.mubr.bf16.mxu0 %v2235
        %4541 = vmatmul.mubr.bf16.gmra.mrb[0].mxu0 %v2234
        %v4542 = vpop.f32.mrb[0].mxu0
        %v4543 = vadd.f32 %v4502, %v4542
        %v4544 = vpop.f32.mrb[0].mxu0
        %v4545 = vadd.f32 %v4504, %v4544
        %v4546 = vpop.f32.mrb[0].mxu0
        %v4547 = vpop.f32.mrb[0].mxu0
        %4548 = vdwg.mxu0
        %4549 = vmatprep.subr.bf16.mxu0 %v3778
        %4550 = vmatpush1.bf16.msra.mxu0 %v3777
        %4551 = vmatprep.subr.bf16.mxu0 %v3782
        %4552 = vmatpush1.bf16.msra.mxu0 %v3781
        %4553 = vmatprep.subr.bf16.mxu0 %v3786
        %4554 = vmatpush1.bf16.msra.mxu0 %v3785
        %4555 = vmatprep.subr.bf16.mxu0 %v3790
        %4556 = vmatpush1.bf16.msra.mxu0 %v3789
        %4557 = vmatprep.subr.bf16.mxu0 %v3794
        %4558 = vmatpush1.bf16.msra.mxu0 %v3793
        %4559 = vmatprep.subr.bf16.mxu0 %v3798
        %4560 = vmatpush1.bf16.msra.mxu0 %v3797
        %4561 = vmatprep.subr.bf16.mxu0 %v3802
        %4562 = vmatpush1.bf16.msra.mxu0 %v3801
        %4563 = vmatprep.subr.bf16.mxu0 %v3806
        %4564 = vmatpush1.bf16.msra.mxu0 %v3805
        %4565 = vmatprep.subr.bf16.mxu0 %v3810
        %4566 = vmatpush1.bf16.msra.mxu0 %v3809
        %4567 = vmatprep.subr.bf16.mxu0 %v3814
        %4568 = vmatpush1.bf16.msra.mxu0 %v3813
        %4569 = vmatprep.subr.bf16.mxu0 %v3818
        %4570 = vmatpush1.bf16.msra.mxu0 %v3817
        %4571 = vmatprep.subr.bf16.mxu0 %v3822
        %4572 = vmatpush1.bf16.msra.mxu0 %v3821
        %4573 = vmatprep.subr.bf16.mxu0 %v3826
        %4574 = vmatpush1.bf16.msra.mxu0 %v3825
        %4575 = vmatprep.subr.bf16.mxu0 %v3830
        %4576 = vmatpush1.bf16.msra.mxu0 %v3829
        %4577 = vmatprep.subr.bf16.mxu0 %v3834
        %4578 = vmatpush1.bf16.msra.mxu0 %v3833
        %4579 = vmatprep.subr.bf16.mxu0 %v3838
        %4580 = vmatpush1.bf16.msra.mxu0 %v3837
        %4581 = vmatprep.mubr.bf16.mxu0 %v2237
        %4582 = vmatmul.mubr.bf16.gmra.mrb[0].mxu0 %v2236
        %v4583 = vpop.f32.mrb[0].mxu0
        %v4584 = vadd.f32 %v4543, %v4583
        %v4585 = vpop.f32.mrb[0].mxu0
        %v4586 = vadd.f32 %v4545, %v4585
        %v4587 = vpop.f32.mrb[0].mxu0
        %v4588 = vpop.f32.mrb[0].mxu0
        %4589 = vdwg.mxu0
        %v4590 = vpack.c.bf16 %v4379, %v4379
        %v4591 = vpack.c.bf16 %v4381, %v4381
        %v4592 = vpack.c.bf16 %v4584, %v4584
        %v4593 = vpack.c.bf16 %v4586, %v4586
        %v4594 = vld [vmem:[%s7] sm:$0xff]
        %v4595 = vld [vmem:[%s7 + $0x8] sm:$0xff]
        %v4596 = vld [vmem:[%s7 + $0x10] sm:$0xff]
        %v4597 = vld [vmem:[%s7 + $0x18] sm:$0xff]
        %v4598 = vld [vmem:[%s7 + $0x20] sm:$0xff]
        %v4599 = vld [vmem:[%s7 + $0x28] sm:$0xff]
        %v4600 = vld [vmem:[%s7 + $0x30] sm:$0xff]
        %v4601 = vld [vmem:[%s7 + $0x38] sm:$0xff]
        %v4602 = vld [vmem:[%s7 + $0x40] sm:$0xff]
        %v4603 = vld [vmem:[%s7 + $0x48] sm:$0xff]
        %v4604 = vld [vmem:[%s7 + $0x50] sm:$0xff]
        %v4605 = vld [vmem:[%s7 + $0x58] sm:$0xff]
        %v4606 = vld [vmem:[%s7 + $0x60] sm:$0xff]
        %v4607 = vld [vmem:[%s7 + $0x68] sm:$0xff]
        %v4608 = vld [vmem:[%s7 + $0x70] sm:$0xff]
        %v4609 = vld [vmem:[%s7 + $0x78] sm:$0xff]
        %v4610 = vld [vmem:[%s7 + $0x80] sm:$0xff]
        %v4611 = vld [vmem:[%s7 + $0x88] sm:$0xff]
        %v4612 = vld [vmem:[%s7 + $0x90] sm:$0xff]
        %v4613 = vld [vmem:[%s7 + $0x98] sm:$0xff]
        %v4614 = vld [vmem:[%s7 + $0xa0] sm:$0xff]
        %v4615 = vld [vmem:[%s7 + $0xa8] sm:$0xff]
        %v4616 = vld [vmem:[%s7 + $0xb0] sm:$0xff]
        %v4617 = vld [vmem:[%s7 + $0xb8] sm:$0xff]
        %v4618 = vld [vmem:[%s7 + $0xc0] sm:$0xff]
        %v4619 = vld [vmem:[%s7 + $0xc8] sm:$0xff]
        %v4620 = vld [vmem:[%s7 + $0xd0] sm:$0xff]
        %v4621 = vld [vmem:[%s7 + $0xd8] sm:$0xff]
        %v4622 = vld [vmem:[%s7 + $0xe0] sm:$0xff]
        %v4623 = vld [vmem:[%s7 + $0xe8] sm:$0xff]
        %v4624 = vld [vmem:[%s7 + $0xf0] sm:$0xff]
        %v4625 = vld [vmem:[%s7 + $0xf8] sm:$0xff]
        %v4626 = vld [vmem:[%s7 + $0x100] sm:$0xff]
        %v4627 = vld [vmem:[%s7 + $0x108] sm:$0xff]
        %v4628 = vld [vmem:[%s7 + $0x110] sm:$0xff]
        %v4629 = vld [vmem:[%s7 + $0x118] sm:$0xff]
        %v4630 = vld [vmem:[%s7 + $0x120] sm:$0xff]
        %v4631 = vld [vmem:[%s7 + $0x128] sm:$0xff]
        %v4632 = vld [vmem:[%s7 + $0x130] sm:$0xff]
        %v4633 = vld [vmem:[%s7 + $0x138] sm:$0xff]
        %v4634 = vld [vmem:[%s7 + $0x140] sm:$0xff]
        %v4635 = vld [vmem:[%s7 + $0x148] sm:$0xff]
        %v4636 = vld [vmem:[%s7 + $0x150] sm:$0xff]
        %v4637 = vld [vmem:[%s7 + $0x158] sm:$0xff]
        %v4638 = vld [vmem:[%s7 + $0x160] sm:$0xff]
        %v4639 = vld [vmem:[%s7 + $0x168] sm:$0xff]
        %v4640 = vld [vmem:[%s7 + $0x170] sm:$0xff]
        %v4641 = vld [vmem:[%s7 + $0x178] sm:$0xff]
        %v4642 = vld [vmem:[%s7 + $0x180] sm:$0xff]
        %v4643 = vld [vmem:[%s7 + $0x188] sm:$0xff]
        %v4644 = vld [vmem:[%s7 + $0x190] sm:$0xff]
        %v4645 = vld [vmem:[%s7 + $0x198] sm:$0xff]
        %v4646 = vld [vmem:[%s7 + $0x1a0] sm:$0xff]
        %v4647 = vld [vmem:[%s7 + $0x1a8] sm:$0xff]
        %v4648 = vld [vmem:[%s7 + $0x1b0] sm:$0xff]
        %v4649 = vld [vmem:[%s7 + $0x1b8] sm:$0xff]
        %v4650 = vld [vmem:[%s7 + $0x1c0] sm:$0xff]
        %v4651 = vld [vmem:[%s7 + $0x1c8] sm:$0xff]
        %v4652 = vld [vmem:[%s7 + $0x1d0] sm:$0xff]
        %v4653 = vld [vmem:[%s7 + $0x1d8] sm:$0xff]
        %v4654 = vld [vmem:[%s7 + $0x1e0] sm:$0xff]
        %v4655 = vld [vmem:[%s7 + $0x1e8] sm:$0xff]
        %v4656 = vld [vmem:[%s7 + $0x1f0] sm:$0xff]
        %v4657 = vld [vmem:[%s7 + $0x1f8] sm:$0xff]
        %v4658 = vld [vmem:[%s8] sm:$0x3]
        %v4723 = vunpack.c.l.b16 %v4594
        %v4724 = vunpack.c.h.b16 %v4594
        %v4725 = vunpack.c.l.b16 %v4595
        %v4726 = vunpack.c.h.b16 %v4595
        %v4727 = vunpack.c.l.b16 %v4596
        %v4728 = vunpack.c.h.b16 %v4596
        %v4729 = vunpack.c.l.b16 %v4597
        %v4730 = vunpack.c.h.b16 %v4597
        %v4731 = vunpack.c.l.b16 %v4598
        %v4732 = vunpack.c.h.b16 %v4598
        %v4733 = vunpack.c.l.b16 %v4599
        %v4734 = vunpack.c.h.b16 %v4599
        %v4735 = vunpack.c.l.b16 %v4600
        %v4736 = vunpack.c.h.b16 %v4600
        %v4737 = vunpack.c.l.b16 %v4601
        %v4738 = vunpack.c.h.b16 %v4601
        %v4739 = vunpack.c.l.b16 %v4602
        %v4740 = vunpack.c.h.b16 %v4602
        %v4741 = vunpack.c.l.b16 %v4603
        %v4742 = vunpack.c.h.b16 %v4603
        %v4743 = vunpack.c.l.b16 %v4604
        %v4744 = vunpack.c.h.b16 %v4604
        %v4745 = vunpack.c.l.b16 %v4605
        %v4746 = vunpack.c.h.b16 %v4605
        %v4747 = vunpack.c.l.b16 %v4606
        %v4748 = vunpack.c.h.b16 %v4606
        %v4749 = vunpack.c.l.b16 %v4607
        %v4750 = vunpack.c.h.b16 %v4607
        %v4751 = vunpack.c.l.b16 %v4608
        %v4752 = vunpack.c.h.b16 %v4608
        %v4753 = vunpack.c.l.b16 %v4609
        %v4754 = vunpack.c.h.b16 %v4609
        %v4755 = vunpack.c.l.b16 %v4610
        %v4756 = vunpack.c.h.b16 %v4610
        %v4757 = vunpack.c.l.b16 %v4611
        %v4758 = vunpack.c.h.b16 %v4611
        %v4759 = vunpack.c.l.b16 %v4612
        %v4760 = vunpack.c.h.b16 %v4612
        %v4761 = vunpack.c.l.b16 %v4613
        %v4762 = vunpack.c.h.b16 %v4613
        %v4763 = vunpack.c.l.b16 %v4614
        %v4764 = vunpack.c.h.b16 %v4614
        %v4765 = vunpack.c.l.b16 %v4615
        %v4766 = vunpack.c.h.b16 %v4615
        %v4767 = vunpack.c.l.b16 %v4616
        %v4768 = vunpack.c.h.b16 %v4616
        %v4769 = vunpack.c.l.b16 %v4617
        %v4770 = vunpack.c.h.b16 %v4617
        %v4771 = vunpack.c.l.b16 %v4618
        %v4772 = vunpack.c.h.b16 %v4618
        %v4773 = vunpack.c.l.b16 %v4619
        %v4774 = vunpack.c.h.b16 %v4619
        %v4775 = vunpack.c.l.b16 %v4620
        %v4776 = vunpack.c.h.b16 %v4620
        %v4777 = vunpack.c.l.b16 %v4621
        %v4778 = vunpack.c.h.b16 %v4621
        %v4779 = vunpack.c.l.b16 %v4622
        %v4780 = vunpack.c.h.b16 %v4622
        %v4781 = vunpack.c.l.b16 %v4623
        %v4782 = vunpack.c.h.b16 %v4623
        %v4783 = vunpack.c.l.b16 %v4624
        %v4784 = vunpack.c.h.b16 %v4624
        %v4785 = vunpack.c.l.b16 %v4625
        %v4786 = vunpack.c.h.b16 %v4625
        %v4787 = vunpack.c.l.b16 %v4626
        %v4788 = vunpack.c.h.b16 %v4626
        %v4789 = vunpack.c.l.b16 %v4627
        %v4790 = vunpack.c.h.b16 %v4627
        %v4791 = vunpack.c.l.b16 %v4628
        %v4792 = vunpack.c.h.b16 %v4628
        %v4793 = vunpack.c.l.b16 %v4629
        %v4794 = vunpack.c.h.b16 %v4629
        %v4795 = vunpack.c.l.b16 %v4630
        %v4796 = vunpack.c.h.b16 %v4630
        %v4797 = vunpack.c.l.b16 %v4631
        %v4798 = vunpack.c.h.b16 %v4631
        %v4799 = vunpack.c.l.b16 %v4632
        %v4800 = vunpack.c.h.b16 %v4632
        %v4801 = vunpack.c.l.b16 %v4633
        %v4802 = vunpack.c.h.b16 %v4633
        %v4803 = vunpack.c.l.b16 %v4634
        %v4804 = vunpack.c.h.b16 %v4634
        %v4805 = vunpack.c.l.b16 %v4635
        %v4806 = vunpack.c.h.b16 %v4635
        %v4807 = vunpack.c.l.b16 %v4636
        %v4808 = vunpack.c.h.b16 %v4636
        %v4809 = vunpack.c.l.b16 %v4637
        %v4810 = vunpack.c.h.b16 %v4637
        %v4811 = vunpack.c.l.b16 %v4638
        %v4812 = vunpack.c.h.b16 %v4638
        %v4813 = vunpack.c.l.b16 %v4639
        %v4814 = vunpack.c.h.b16 %v4639
        %v4815 = vunpack.c.l.b16 %v4640
        %v4816 = vunpack.c.h.b16 %v4640
        %v4817 = vunpack.c.l.b16 %v4641
        %v4818 = vunpack.c.h.b16 %v4641
        %v4819 = vunpack.c.l.b16 %v4642
        %v4820 = vunpack.c.h.b16 %v4642
        %v4821 = vunpack.c.l.b16 %v4643
        %v4822 = vunpack.c.h.b16 %v4643
        %v4823 = vunpack.c.l.b16 %v4644
        %v4824 = vunpack.c.h.b16 %v4644
        %v4825 = vunpack.c.l.b16 %v4645
        %v4826 = vunpack.c.h.b16 %v4645
        %v4827 = vunpack.c.l.b16 %v4646
        %v4828 = vunpack.c.h.b16 %v4646
        %v4829 = vunpack.c.l.b16 %v4647
        %v4830 = vunpack.c.h.b16 %v4647
        %v4831 = vunpack.c.l.b16 %v4648
        %v4832 = vunpack.c.h.b16 %v4648
        %v4833 = vunpack.c.l.b16 %v4649
        %v4834 = vunpack.c.h.b16 %v4649
        %v4835 = vunpack.c.l.b16 %v4650
        %v4836 = vunpack.c.h.b16 %v4650
        %v4837 = vunpack.c.l.b16 %v4651
        %v4838 = vunpack.c.h.b16 %v4651
        %v4839 = vunpack.c.l.b16 %v4652
        %v4840 = vunpack.c.h.b16 %v4652
        %v4841 = vunpack.c.l.b16 %v4653
        %v4842 = vunpack.c.h.b16 %v4653
        %v4843 = vunpack.c.l.b16 %v4654
        %v4844 = vunpack.c.h.b16 %v4654
        %v4845 = vunpack.c.l.b16 %v4655
        %v4846 = vunpack.c.h.b16 %v4655
        %v4847 = vunpack.c.l.b16 %v4656
        %v4848 = vunpack.c.h.b16 %v4656
        %v4849 = vunpack.c.l.b16 %v4657
        %v4850 = vunpack.c.h.b16 %v4657
        %v4851 = vpack.c.b16 %v4725, %v4723
        %v4852 = vpack.c.b16 %v4726, %v4724
        %v4853 = vpack.c.b16 %v4729, %v4727
        %v4854 = vpack.c.b16 %v4730, %v4728
        %v4855 = vpack.c.b16 %v4733, %v4731
        %v4856 = vpack.c.b16 %v4734, %v4732
        %v4857 = vpack.c.b16 %v4737, %v4735
        %v4858 = vpack.c.b16 %v4738, %v4736
        %v4859 = vpack.c.b16 %v4741, %v4739
        %v4860 = vpack.c.b16 %v4742, %v4740
        %v4861 = vpack.c.b16 %v4745, %v4743
        %v4862 = vpack.c.b16 %v4746, %v4744
        %v4863 = vpack.c.b16 %v4749, %v4747
        %v4864 = vpack.c.b16 %v4750, %v4748
        %v4865 = vpack.c.b16 %v4753, %v4751
        %v4866 = vpack.c.b16 %v4754, %v4752
        %v4867 = vpack.c.b16 %v4757, %v4755
        %v4868 = vpack.c.b16 %v4758, %v4756
        %v4869 = vpack.c.b16 %v4761, %v4759
        %v4870 = vpack.c.b16 %v4762, %v4760
        %v4871 = vpack.c.b16 %v4765, %v4763
        %v4872 = vpack.c.b16 %v4766, %v4764
        %v4873 = vpack.c.b16 %v4769, %v4767
        %v4874 = vpack.c.b16 %v4770, %v4768
        %v4875 = vpack.c.b16 %v4773, %v4771
        %v4876 = vpack.c.b16 %v4774, %v4772
        %v4877 = vpack.c.b16 %v4777, %v4775
        %v4878 = vpack.c.b16 %v4778, %v4776
        %v4879 = vpack.c.b16 %v4781, %v4779
        %v4880 = vpack.c.b16 %v4782, %v4780
        %v4881 = vpack.c.b16 %v4785, %v4783
        %v4882 = vpack.c.b16 %v4786, %v4784
        %v4883 = vpack.c.b16 %v4789, %v4787
        %v4884 = vpack.c.b16 %v4790, %v4788
        %v4885 = vpack.c.b16 %v4793, %v4791
        %v4886 = vpack.c.b16 %v4794, %v4792
        %v4887 = vpack.c.b16 %v4797, %v4795
        %v4888 = vpack.c.b16 %v4798, %v4796
        %v4889 = vpack.c.b16 %v4801, %v4799
        %v4890 = vpack.c.b16 %v4802, %v4800
        %v4891 = vpack.c.b16 %v4805, %v4803
        %v4892 = vpack.c.b16 %v4806, %v4804
        %v4893 = vpack.c.b16 %v4809, %v4807
        %v4894 = vpack.c.b16 %v4810, %v4808
        %v4895 = vpack.c.b16 %v4813, %v4811
        %v4896 = vpack.c.b16 %v4814, %v4812
        %v4897 = vpack.c.b16 %v4817, %v4815
        %v4898 = vpack.c.b16 %v4818, %v4816
        %v4899 = vpack.c.b16 %v4821, %v4819
        %v4900 = vpack.c.b16 %v4822, %v4820
        %v4901 = vpack.c.b16 %v4825, %v4823
        %v4902 = vpack.c.b16 %v4826, %v4824
        %v4903 = vpack.c.b16 %v4829, %v4827
        %v4904 = vpack.c.b16 %v4830, %v4828
        %v4905 = vpack.c.b16 %v4833, %v4831
        %v4906 = vpack.c.b16 %v4834, %v4832
        %v4907 = vpack.c.b16 %v4837, %v4835
        %v4908 = vpack.c.b16 %v4838, %v4836
        %v4909 = vpack.c.b16 %v4841, %v4839
        %v4910 = vpack.c.b16 %v4842, %v4840
        %v4911 = vpack.c.b16 %v4845, %v4843
        %v4912 = vpack.c.b16 %v4846, %v4844
        %v4913 = vpack.c.b16 %v4849, %v4847
        %v4914 = vpack.c.b16 %v4850, %v4848
        %v4980 = vlaneseq
        %v4981 = vshrl.u32 %v4980, 7
        %v4982 = vsub.s32 0, %v4981
        %v4983 = vrot.slane %v4658, %v4982
        %v4984 = vlaneseq
        %v4985 = vshrl.u32 %v4984, 7
        %v4986 = vsub.s32 1, %v4985
        %v4987 = vrot.slane %v4658, %v4986
        %4990 = vmatprep.subr.bf16.mxu0 %v4852
        %4991 = vmatpush1.bf16.msra.mxu0 %v4851
        %4992 = vmatprep.subr.bf16.mxu0 %v4854
        %4993 = vmatpush1.bf16.msra.mxu0 %v4853
        %4994 = vmatprep.subr.bf16.mxu0 %v4856
        %4995 = vmatpush1.bf16.msra.mxu0 %v4855
        %4996 = vmatprep.subr.bf16.mxu0 %v4858
        %4997 = vmatpush1.bf16.msra.mxu0 %v4857
        %4998 = vmatprep.subr.bf16.mxu0 %v4860
        %4999 = vmatpush1.bf16.msra.mxu0 %v4859
        %5000 = vmatprep.subr.bf16.mxu0 %v4862
        %5001 = vmatpush1.bf16.msra.mxu0 %v4861
        %5002 = vmatprep.subr.bf16.mxu0 %v4864
        %5003 = vmatpush1.bf16.msra.mxu0 %v4863
        %5004 = vmatprep.subr.bf16.mxu0 %v4866
        %5005 = vmatpush1.bf16.msra.mxu0 %v4865
        %5006 = vmatprep.subr.bf16.mxu0 %v4868
        %5007 = vmatpush1.bf16.msra.mxu0 %v4867
        %5008 = vmatprep.subr.bf16.mxu0 %v4870
        %5009 = vmatpush1.bf16.msra.mxu0 %v4869
        %5010 = vmatprep.subr.bf16.mxu0 %v4872
        %5011 = vmatpush1.bf16.msra.mxu0 %v4871
        %5012 = vmatprep.subr.bf16.mxu0 %v4874
        %5013 = vmatpush1.bf16.msra.mxu0 %v4873
        %5014 = vmatprep.subr.bf16.mxu0 %v4876
        %5015 = vmatpush1.bf16.msra.mxu0 %v4875
        %5016 = vmatprep.subr.bf16.mxu0 %v4878
        %5017 = vmatpush1.bf16.msra.mxu0 %v4877
        %5018 = vmatprep.subr.bf16.mxu0 %v4880
        %5019 = vmatpush1.bf16.msra.mxu0 %v4879
        %5020 = vmatprep.subr.bf16.mxu0 %v4882
        %5021 = vmatpush1.bf16.msra.mxu0 %v4881
        %5022 = vmatprep.mubr.bf16.mxu0 %v4591
        %5023 = vmatmul.mubr.bf16.gmra.mrb[0].mxu0 %v4590
        %v5024 = vpop.f32.mrb[0].mxu0
        %v5025 = vadd.f32 %v4983, %v5024
        %v5026 = vpop.f32.mrb[0].mxu0
        %v5027 = vadd.f32 %v4987, %v5026
        %v5028 = vpop.f32.mrb[0].mxu0
        %v5029 = vpop.f32.mrb[0].mxu0
        %5030 = vdwg.mxu0
        %5031 = vmatprep.subr.bf16.mxu0 %v4884
        %5032 = vmatpush1.bf16.msra.mxu0 %v4883
        %5033 = vmatprep.subr.bf16.mxu0 %v4886
        %5034 = vmatpush1.bf16.msra.mxu0 %v4885
        %5035 = vmatprep.subr.bf16.mxu0 %v4888
        %5036 = vmatpush1.bf16.msra.mxu0 %v4887
        %5037 = vmatprep.subr.bf16.mxu0 %v4890
        %5038 = vmatpush1.bf16.msra.mxu0 %v4889
        %5039 = vmatprep.subr.bf16.mxu0 %v4892
        %5040 = vmatpush1.bf16.msra.mxu0 %v4891
        %5041 = vmatprep.subr.bf16.mxu0 %v4894
        %5042 = vmatpush1.bf16.msra.mxu0 %v4893
        %5043 = vmatprep.subr.bf16.mxu0 %v4896
        %5044 = vmatpush1.bf16.msra.mxu0 %v4895
        %5045 = vmatprep.subr.bf16.mxu0 %v4898
        %5046 = vmatpush1.bf16.msra.mxu0 %v4897
        %5047 = vmatprep.subr.bf16.mxu0 %v4900
        %5048 = vmatpush1.bf16.msra.mxu0 %v4899
        %5049 = vmatprep.subr.bf16.mxu0 %v4902
        %5050 = vmatpush1.bf16.msra.mxu0 %v4901
        %5051 = vmatprep.subr.bf16.mxu0 %v4904
        %5052 = vmatpush1.bf16.msra.mxu0 %v4903
        %5053 = vmatprep.subr.bf16.mxu0 %v4906
        %5054 = vmatpush1.bf16.msra.mxu0 %v4905
        %5055 = vmatprep.subr.bf16.mxu0 %v4908
        %5056 = vmatpush1.bf16.msra.mxu0 %v4907
        %5057 = vmatprep.subr.bf16.mxu0 %v4910
        %5058 = vmatpush1.bf16.msra.mxu0 %v4909
        %5059 = vmatprep.subr.bf16.mxu0 %v4912
        %5060 = vmatpush1.bf16.msra.mxu0 %v4911
        %5061 = vmatprep.subr.bf16.mxu0 %v4914
        %5062 = vmatpush1.bf16.msra.mxu0 %v4913
        %5063 = vmatprep.mubr.bf16.mxu0 %v4593
        %5064 = vmatmul.mubr.bf16.gmra.mrb[0].mxu0 %v4592
        %v5065 = vpop.f32.mrb[0].mxu0
        %v5066 = vadd.f32 %v5025, %v5065
        %v5067 = vpop.f32.mrb[0].mxu0
        %v5068 = vadd.f32 %v5027, %v5067
        %v5069 = vpop.f32.mrb[0].mxu0
        %v5070 = vpop.f32.mrb[0].mxu0
        %5071 = vdwg.mxu0
        %v5072 = vmax.f32 %v5066, 0.0
        %v5073 = vmax.f32 %v5068, 0.0
        %v5074 = vld [vmem:[%s9] sm:$0x3]
        %v5076 = vlaneseq
        %v5077 = vshrl.u32 %v5076, 7
        %v5078 = vsub.s32 0, %v5077
        %v5079 = vrot.slane %v5074, %v5078
        %v5080 = vlaneseq
        %v5081 = vshrl.u32 %v5080, 7
        %v5082 = vsub.s32 1, %v5081
        %v5083 = vrot.slane %v5074, %v5082
        %v5086 = vmul.f32 %v5072, %v5079
        %v5087 = vmul.f32 %v5073, %v5083
        %vm5088 = vcmask 1040384
        %v5089 = vsel %vm5088, %v5086, 0.0
        %v5090 = vsel %vm5088, %v5087, 0.0
        %v5091 = vadd.f32 %v5089, %v5090
        %5092 = vadd.xlane.f32.xlu0 %v5091
        %v5093 = vpop.xlane.xlu0 %5092
        %v5094 = vld [vmem:[#allocation3] sm:$0x1]
        %v5095 = vadd.f32 %v5093, %v5094
        %v5096 = vxor.u32 %v5095, 2147483648
        %v5097 = vmul.f32 %v5096, 1.442695
        %v5098 = vpow.pop %v5097
        %v5099 = vadd.f32 %v5098, 1.0
        %v5100 = vrcp.pop %v5099
        %v5101 = vmul.f32 1.0, %v5100
        %vm5102 = vcmask 0
        %5103 = vst.msk [vmem:[%s412] sm:$0x1] %vm5102, %v5101
      $region72: #{me621_forward.1} parent=63 // pred_fallthru
        _
      %p5104 = scmp.lt.s32.totalorder %s28, 1
      %s5105 = scalar_select %p5104, %s28, 1
      %s5106 = scalar_lea.vmem %s11, %s5105
      // Predicated region
      $region73: #{me621_forward.1} parent=63 // pred_check
        %p5107 = pneg %p292
      $region74: #{me621_forward.1} parent=63 // pred_check_branch
        %5109 = sbr.rel (%p5107) target = $region76
      $region75: #{me621_forward.1} parent=63 // pred_region
        _
      $region76: #{me621_forward.1} parent=63 // pred_fallthru
        _
    $region64: #{me621_forward.1} parent=5 // pred_fallthru
      _
    %p5110 = scmp.le.s32.totalorder 2, %s19
    // Predicated region
    $region77: #{me621_forward.1} parent=5 // pred_check
      %p5111 = pneg %p5110
    $region78: #{me621_forward.1} parent=5 // pred_check_branch
      %5113 = sbr.rel (%p5111) target = $region80
    $region79: #{me621_forward.1} parent=5 // pred_region
      %s5114 = ssub.s32 %s19, 2
      // Predicated region
      $region81: #{me621_forward.1} parent=79 // pred_check
        %p5115 = pneg %p298
      $region82: #{me621_forward.1} parent=79 // pred_check_branch
        %5117 = sbr.rel (%p5115) target = $region84
      $region83: #{me621_forward.1} parent=79 // pred_region
        %p5118 = scmp.lt.s32.totalorder %s30, 1
        %s5119 = scalar_select %p5118, %s30, 1
        %s5120 = scalar_lea.vmem %s11, %s5119
      $region84: #{me621_forward.1} parent=79 // pred_fallthru
        _
    $region80: #{me621_forward.1} parent=5 // pred_fallthru
      _
  $region6: #{me621_forward.1} parent=0 // loop_footer
    %s23 = sadd.s32 1, %s19
  $region7: #{me621_forward.1} parent=0 // loop_footer_branch
    %18 = sbr.rel target = $region3
  $region8: #{me621_forward.1} parent=0 // loop_exit
    _

</llo_original>
